<compile_context>
chip_gen: v7x
topology: tpu7x:2x2x1
jax: 0.10.0
libtpu: 0.0.40
codegen_flags: <defaults>
</compile_context>

<pallas_src>
import functools

import jax
import jax.numpy as jnp
from jax import lax
from jax.experimental import pallas as pl
from jax.experimental.pallas import tpu as pltpu

BN_EPS = 1e-5


# ----------------------------------------------------------------------------
# In-kernel helpers
# ----------------------------------------------------------------------------
def _bn_relu(x2d, gamma, beta):
    """Train-mode BatchNorm (biased batch stats) + ReLU on an (M, C) tile.

    Per-channel sum and sum-of-squares are computed in ONE MXU push:
    ones_row(1,M) @ concat([x, x*x], lanes)(M, 2C) -> (1, 2C).
    NOTE: at much larger M switch to a two-pass (x - mean)^2 reduction to avoid
    E[x^2] - E[x]^2 cancellation.
    """
    m, c = x2d.shape
    inv_m = 1.0 / m
    ones_row = jnp.ones((1, m), jnp.float32)
    xcat = jnp.concatenate([x2d, x2d * x2d], axis=-1)                    # (M, 2C)
    stats = jnp.dot(ones_row, xcat, preferred_element_type=jnp.float32)  # (1, 2C)
    mean = stats[:, :c] * inv_m
    var = jnp.maximum(stats[:, c:] * inv_m - mean * mean, 0.0)
    y = (x2d - mean) * lax.rsqrt(var + BN_EPS) * gamma + beta
    return jnp.maximum(y, 0.0)


def _make_preact_kernel(N, Hin, Win, stride, has_shortcut):
    """Build the fused PreActBlock kernel for a static configuration."""
    s = stride
    Ho, Wo = Hin // s, Win // s
    M1 = N * Ho * Wo

    def pad_dims(h, w, cs):
        # per-phase padded quotient grid: ceil((h+2)/cs), ceil((w+2)/cs)
        return -(-(h + 2) // cs), -(-(w + 2) // cs)

    def scatter(ref, val2d, h, w, cs, C):
        """Scatter phase-split rows of val2d (M, C) into the zero-padded,
        stride-phase-split scratch, zeroing ONLY the halo strips."""
        ho, wo = h // cs, w // cs
        Qh, Qw = pad_dims(h, w, cs)
        v4 = val2d.reshape(cs * cs * N, ho, wo, C)          # major-dim split only
        for ph in range(cs):
            for pw in range(cs):
                src = (ph * cs + pw) * N
                dst = (((ph + 1) % cs) * cs + ((pw + 1) % cs)) * N
                qh, qw = (ph + 1) // cs, (pw + 1) // cs
                # halo-only zeroing (review: don't memset the whole scratch)
                if qh > 0:
                    ref[dst:dst + N, 0:qh, :, :] = jnp.zeros((N, qh, Qw, C), jnp.float32)
                if qh + ho < Qh:
                    ref[dst:dst + N, qh + ho:Qh, :, :] = jnp.zeros(
                        (N, Qh - qh - ho, Qw, C), jnp.float32)
                if qw > 0:
                    ref[dst:dst + N, qh:qh + ho, 0:qw, :] = jnp.zeros(
                        (N, ho, qw, C), jnp.float32)
                if qw + wo < Qw:
                    ref[dst:dst + N, qh:qh + ho, qw + wo:Qw, :] = jnp.zeros(
                        (N, ho, Qw - qw - wo, C), jnp.float32)
                ref[dst:dst + N, qh:qh + ho, qw:qw + wo, :] = v4[src:src + N]

    def taps_3x3(ref, h, w, cs, C):
        """The 9 shifted taps of a 3x3 pad-1 conv, each (M_out, C), as static slices."""
        ho, wo = h // cs, w // cs
        m = N * ho * wo
        out = []
        for kh in range(3):
            for kw in range(3):
                p = ((kh % cs) * cs + (kw % cs)) * N
                out.append(ref[p:p + N,
                               kh // cs:kh // cs + ho,
                               kw // cs:kw // cs + wo, :].reshape(m, C))
        return out

    def kernel(x_ref, g1_ref, b1_ref, g2_ref, b2_ref, w1_ref, w2t_ref, *rest):
        if has_shortcut:
            wsct_ref, o_ref, a1p_ref, a2p_ref = rest
        else:
            o_ref, a1p_ref, a2p_ref = rest

        Cin = x_ref.shape[-1]
        Cout = w2t_ref.shape[0]

        # ---- BN1 + ReLU over the whole batch (single resident block) -------
        # x_ref rows are a pure permutation (phase split) of all N*H*W positions,
        # so axis-0 statistics are the global batch statistics.
        x2d = x_ref[...].reshape(N * Hin * Win, Cin)
        a1 = _bn_relu(x2d, g1_ref[...], b1_ref[...])

        # ---- scatter a1 into padded phase-split scratch (halo-only zeroing) -
        scatter(a1p_ref, a1, Hin, Win, s, Cin)

        # ---- conv1 (3x3, stride s, pad 1) as ONE im2col GEMM ----------------
        taps1 = taps_3x3(a1p_ref, Hin, Win, s, Cin)
        slab1 = jnp.concatenate(taps1, axis=-1)                     # (M1, 9*Cin)
        o1 = jnp.dot(slab1, w1_ref[...],
                     preferred_element_type=jnp.float32)            # (M1, Cout)

        # ---- shortcut (channels-first (Cout, M1), fused into the output) ----
        if has_shortcut:
            # centre tap (kh=kw=1) == the stride-s sample points of a1 == the
            # exact operand of the 1x1 stride-s shortcut conv.
            sc = lax.dot_general(wsct_ref[...], taps1[4],
                                 (((1,), (1,)), ((), ())),
                                 preferred_element_type=jnp.float32)  # (Cout, M1)
        else:
            # identity shortcut uses the raw input x; MXU-eye transpose to (Cout, M1)
            sc = lax.dot_general(jnp.eye(Cout, dtype=jnp.float32), x2d[0:M1, :],
                                 (((1,), (1,)), ((), ())),
                                 preferred_element_type=jnp.float32)

        # ---- BN2 + ReLU ------------------------------------------------------
        a2 = _bn_relu(o1, g2_ref[...], b2_ref[...])

        # ---- conv2 (3x3, stride 1, pad 1): ONE GEMM, lane-dense (Cout, M1) store
        scatter(a2p_ref, a2, Ho, Wo, 1, Cout)
        slab2 = jnp.concatenate(taps_3x3(a2p_ref, Ho, Wo, 1, Cout), axis=-1)  # (M1, 9*Cout)
        o_ref[...] = sc + lax.dot_general(w2t_ref[...], slab2,
                                          (((1,), (1,)), ((), ())),
                                          preferred_element_type=jnp.float32)  # (Cout, M1)

    return kernel


# ----------------------------------------------------------------------------
# Pallas wrapper
# ----------------------------------------------------------------------------
def _preact_block_pallas(x_phase, g1, b1, g2, b2, w1, w2t, wsct,
                         *, N, H, W, stride, has_shortcut):
    s = stride
    Ho, Wo = H // s, W // s
    M1 = N * Ho * Wo
    Qh = -(-(H + 2) // s)
    Qw = -(-(W + 2) // s)
    Cin = x_phase.shape[-1]
    Cout = w1.shape[-1]

    kernel = _make_preact_kernel(N, H, W, s, has_shortcut)

    def full_spec(shape):
        zeros = (0,) * len(shape)
        return pl.BlockSpec(shape, lambda zeros=zeros: zeros)

    args = [x_phase, g1, b1, g2, b2, w1, w2t]
    in_specs = [full_spec(a.shape) for a in args]
    if has_shortcut:
        args.append(wsct)
        in_specs.append(full_spec(wsct.shape))

    return pl.pallas_call(
        kernel,
        # Lane-dense output: last dim M1 is a multiple of 128 -> unmasked vst.
        out_shape=jax.ShapeDtypeStruct((Cout, M1), jnp.float32),
        in_specs=in_specs,
        out_specs=full_spec((Cout, M1)),
        scratch_shapes=[
            pltpu.VMEM((s * s * N, Qh, Qw, Cin), jnp.float32),    # padded a1 (phase-split)
            pltpu.VMEM((N, Ho + 2, Wo + 2, Cout), jnp.float32),   # padded a2
        ],
    )(*args)


# ----------------------------------------------------------------------------
# One-time parameter preparation (hoisted out of the per-forward path)
# ----------------------------------------------------------------------------
def prepare_params(params):
    """PyTorch layout -> kernel matmul layout.

    conv1: OIHW -> (9*Cin, Cout)    (slab @ W,  standard NN matmul)
    conv2: OIHW -> (Cout, 9*Cout)   (W @ slab^T, NT matmul -> lane-dense (Cout, M1) store)
    shortcut: OI11 -> (Cout, Cin)
    """
    def im2col_rhs(w):                       # (O,I,KH,KW) -> (KH*KW*I, O)
        O, I, KH, KW = w.shape
        return jnp.transpose(w.astype(jnp.float32), (2, 3, 1, 0)).reshape(KH * KW * I, O)

    def im2col_lhs(w):                       # (O,I,KH,KW) -> (O, KH*KW*I)
        O, I, KH, KW = w.shape
        return jnp.transpose(w.astype(jnp.float32), (0, 2, 3, 1)).reshape(O, KH * KW * I)

    prep = {
        "g1": params["g1"].astype(jnp.float32).reshape(1, -1),
        "b1": params["b1"].astype(jnp.float32).reshape(1, -1),
        "g2": params["g2"].astype(jnp.float32).reshape(1, -1),
        "b2": params["b2"].astype(jnp.float32).reshape(1, -1),
        "w1": im2col_rhs(params["w1"]),
        "w2t": im2col_lhs(params["w2"]),
    }
    if "w_sc" in params:
        O, I = params["w_sc"].shape[:2]
        prep["w_sct"] = params["w_sc"].astype(jnp.float32).reshape(O, I)
    return prep


# ----------------------------------------------------------------------------
# PreActBlock forward (single fused Pallas kernel + thin layout glue)
# ----------------------------------------------------------------------------
@functools.partial(jax.jit, static_argnames=("stride", "planes"))
def preact_block_forward(x_nchw, prep, stride, planes):
    N, Cin, H, W = x_nchw.shape
    s = stride
    assert H % s == 0 and W % s == 0
    Ho, Wo = H // s, W // s
    has_shortcut = (s != 1) or (Cin != planes)

    # NCHW -> stride-phase-split NHWC: rows ordered (ph, pw, n, oh, ow), cols = Cin.
    # Pure permutation of the input so BN1 batch statistics are unchanged; inside the
    # kernel every strided conv tap becomes a static contiguous slice.
    x = x_nchw.astype(jnp.float32).reshape(N, Cin, Ho, s, Wo, s)
    x = jnp.transpose(x, (3, 5, 0, 2, 4, 1)).reshape(s * s * N, Ho, Wo, Cin)

    wsct = prep.get("w_sct") if has_shortcut else None
    out_cm = _preact_block_pallas(
        x, prep["g1"], prep["b1"], prep["g2"], prep["b2"],
        prep["w1"], prep["w2t"], wsct,
        N=N, H=H, W=W, stride=s, has_shortcut=has_shortcut)

    # (Cout, N*Ho*Wo) lane-dense kernel output -> NCHW
    out = out_cm.reshape(planes, N, Ho, Wo)
    return jnp.transpose(out, (1, 0, 2, 3))


# ----------------------------------------------------------------------------
# Pure-JAX reference (mirrors the PyTorch forward in NCHW, train-mode BN)
# ----------------------------------------------------------------------------
def reference_forward(x, params, stride):
    def bn_relu(x, g, b):
        mean = jnp.mean(x, axis=(0, 2, 3), keepdims=True)
        var = jnp.mean((x - mean) ** 2, axis=(0, 2, 3), keepdims=True)
        y = (x - mean) * lax.rsqrt(var + BN_EPS)
        y = y * g.reshape(1, -1, 1, 1) + b.reshape(1, -1, 1, 1)
        return jnp.maximum(y, 0.0)

    def conv(x, w, s, p):
        return lax.conv_general_dilated(
            x, w, (s, s), [(p, p), (p, p)],
            dimension_numbers=("NCHW", "OIHW", "NCHW"),
            precision=lax.Precision.HIGHEST)

    Cin = x.shape[1]
    planes = params["w1"].shape[0]
    a1 = bn_relu(x, params["g1"], params["b1"])
    if stride != 1 or Cin != planes:
        shortcut = conv(a1, params["w_sc"], stride, 0)
    else:
        shortcut = x
    o1 = conv(a1, params["w1"], stride, 1)
    o2 = conv(bn_relu(o1, params["g2"], params["b2"]), params["w2"], 1, 1)
    return o2 + shortcut


# ----------------------------------------------------------------------------
if __name__ == "__main__":
    in_planes, planes, stride = 4, 8, 2
    N, H, W = 2, 16, 16

    key = jax.random.PRNGKey(0)
    kx, k1, k2, k3 = jax.random.split(key, 4)

    x = jax.random.normal(kx, (N, in_planes, H, W), dtype=jnp.float32)

    params = {
        # BatchNorm2d default init: weight=1, bias=0
        "g1": jnp.ones((in_planes,), jnp.float32),
        "b1": jnp.zeros((in_planes,), jnp.float32),
        "g2": jnp.ones((planes,), jnp.float32),
        "b2": jnp.zeros((planes,), jnp.float32),
        # Conv weights (OIHW), deterministic random init
        "w1": 0.1 * jax.random.normal(k1, (planes, in_planes, 3, 3), jnp.float32),
        "w2": 0.1 * jax.random.normal(k2, (planes, planes, 3, 3), jnp.float32),
        "w_sc": 0.1 * jax.random.normal(k3, (planes, in_planes, 1, 1), jnp.float32),
    }

    prep = prepare_params(params)      # one-time weight layout conversion

    out = preact_block_forward(x, prep, stride=stride, planes=planes)
    out = jax.block_until_ready(out)

    ref = reference_forward(x, params, stride)
    assert out.shape == ref.shape == (N, planes, H // stride, W // stride)
    err = float(jnp.max(jnp.abs(out - ref)))
    assert jnp.allclose(out, ref, atol=2e-3, rtol=2e-3), err

    print("KERNEL_OK")
</pallas_src>

<mosaic_0001>
module attributes {stable_mosaic.version = 11 : i64} {
  func.func @kernel(%arg0: memref<8x8x8x4xf32, #tpu.memory_space<vmem>>, %arg1: memref<1x4xf32, #tpu.memory_space<vmem>>, %arg2: memref<1x4xf32, #tpu.memory_space<vmem>>, %arg3: memref<1x8xf32, #tpu.memory_space<vmem>>, %arg4: memref<1x8xf32, #tpu.memory_space<vmem>>, %arg5: memref<36x8xf32, #tpu.memory_space<vmem>>, %arg6: memref<8x72xf32, #tpu.memory_space<vmem>>, %arg7: memref<8x4xf32, #tpu.memory_space<vmem>>, %arg8: memref<8x128xf32, #tpu.memory_space<vmem>>, %arg9: memref<8x9x9x4xf32, #tpu.memory_space<vmem>>, %arg10: memref<2x10x10x8xf32, #tpu.memory_space<vmem>>) attributes {dimension_semantics = [], scalar_prefetch = 0 : i64, scratch_operands = 2 : i64, tpu.core_type = #tpu.core_type<tc>} {
    %c0 = arith.constant 0 : index
    %c0_0 = arith.constant 0 : index
    %c0_1 = arith.constant 0 : index
    %c0_2 = arith.constant 0 : index
    %0 = vector.load %arg0[%c0, %c0_0, %c0_1, %c0_2] : memref<8x8x8x4xf32, #tpu.memory_space<vmem>>, vector<8x8x8x4xf32>
    %1 = vector.shape_cast %0 : vector<8x8x8x4xf32> to vector<512x4xf32>
    %c0_3 = arith.constant 0 : index
    %c0_4 = arith.constant 0 : index
    %2 = vector.load %arg1[%c0_3, %c0_4] : memref<1x4xf32, #tpu.memory_space<vmem>>, vector<1x4xf32>
    %c0_5 = arith.constant 0 : index
    %c0_6 = arith.constant 0 : index
    %3 = vector.load %arg2[%c0_5, %c0_6] : memref<1x4xf32, #tpu.memory_space<vmem>>, vector<1x4xf32>
    %cst = arith.constant 1.000000e+00 : f32
    %4 = vector.broadcast %cst : f32 to vector<1x512xf32>
    %5 = arith.mulf %1, %1 : vector<512x4xf32>
    %6 = tpu.concatenate %1, %5 in 1 : vector<512x4xf32>, vector<512x4xf32> -> vector<512x8xf32>
    %cst_7 = arith.constant dense<0.000000e+00> : vector<1x8xf32>
    %7 = tpu.matmul %4, %6, %cst_7 {dimension_numbers = #tpu.dot_dimension_numbers<[1], [0], [0], [1], [0, 0, 1, 1], [], []>} : vector<1x512xf32>, vector<512x8xf32>, vector<1x8xf32> -> vector<1x8xf32>
    %8 = vector.extract_strided_slice %7 {offsets = [0, 0], sizes = [1, 4], strides = [1, 1]} : vector<1x8xf32> to vector<1x4xf32>
    %cst_8 = arith.constant 0.001953125 : f32
    %9 = vector.broadcast %cst_8 : f32 to vector<1x4xf32>
    %10 = arith.mulf %8, %9 : vector<1x4xf32>
    %11 = vector.extract_strided_slice %7 {offsets = [0, 4], sizes = [1, 4], strides = [1, 1]} : vector<1x8xf32> to vector<1x4xf32>
    %cst_9 = arith.constant 0.001953125 : f32
    %12 = vector.broadcast %cst_9 : f32 to vector<1x4xf32>
    %13 = arith.mulf %11, %12 : vector<1x4xf32>
    %14 = arith.mulf %10, %10 : vector<1x4xf32>
    %15 = arith.subf %13, %14 : vector<1x4xf32>
    %cst_10 = arith.constant 0.000000e+00 : f32
    %16 = vector.broadcast %cst_10 : f32 to vector<1x4xf32>
    %17 = arith.maximumf %15, %16 : vector<1x4xf32>
    %18 = vector.broadcast %10 : vector<1x4xf32> to vector<512x4xf32>
    %19 = arith.subf %1, %18 : vector<512x4xf32>
    %cst_11 = arith.constant 9.99999974E-6 : f32
    %20 = vector.broadcast %cst_11 : f32 to vector<1x4xf32>
    %21 = arith.addf %17, %20 : vector<1x4xf32>
    %22 = math.rsqrt %21 : vector<1x4xf32>
    %23 = vector.broadcast %22 : vector<1x4xf32> to vector<512x4xf32>
    %24 = arith.mulf %19, %23 : vector<512x4xf32>
    %25 = vector.broadcast %2 : vector<1x4xf32> to vector<512x4xf32>
    %26 = arith.mulf %24, %25 : vector<512x4xf32>
    %27 = vector.broadcast %3 : vector<1x4xf32> to vector<512x4xf32>
    %28 = arith.addf %26, %27 : vector<512x4xf32>
    %cst_12 = arith.constant 0.000000e+00 : f32
    %29 = vector.broadcast %cst_12 : f32 to vector<512x4xf32>
    %30 = arith.maximumf %28, %29 : vector<512x4xf32>
    %31 = vector.shape_cast %30 : vector<512x4xf32> to vector<8x8x8x4xf32>
    %cst_13 = arith.constant 0.000000e+00 : f32
    %32 = vector.broadcast %cst_13 : f32 to vector<2x1x9x4xf32>
    %c6 = arith.constant 6 : index
    %c8 = arith.constant 8 : index
    %c0_14 = arith.constant 0 : index
    %c0_15 = arith.constant 0 : index
    %33 = vector.load %arg9[%c6, %c8, %c0_14, %c0_15] : memref<8x9x9x4xf32, #tpu.memory_space<vmem>>, vector<2x1x9x4xf32>
    tpu.vector_store %arg9[%c6, %c8, %c0_14, %c0_15], %32 {strides = array<i32>} : memref<8x9x9x4xf32, #tpu.memory_space<vmem>>, vector<2x1x9x4xf32>,
    %cst_16 = arith.constant 0.000000e+00 : f32
    %34 = vector.broadcast %cst_16 : f32 to vector<2x8x1x4xf32>
    %c6_17 = arith.constant 6 : index
    %c0_18 = arith.constant 0 : index
    %c8_19 = arith.constant 8 : index
    %c0_20 = arith.constant 0 : index
    %35 = vector.load %arg9[%c6_17, %c0_18, %c8_19, %c0_20] : memref<8x9x9x4xf32, #tpu.memory_space<vmem>>, vector<2x8x1x4xf32>
    tpu.vector_store %arg9[%c6_17, %c0_18, %c8_19, %c0_20], %34 {strides = array<i32>} : memref<8x9x9x4xf32, #tpu.memory_space<vmem>>, vector<2x8x1x4xf32>,
    %36 = vector.extract_strided_slice %31 {offsets = [0, 0, 0, 0], sizes = [2, 8, 8, 4], strides = [1, 1, 1, 1]} : vector<8x8x8x4xf32> to vector<2x8x8x4xf32>
    %c6_21 = arith.constant 6 : index
    %c0_22 = arith.constant 0 : index
    %c0_23 = arith.constant 0 : index
    %c0_24 = arith.constant 0 : index
    %37 = vector.load %arg9[%c6_21, %c0_22, %c0_23, %c0_24] : memref<8x9x9x4xf32, #tpu.memory_space<vmem>>, vector<2x8x8x4xf32>
    tpu.vector_store %arg9[%c6_21, %c0_22, %c0_23, %c0_24], %36 {strides = array<i32>} : memref<8x9x9x4xf32, #tpu.memory_space<vmem>>, vector<2x8x8x4xf32>,
    %cst_25 = arith.constant 0.000000e+00 : f32
    %38 = vector.broadcast %cst_25 : f32 to vector<2x1x9x4xf32>
    %c4 = arith.constant 4 : index
    %c8_26 = arith.constant 8 : index
    %c0_27 = arith.constant 0 : index
    %c0_28 = arith.constant 0 : index
    %39 = vector.load %arg9[%c4, %c8_26, %c0_27, %c0_28] : memref<8x9x9x4xf32, #tpu.memory_space<vmem>>, vector<2x1x9x4xf32>
    tpu.vector_store %arg9[%c4, %c8_26, %c0_27, %c0_28], %38 {strides = array<i32>} : memref<8x9x9x4xf32, #tpu.memory_space<vmem>>, vector<2x1x9x4xf32>,
    %cst_29 = arith.constant 0.000000e+00 : f32
    %40 = vector.broadcast %cst_29 : f32 to vector<2x8x1x4xf32>
    %c4_30 = arith.constant 4 : index
    %c0_31 = arith.constant 0 : index
    %c0_32 = arith.constant 0 : index
    %c0_33 = arith.constant 0 : index
    %41 = vector.load %arg9[%c4_30, %c0_31, %c0_32, %c0_33] : memref<8x9x9x4xf32, #tpu.memory_space<vmem>>, vector<2x8x1x4xf32>
    tpu.vector_store %arg9[%c4_30, %c0_31, %c0_32, %c0_33], %40 {strides = array<i32>} : memref<8x9x9x4xf32, #tpu.memory_space<vmem>>, vector<2x8x1x4xf32>,
    %42 = vector.extract_strided_slice %31 {offsets = [2, 0, 0, 0], sizes = [2, 8, 8, 4], strides = [1, 1, 1, 1]} : vector<8x8x8x4xf32> to vector<2x8x8x4xf32>
    %c4_34 = arith.constant 4 : index
    %c0_35 = arith.constant 0 : index
    %c1 = arith.constant 1 : index
    %c0_36 = arith.constant 0 : index
    %43 = vector.load %arg9[%c4_34, %c0_35, %c1, %c0_36] : memref<8x9x9x4xf32, #tpu.memory_space<vmem>>, vector<2x8x8x4xf32>
    tpu.vector_store %arg9[%c4_34, %c0_35, %c1, %c0_36], %42 {strides = array<i32>} : memref<8x9x9x4xf32, #tpu.memory_space<vmem>>, vector<2x8x8x4xf32>,
    %cst_37 = arith.constant 0.000000e+00 : f32
    %44 = vector.broadcast %cst_37 : f32 to vector<2x1x9x4xf32>
    %c2 = arith.constant 2 : index
    %c0_38 = arith.constant 0 : index
    %c0_39 = arith.constant 0 : index
    %c0_40 = arith.constant 0 : index
    %45 = vector.load %arg9[%c2, %c0_38, %c0_39, %c0_40] : memref<8x9x9x4xf32, #tpu.memory_space<vmem>>, vector<2x1x9x4xf32>
    tpu.vector_store %arg9[%c2, %c0_38, %c0_39, %c0_40], %44 {strides = array<i32>} : memref<8x9x9x4xf32, #tpu.memory_space<vmem>>, vector<2x1x9x4xf32>,
    %cst_41 = arith.constant 0.000000e+00 : f32
    %46 = vector.broadcast %cst_41 : f32 to vector<2x8x1x4xf32>
    %c2_42 = arith.constant 2 : index
    %c1_43 = arith.constant 1 : index
    %c8_44 = arith.constant 8 : index
    %c0_45 = arith.constant 0 : index
    %47 = vector.load %arg9[%c2_42, %c1_43, %c8_44, %c0_45] : memref<8x9x9x4xf32, #tpu.memory_space<vmem>>, vector<2x8x1x4xf32>
    tpu.vector_store %arg9[%c2_42, %c1_43, %c8_44, %c0_45], %46 {strides = array<i32>} : memref<8x9x9x4xf32, #tpu.memory_space<vmem>>, vector<2x8x1x4xf32>,
    %48 = vector.extract_strided_slice %31 {offsets = [4, 0, 0, 0], sizes = [2, 8, 8, 4], strides = [1, 1, 1, 1]} : vector<8x8x8x4xf32> to vector<2x8x8x4xf32>
    %c2_46 = arith.constant 2 : index
    %c1_47 = arith.constant 1 : index
    %c0_48 = arith.constant 0 : index
    %c0_49 = arith.constant 0 : index
    %49 = vector.load %arg9[%c2_46, %c1_47, %c0_48, %c0_49] : memref<8x9x9x4xf32, #tpu.memory_space<vmem>>, vector<2x8x8x4xf32>
    tpu.vector_store %arg9[%c2_46, %c1_47, %c0_48, %c0_49], %48 {strides = array<i32>} : memref<8x9x9x4xf32, #tpu.memory_space<vmem>>, vector<2x8x8x4xf32>,
    %cst_50 = arith.constant 0.000000e+00 : f32
    %50 = vector.broadcast %cst_50 : f32 to vector<2x1x9x4xf32>
    %c0_51 = arith.constant 0 : index
    %c0_52 = arith.constant 0 : index
    %c0_53 = arith.constant 0 : index
    %c0_54 = arith.constant 0 : index
    %51 = vector.load %arg9[%c0_51, %c0_52, %c0_53, %c0_54] : memref<8x9x9x4xf32, #tpu.memory_space<vmem>>, vector<2x1x9x4xf32>
    tpu.vector_store %arg9[%c0_51, %c0_52, %c0_53, %c0_54], %50 {strides = array<i32>} : memref<8x9x9x4xf32, #tpu.memory_space<vmem>>, vector<2x1x9x4xf32>,
    %cst_55 = arith.constant 0.000000e+00 : f32
    %52 = vector.broadcast %cst_55 : f32 to vector<2x8x1x4xf32>
    %c0_56 = arith.constant 0 : index
    %c1_57 = arith.constant 1 : index
    %c0_58 = arith.constant 0 : index
    %c0_59 = arith.constant 0 : index
    %53 = vector.load %arg9[%c0_56, %c1_57, %c0_58, %c0_59] : memref<8x9x9x4xf32, #tpu.memory_space<vmem>>, vector<2x8x1x4xf32>
    tpu.vector_store %arg9[%c0_56, %c1_57, %c0_58, %c0_59], %52 {strides = array<i32>} : memref<8x9x9x4xf32, #tpu.memory_space<vmem>>, vector<2x8x1x4xf32>,
    %54 = vector.extract_strided_slice %31 {offsets = [6, 0, 0, 0], sizes = [2, 8, 8, 4], strides = [1, 1, 1, 1]} : vector<8x8x8x4xf32> to vector<2x8x8x4xf32>
    %c0_60 = arith.constant 0 : index
    %c1_61 = arith.constant 1 : index
    %c1_62 = arith.constant 1 : index
    %c0_63 = arith.constant 0 : index
    %55 = vector.load %arg9[%c0_60, %c1_61, %c1_62, %c0_63] : memref<8x9x9x4xf32, #tpu.memory_space<vmem>>, vector<2x8x8x4xf32>
    tpu.vector_store %arg9[%c0_60, %c1_61, %c1_62, %c0_63], %54 {strides = array<i32>} : memref<8x9x9x4xf32, #tpu.memory_space<vmem>>, vector<2x8x8x4xf32>,
    %c0_64 = arith.constant 0 : index
    %c0_65 = arith.constant 0 : index
    %c0_66 = arith.constant 0 : index
    %c0_67 = arith.constant 0 : index
    %56 = vector.load %arg9[%c0_64, %c0_65, %c0_66, %c0_67] : memref<8x9x9x4xf32, #tpu.memory_space<vmem>>, vector<2x8x8x4xf32>
    %57 = vector.shape_cast %56 : vector<2x8x8x4xf32> to vector<128x4xf32>
    %c2_68 = arith.constant 2 : index
    %c0_69 = arith.constant 0 : index
    %c0_70 = arith.constant 0 : index
    %c0_71 = arith.constant 0 : index
    %58 = vector.load %arg9[%c2_68, %c0_69, %c0_70, %c0_71] : memref<8x9x9x4xf32, #tpu.memory_space<vmem>>, vector<2x8x8x4xf32>
    %59 = vector.shape_cast %58 : vector<2x8x8x4xf32> to vector<128x4xf32>
    %c0_72 = arith.constant 0 : index
    %c0_73 = arith.constant 0 : index
    %c1_74 = arith.constant 1 : index
    %c0_75 = arith.constant 0 : index
    %60 = vector.load %arg9[%c0_72, %c0_73, %c1_74, %c0_75] : memref<8x9x9x4xf32, #tpu.memory_space<vmem>>, vector<2x8x8x4xf32>
    %61 = vector.shape_cast %60 : vector<2x8x8x4xf32> to vector<128x4xf32>
    %c4_76 = arith.constant 4 : index
    %c0_77 = arith.constant 0 : index
    %c0_78 = arith.constant 0 : index
    %c0_79 = arith.constant 0 : index
    %62 = vector.load %arg9[%c4_76, %c0_77, %c0_78, %c0_79] : memref<8x9x9x4xf32, #tpu.memory_space<vmem>>, vector<2x8x8x4xf32>
    %63 = vector.shape_cast %62 : vector<2x8x8x4xf32> to vector<128x4xf32>
    %c6_80 = arith.constant 6 : index
    %c0_81 = arith.constant 0 : index
    %c0_82 = arith.constant 0 : index
    %c0_83 = arith.constant 0 : index
    %64 = vector.load %arg9[%c6_80, %c0_81, %c0_82, %c0_83] : memref<8x9x9x4xf32, #tpu.memory_space<vmem>>, vector<2x8x8x4xf32>
    %65 = vector.shape_cast %64 : vector<2x8x8x4xf32> to vector<128x4xf32>
    %c4_84 = arith.constant 4 : index
    %c0_85 = arith.constant 0 : index
    %c1_86 = arith.constant 1 : index
    %c0_87 = arith.constant 0 : index
    %66 = vector.load %arg9[%c4_84, %c0_85, %c1_86, %c0_87] : memref<8x9x9x4xf32, #tpu.memory_space<vmem>>, vector<2x8x8x4xf32>
    %67 = vector.shape_cast %66 : vector<2x8x8x4xf32> to vector<128x4xf32>
    %c0_88 = arith.constant 0 : index
    %c1_89 = arith.constant 1 : index
    %c0_90 = arith.constant 0 : index
    %c0_91 = arith.constant 0 : index
    %68 = vector.load %arg9[%c0_88, %c1_89, %c0_90, %c0_91] : memref<8x9x9x4xf32, #tpu.memory_space<vmem>>, vector<2x8x8x4xf32>
    %69 = vector.shape_cast %68 : vector<2x8x8x4xf32> to vector<128x4xf32>
    %c2_92 = arith.constant 2 : index
    %c1_93 = arith.constant 1 : index
    %c0_94 = arith.constant 0 : index
    %c0_95 = arith.constant 0 : index
    %70 = vector.load %arg9[%c2_92, %c1_93, %c0_94, %c0_95] : memref<8x9x9x4xf32, #tpu.memory_space<vmem>>, vector<2x8x8x4xf32>
    %71 = vector.shape_cast %70 : vector<2x8x8x4xf32> to vector<128x4xf32>
    %c0_96 = arith.constant 0 : index
    %c1_97 = arith.constant 1 : index
    %c1_98 = arith.constant 1 : index
    %c0_99 = arith.constant 0 : index
    %72 = vector.load %arg9[%c0_96, %c1_97, %c1_98, %c0_99] : memref<8x9x9x4xf32, #tpu.memory_space<vmem>>, vector<2x8x8x4xf32>
    %73 = vector.shape_cast %72 : vector<2x8x8x4xf32> to vector<128x4xf32>
    %74 = tpu.concatenate %57, %59, %61, %63, %65, %67, %69, %71, %73 in 1 : vector<128x4xf32>, vector<128x4xf32>, vector<128x4xf32>, vector<128x4xf32>, vector<128x4xf32>, vector<128x4xf32>, vector<128x4xf32>, vector<128x4xf32>, vector<128x4xf32> -> vector<128x36xf32>
    %c0_100 = arith.constant 0 : index
    %c0_101 = arith.constant 0 : index
    %75 = vector.load %arg5[%c0_100, %c0_101] : memref<36x8xf32, #tpu.memory_space<vmem>>, vector<36x8xf32>
    %cst_102 = arith.constant dense<0.000000e+00> : vector<128x8xf32>
    %76 = tpu.matmul %74, %75, %cst_102 {dimension_numbers = #tpu.dot_dimension_numbers<[1], [0], [0], [1], [0, 0, 1, 1], [], []>} : vector<128x36xf32>, vector<36x8xf32>, vector<128x8xf32> -> vector<128x8xf32>
    %c0_103 = arith.constant 0 : index
    %c0_104 = arith.constant 0 : index
    %77 = vector.load %arg7[%c0_103, %c0_104] : memref<8x4xf32, #tpu.memory_space<vmem>>, vector<8x4xf32>
    %cst_105 = arith.constant dense<0.000000e+00> : vector<8x128xf32>
    %78 = tpu.matmul %77, %65, %cst_105 {dimension_numbers = #tpu.dot_dimension_numbers<[1], [1], [0], [0], [0, 0, 1, 0], [], []>} : vector<8x4xf32>, vector<128x4xf32>, vector<8x128xf32> -> vector<8x128xf32>
    %c0_106 = arith.constant 0 : index
    %c0_107 = arith.constant 0 : index
    %79 = vector.load %arg3[%c0_106, %c0_107] : memref<1x8xf32, #tpu.memory_space<vmem>>, vector<1x8xf32>
    %c0_108 = arith.constant 0 : index
    %c0_109 = arith.constant 0 : index
    %80 = vector.load %arg4[%c0_108, %c0_109] : memref<1x8xf32, #tpu.memory_space<vmem>>, vector<1x8xf32>
    %cst_110 = arith.constant 1.000000e+00 : f32
    %81 = vector.broadcast %cst_110 : f32 to vector<1x128xf32>
    %82 = arith.mulf %76, %76 : vector<128x8xf32>
    %83 = tpu.concatenate %76, %82 in 1 : vector<128x8xf32>, vector<128x8xf32> -> vector<128x16xf32>
    %cst_111 = arith.constant dense<0.000000e+00> : vector<1x16xf32>
    %84 = tpu.matmul %81, %83, %cst_111 {dimension_numbers = #tpu.dot_dimension_numbers<[1], [0], [0], [1], [0, 0, 1, 1], [], []>} : vector<1x128xf32>, vector<128x16xf32>, vector<1x16xf32> -> vector<1x16xf32>
    %85 = vector.extract_strided_slice %84 {offsets = [0, 0], sizes = [1, 8], strides = [1, 1]} : vector<1x16xf32> to vector<1x8xf32>
    %cst_112 = arith.constant 7.812500e-03 : f32
    %86 = vector.broadcast %cst_112 : f32 to vector<1x8xf32>
    %87 = arith.mulf %85, %86 : vector<1x8xf32>
    %88 = vector.extract_strided_slice %84 {offsets = [0, 8], sizes = [1, 8], strides = [1, 1]} : vector<1x16xf32> to vector<1x8xf32>
    %cst_113 = arith.constant 7.812500e-03 : f32
    %89 = vector.broadcast %cst_113 : f32 to vector<1x8xf32>
    %90 = arith.mulf %88, %89 : vector<1x8xf32>
    %91 = arith.mulf %87, %87 : vector<1x8xf32>
    %92 = arith.subf %90, %91 : vector<1x8xf32>
    %cst_114 = arith.constant 0.000000e+00 : f32
    %93 = vector.broadcast %cst_114 : f32 to vector<1x8xf32>
    %94 = arith.maximumf %92, %93 : vector<1x8xf32>
    %95 = vector.broadcast %87 : vector<1x8xf32> to vector<128x8xf32>
    %96 = arith.subf %76, %95 : vector<128x8xf32>
    %cst_115 = arith.constant 9.99999974E-6 : f32
    %97 = vector.broadcast %cst_115 : f32 to vector<1x8xf32>
    %98 = arith.addf %94, %97 : vector<1x8xf32>
    %99 = math.rsqrt %98 : vector<1x8xf32>
    %100 = vector.broadcast %99 : vector<1x8xf32> to vector<128x8xf32>
    %101 = arith.mulf %96, %100 : vector<128x8xf32>
    %102 = vector.broadcast %79 : vector<1x8xf32> to vector<128x8xf32>
    %103 = arith.mulf %101, %102 : vector<128x8xf32>
    %104 = vector.broadcast %80 : vector<1x8xf32> to vector<128x8xf32>
    %105 = arith.addf %103, %104 : vector<128x8xf32>
    %cst_116 = arith.constant 0.000000e+00 : f32
    %106 = vector.broadcast %cst_116 : f32 to vector<128x8xf32>
    %107 = arith.maximumf %105, %106 : vector<128x8xf32>
    %108 = vector.shape_cast %107 : vector<128x8xf32> to vector<2x8x8x8xf32>
    %cst_117 = arith.constant 0.000000e+00 : f32
    %109 = vector.broadcast %cst_117 : f32 to vector<2x1x10x8xf32>
    %c0_118 = arith.constant 0 : index
    %c0_119 = arith.constant 0 : index
    %c0_120 = arith.constant 0 : index
    %c0_121 = arith.constant 0 : index
    %110 = vector.load %arg10[%c0_118, %c0_119, %c0_120, %c0_121] : memref<2x10x10x8xf32, #tpu.memory_space<vmem>>, vector<2x1x10x8xf32>
    tpu.vector_store %arg10[%c0_118, %c0_119, %c0_120, %c0_121], %109 {strides = array<i32>} : memref<2x10x10x8xf32, #tpu.memory_space<vmem>>, vector<2x1x10x8xf32>,
    %cst_122 = arith.constant 0.000000e+00 : f32
    %111 = vector.broadcast %cst_122 : f32 to vector<2x1x10x8xf32>
    %c0_123 = arith.constant 0 : index
    %c9 = arith.constant 9 : index
    %c0_124 = arith.constant 0 : index
    %c0_125 = arith.constant 0 : index
    %112 = vector.load %arg10[%c0_123, %c9, %c0_124, %c0_125] : memref<2x10x10x8xf32, #tpu.memory_space<vmem>>, vector<2x1x10x8xf32>
    tpu.vector_store %arg10[%c0_123, %c9, %c0_124, %c0_125], %111 {strides = array<i32>} : memref<2x10x10x8xf32, #tpu.memory_space<vmem>>, vector<2x1x10x8xf32>,
    %cst_126 = arith.constant 0.000000e+00 : f32
    %113 = vector.broadcast %cst_126 : f32 to vector<2x8x1x8xf32>
    %c0_127 = arith.constant 0 : index
    %c1_128 = arith.constant 1 : index
    %c0_129 = arith.constant 0 : index
    %c0_130 = arith.constant 0 : index
    %114 = vector.load %arg10[%c0_127, %c1_128, %c0_129, %c0_130] : memref<2x10x10x8xf32, #tpu.memory_space<vmem>>, vector<2x8x1x8xf32>
    tpu.vector_store %arg10[%c0_127, %c1_128, %c0_129, %c0_130], %113 {strides = array<i32>} : memref<2x10x10x8xf32, #tpu.memory_space<vmem>>, vector<2x8x1x8xf32>,
    %cst_131 = arith.constant 0.000000e+00 : f32
    %115 = vector.broadcast %cst_131 : f32 to vector<2x8x1x8xf32>
    %c0_132 = arith.constant 0 : index
    %c1_133 = arith.constant 1 : index
    %c9_134 = arith.constant 9 : index
    %c0_135 = arith.constant 0 : index
    %116 = vector.load %arg10[%c0_132, %c1_133, %c9_134, %c0_135] : memref<2x10x10x8xf32, #tpu.memory_space<vmem>>, vector<2x8x1x8xf32>
    tpu.vector_store %arg10[%c0_132, %c1_133, %c9_134, %c0_135], %115 {strides = array<i32>} : memref<2x10x10x8xf32, #tpu.memory_space<vmem>>, vector<2x8x1x8xf32>,
    %c0_136 = arith.constant 0 : index
    %c1_137 = arith.constant 1 : index
    %c1_138 = arith.constant 1 : index
    %c0_139 = arith.constant 0 : index
    %117 = vector.load %arg10[%c0_136, %c1_137, %c1_138, %c0_139] : memref<2x10x10x8xf32, #tpu.memory_space<vmem>>, vector<2x8x8x8xf32>
    tpu.vector_store %arg10[%c0_136, %c1_137, %c1_138, %c0_139], %108 {strides = array<i32>} : memref<2x10x10x8xf32, #tpu.memory_space<vmem>>, vector<2x8x8x8xf32>,
    %c0_140 = arith.constant 0 : index
    %c0_141 = arith.constant 0 : index
    %c0_142 = arith.constant 0 : index
    %c0_143 = arith.constant 0 : index
    %118 = vector.load %arg10[%c0_140, %c0_141, %c0_142, %c0_143] : memref<2x10x10x8xf32, #tpu.memory_space<vmem>>, vector<2x8x8x8xf32>
    %119 = vector.shape_cast %118 : vector<2x8x8x8xf32> to vector<128x8xf32>
    %c0_144 = arith.constant 0 : index
    %c0_145 = arith.constant 0 : index
    %c1_146 = arith.constant 1 : index
    %c0_147 = arith.constant 0 : index
    %120 = vector.load %arg10[%c0_144, %c0_145, %c1_146, %c0_147] : memref<2x10x10x8xf32, #tpu.memory_space<vmem>>, vector<2x8x8x8xf32>
    %121 = vector.shape_cast %120 : vector<2x8x8x8xf32> to vector<128x8xf32>
    %c0_148 = arith.constant 0 : index
    %c0_149 = arith.constant 0 : index
    %c2_150 = arith.constant 2 : index
    %c0_151 = arith.constant 0 : index
    %122 = vector.load %arg10[%c0_148, %c0_149, %c2_150, %c0_151] : memref<2x10x10x8xf32, #tpu.memory_space<vmem>>, vector<2x8x8x8xf32>
    %123 = vector.shape_cast %122 : vector<2x8x8x8xf32> to vector<128x8xf32>
    %c0_152 = arith.constant 0 : index
    %c1_153 = arith.constant 1 : index
    %c0_154 = arith.constant 0 : index
    %c0_155 = arith.constant 0 : index
    %124 = vector.load %arg10[%c0_152, %c1_153, %c0_154, %c0_155] : memref<2x10x10x8xf32, #tpu.memory_space<vmem>>, vector<2x8x8x8xf32>
    %125 = vector.shape_cast %124 : vector<2x8x8x8xf32> to vector<128x8xf32>
    %c0_156 = arith.constant 0 : index
    %c1_157 = arith.constant 1 : index
    %c1_158 = arith.constant 1 : index
    %c0_159 = arith.constant 0 : index
    %126 = vector.load %arg10[%c0_156, %c1_157, %c1_158, %c0_159] : memref<2x10x10x8xf32, #tpu.memory_space<vmem>>, vector<2x8x8x8xf32>
    %127 = vector.shape_cast %126 : vector<2x8x8x8xf32> to vector<128x8xf32>
    %c0_160 = arith.constant 0 : index
    %c1_161 = arith.constant 1 : index
    %c2_162 = arith.constant 2 : index
    %c0_163 = arith.constant 0 : index
    %128 = vector.load %arg10[%c0_160, %c1_161, %c2_162, %c0_163] : memref<2x10x10x8xf32, #tpu.memory_space<vmem>>, vector<2x8x8x8xf32>
    %129 = vector.shape_cast %128 : vector<2x8x8x8xf32> to vector<128x8xf32>
    %c0_164 = arith.constant 0 : index
    %c2_165 = arith.constant 2 : index
    %c0_166 = arith.constant 0 : index
    %c0_167 = arith.constant 0 : index
    %130 = vector.load %arg10[%c0_164, %c2_165, %c0_166, %c0_167] : memref<2x10x10x8xf32, #tpu.memory_space<vmem>>, vector<2x8x8x8xf32>
    %131 = vector.shape_cast %130 : vector<2x8x8x8xf32> to vector<128x8xf32>
    %c0_168 = arith.constant 0 : index
    %c2_169 = arith.constant 2 : index
    %c1_170 = arith.constant 1 : index
    %c0_171 = arith.constant 0 : index
    %132 = vector.load %arg10[%c0_168, %c2_169, %c1_170, %c0_171] : memref<2x10x10x8xf32, #tpu.memory_space<vmem>>, vector<2x8x8x8xf32>
    %133 = vector.shape_cast %132 : vector<2x8x8x8xf32> to vector<128x8xf32>
    %c0_172 = arith.constant 0 : index
    %c2_173 = arith.constant 2 : index
    %c2_174 = arith.constant 2 : index
    %c0_175 = arith.constant 0 : index
    %134 = vector.load %arg10[%c0_172, %c2_173, %c2_174, %c0_175] : memref<2x10x10x8xf32, #tpu.memory_space<vmem>>, vector<2x8x8x8xf32>
    %135 = vector.shape_cast %134 : vector<2x8x8x8xf32> to vector<128x8xf32>
    %136 = tpu.concatenate %119, %121, %123, %125, %127, %129, %131, %133, %135 in 1 : vector<128x8xf32>, vector<128x8xf32>, vector<128x8xf32>, vector<128x8xf32>, vector<128x8xf32>, vector<128x8xf32>, vector<128x8xf32>, vector<128x8xf32>, vector<128x8xf32> -> vector<128x72xf32>
    %c0_176 = arith.constant 0 : index
    %c0_177 = arith.constant 0 : index
    %137 = vector.load %arg6[%c0_176, %c0_177] : memref<8x72xf32, #tpu.memory_space<vmem>>, vector<8x72xf32>
    %cst_178 = arith.constant dense<0.000000e+00> : vector<8x128xf32>
    %138 = tpu.matmul %137, %136, %cst_178 {dimension_numbers = #tpu.dot_dimension_numbers<[1], [1], [0], [0], [0, 0, 1, 0], [], []>} : vector<8x72xf32>, vector<128x72xf32>, vector<8x128xf32> -> vector<8x128xf32>
    %139 = arith.addf %78, %138 : vector<8x128xf32>
    %c0_179 = arith.constant 0 : index
    %c0_180 = arith.constant 0 : index
    %140 = vector.load %arg8[%c0_179, %c0_180] : memref<8x128xf32, #tpu.memory_space<vmem>>, vector<8x128xf32>
    tpu.vector_store %arg8[%c0_179, %c0_180], %139 {strides = array<i32>} : memref<8x128xf32, #tpu.memory_space<vmem>>, vector<8x128xf32>,
    return
  }
}

</mosaic_0001>

<llo_original>
// kernel: preact_block_forward.1
$region0: #{preact_block_forward.1}
  #allocation0 [shape = 'u32[]', space=smem, size = 0x4, offset = 0x4, fixed_abs, tag = 'smem constant byte address 0x4 - core index']
  #allocation1 [shape = 'u32[144,128]{1,0:T(1,128)}', space=vmem, size = 0x12000, scoped, tag = 'internal scratch']
  #allocation2 [shape = 'f32[8,9,9,4]{3,2,1,0:T(8,128)}', space=vmem, size = 0x90000, scoped, tag = 'scratch operand']
  #allocation3 [shape = 'f32[2,10,10,8]{3,2,1,0:T(8,128)}', space=vmem, size = 0x28000, scoped, tag = 'scratch operand']
  %s0 = inlined_call_operand.vmem [shape: f32[8,8,8,4], index: 0, kind: input, shape index: {}]
  %s1 = inlined_call_operand.vmem [shape: f32[1,4], index: 1, kind: input, shape index: {}]
  %s2 = inlined_call_operand.vmem [shape: f32[1,4], index: 2, kind: input, shape index: {}]
  %s3 = inlined_call_operand.vmem [shape: f32[1,8], index: 3, kind: input, shape index: {}]
  %s4 = inlined_call_operand.vmem [shape: f32[1,8], index: 4, kind: input, shape index: {}]
  %s5 = inlined_call_operand.vmem [shape: f32[36,8], index: 5, kind: input, shape index: {}]
  %s6 = inlined_call_operand.vmem [shape: f32[8,72], index: 6, kind: input, shape index: {}]
  %s7 = inlined_call_operand.vmem [shape: f32[8,4], index: 7, kind: input, shape index: {}]
  %s8 = inlined_call_operand.vmem [shape: f32[8,128], index: 8, kind: output, shape index: {}]
  %s9 = sld [smem:[#allocation0]]
  $region42: #{preact_block_forward.1} parent=0
    _
  %s11 = ssub.s32 1, %s9
  %s12 = scalar_select 0, %s11, %s9
  // Predicated region
  $region2: #{preact_block_forward.1} parent=0 // pred_check
    _
  $region3: #{preact_block_forward.1} parent=0 // pred_check_branch
    %14 = sbr.rel (0) target = $region5
  $region4: #{preact_block_forward.1} parent=0 // pred_region
    _
  $region5: #{preact_block_forward.1} parent=0 // pred_fallthru
    _
  // Predicated region
  $region6: #{preact_block_forward.1} parent=0 // pred_check
    _
  $region7: #{preact_block_forward.1} parent=0 // pred_check_branch
    %16 = sbr.rel (0) target = $region9
  $region8: #{preact_block_forward.1} parent=0 // pred_region
    _
  $region9: #{preact_block_forward.1} parent=0 // pred_fallthru
    _
  // Predicated region
  $region10: #{preact_block_forward.1} parent=0 // pred_check
    _
  $region11: #{preact_block_forward.1} parent=0 // pred_check_branch
    %18 = sbr.rel (0) target = $region13
  $region12: #{preact_block_forward.1} parent=0 // pred_region
    _
  $region13: #{preact_block_forward.1} parent=0 // pred_fallthru
    _
  // Predicated region
  $region14: #{preact_block_forward.1} parent=0 // pred_check
    _
  $region15: #{preact_block_forward.1} parent=0 // pred_check_branch
    %20 = sbr.rel (0) target = $region17
  $region16: #{preact_block_forward.1} parent=0 // pred_region
    _
  $region17: #{preact_block_forward.1} parent=0 // pred_fallthru
    _
  // Predicated region
  $region18: #{preact_block_forward.1} parent=0 // pred_check
    _
  $region19: #{preact_block_forward.1} parent=0 // pred_check_branch
    %22 = sbr.rel (0) target = $region21
  $region20: #{preact_block_forward.1} parent=0 // pred_region
    _
  $region21: #{preact_block_forward.1} parent=0 // pred_fallthru
    _
  // Predicated region
  $region22: #{preact_block_forward.1} parent=0 // pred_check
    _
  $region23: #{preact_block_forward.1} parent=0 // pred_check_branch
    %24 = sbr.rel (0) target = $region25
  $region24: #{preact_block_forward.1} parent=0 // pred_region
    _
  $region25: #{preact_block_forward.1} parent=0 // pred_fallthru
    _
  // Predicated region
  $region26: #{preact_block_forward.1} parent=0 // pred_check
    _
  $region27: #{preact_block_forward.1} parent=0 // pred_check_branch
    %26 = sbr.rel (0) target = $region29
  $region28: #{preact_block_forward.1} parent=0 // pred_region
    _
  $region29: #{preact_block_forward.1} parent=0 // pred_fallthru
    _
  // Predicated region
  $region30: #{preact_block_forward.1} parent=0 // pred_check
    _
  $region31: #{preact_block_forward.1} parent=0 // pred_check_branch
    %28 = sbr.rel (0) target = $region33
  $region32: #{preact_block_forward.1} parent=0 // pred_region
    _
  $region33: #{preact_block_forward.1} parent=0 // pred_fallthru
    _
  %v29 = vld [vmem:[%s0] sm:$0xff]
  %v30 = vld [vmem:[%s0 + $0x8] sm:$0xff]
  %v31 = vld [vmem:[%s0 + $0x10] sm:$0xff]
  %v32 = vld [vmem:[%s0 + $0x18] sm:$0xff]
  %v33 = vld [vmem:[%s0 + $0x20] sm:$0xff]
  %v34 = vld [vmem:[%s0 + $0x28] sm:$0xff]
  %v35 = vld [vmem:[%s0 + $0x30] sm:$0xff]
  %v36 = vld [vmem:[%s0 + $0x38] sm:$0xff]
  %v37 = vld [vmem:[%s0 + $0x40] sm:$0xff]
  %v38 = vld [vmem:[%s0 + $0x48] sm:$0xff]
  %v39 = vld [vmem:[%s0 + $0x50] sm:$0xff]
  %v40 = vld [vmem:[%s0 + $0x58] sm:$0xff]
  %v41 = vld [vmem:[%s0 + $0x60] sm:$0xff]
  %v42 = vld [vmem:[%s0 + $0x68] sm:$0xff]
  %v43 = vld [vmem:[%s0 + $0x70] sm:$0xff]
  %v44 = vld [vmem:[%s0 + $0x78] sm:$0xff]
  %v45 = vld [vmem:[%s0 + $0x80] sm:$0xff]
  %v46 = vld [vmem:[%s0 + $0x88] sm:$0xff]
  %v47 = vld [vmem:[%s0 + $0x90] sm:$0xff]
  %v48 = vld [vmem:[%s0 + $0x98] sm:$0xff]
  %v49 = vld [vmem:[%s0 + $0xa0] sm:$0xff]
  %v50 = vld [vmem:[%s0 + $0xa8] sm:$0xff]
  %v51 = vld [vmem:[%s0 + $0xb0] sm:$0xff]
  %v52 = vld [vmem:[%s0 + $0xb8] sm:$0xff]
  %v53 = vld [vmem:[%s0 + $0xc0] sm:$0xff]
  %v54 = vld [vmem:[%s0 + $0xc8] sm:$0xff]
  %v55 = vld [vmem:[%s0 + $0xd0] sm:$0xff]
  %v56 = vld [vmem:[%s0 + $0xd8] sm:$0xff]
  %v57 = vld [vmem:[%s0 + $0xe0] sm:$0xff]
  %v58 = vld [vmem:[%s0 + $0xe8] sm:$0xff]
  %v59 = vld [vmem:[%s0 + $0xf0] sm:$0xff]
  %v60 = vld [vmem:[%s0 + $0xf8] sm:$0xff]
  %v61 = vld [vmem:[%s0 + $0x100] sm:$0xff]
  %v62 = vld [vmem:[%s0 + $0x108] sm:$0xff]
  %v63 = vld [vmem:[%s0 + $0x110] sm:$0xff]
  %v64 = vld [vmem:[%s0 + $0x118] sm:$0xff]
  %v65 = vld [vmem:[%s0 + $0x120] sm:$0xff]
  %v66 = vld [vmem:[%s0 + $0x128] sm:$0xff]
  %v67 = vld [vmem:[%s0 + $0x130] sm:$0xff]
  %v68 = vld [vmem:[%s0 + $0x138] sm:$0xff]
  %v69 = vld [vmem:[%s0 + $0x140] sm:$0xff]
  %v70 = vld [vmem:[%s0 + $0x148] sm:$0xff]
  %v71 = vld [vmem:[%s0 + $0x150] sm:$0xff]
  %v72 = vld [vmem:[%s0 + $0x158] sm:$0xff]
  %v73 = vld [vmem:[%s0 + $0x160] sm:$0xff]
  %v74 = vld [vmem:[%s0 + $0x168] sm:$0xff]
  %v75 = vld [vmem:[%s0 + $0x170] sm:$0xff]
  %v76 = vld [vmem:[%s0 + $0x178] sm:$0xff]
  %v77 = vld [vmem:[%s0 + $0x180] sm:$0xff]
  %v78 = vld [vmem:[%s0 + $0x188] sm:$0xff]
  %v79 = vld [vmem:[%s0 + $0x190] sm:$0xff]
  %v80 = vld [vmem:[%s0 + $0x198] sm:$0xff]
  %v81 = vld [vmem:[%s0 + $0x1a0] sm:$0xff]
  %v82 = vld [vmem:[%s0 + $0x1a8] sm:$0xff]
  %v83 = vld [vmem:[%s0 + $0x1b0] sm:$0xff]
  %v84 = vld [vmem:[%s0 + $0x1b8] sm:$0xff]
  %v85 = vld [vmem:[%s0 + $0x1c0] sm:$0xff]
  %v86 = vld [vmem:[%s0 + $0x1c8] sm:$0xff]
  %v87 = vld [vmem:[%s0 + $0x1d0] sm:$0xff]
  %v88 = vld [vmem:[%s0 + $0x1d8] sm:$0xff]
  %v89 = vld [vmem:[%s0 + $0x1e0] sm:$0xff]
  %v90 = vld [vmem:[%s0 + $0x1e8] sm:$0xff]
  %v91 = vld [vmem:[%s0 + $0x1f0] sm:$0xff]
  %v92 = vld [vmem:[%s0 + $0x1f8] sm:$0xff]
  %v93 = vld [vmem:[%s1] sm:$0x1]
  %v94 = vld [vmem:[%s2] sm:$0x1]
  %v95 = vmul.f32 %v29, %v29
  %v96 = vmul.f32 %v30, %v30
  %v97 = vmul.f32 %v31, %v31
  %v98 = vmul.f32 %v32, %v32
  %v99 = vmul.f32 %v33, %v33
  %v100 = vmul.f32 %v34, %v34
  %v101 = vmul.f32 %v35, %v35
  %v102 = vmul.f32 %v36, %v36
  %v103 = vmul.f32 %v37, %v37
  %v104 = vmul.f32 %v38, %v38
  %v105 = vmul.f32 %v39, %v39
  %v106 = vmul.f32 %v40, %v40
  %v107 = vmul.f32 %v41, %v41
  %v108 = vmul.f32 %v42, %v42
  %v109 = vmul.f32 %v43, %v43
  %v110 = vmul.f32 %v44, %v44
  %v111 = vmul.f32 %v45, %v45
  %v112 = vmul.f32 %v46, %v46
  %v113 = vmul.f32 %v47, %v47
  %v114 = vmul.f32 %v48, %v48
  %v115 = vmul.f32 %v49, %v49
  %v116 = vmul.f32 %v50, %v50
  %v117 = vmul.f32 %v51, %v51
  %v118 = vmul.f32 %v52, %v52
  %v119 = vmul.f32 %v53, %v53
  %v120 = vmul.f32 %v54, %v54
  %v121 = vmul.f32 %v55, %v55
  %v122 = vmul.f32 %v56, %v56
  %v123 = vmul.f32 %v57, %v57
  %v124 = vmul.f32 %v58, %v58
  %v125 = vmul.f32 %v59, %v59
  %v126 = vmul.f32 %v60, %v60
  %v127 = vmul.f32 %v61, %v61
  %v128 = vmul.f32 %v62, %v62
  %v129 = vmul.f32 %v63, %v63
  %v130 = vmul.f32 %v64, %v64
  %v131 = vmul.f32 %v65, %v65
  %v132 = vmul.f32 %v66, %v66
  %v133 = vmul.f32 %v67, %v67
  %v134 = vmul.f32 %v68, %v68
  %v135 = vmul.f32 %v69, %v69
  %v136 = vmul.f32 %v70, %v70
  %v137 = vmul.f32 %v71, %v71
  %v138 = vmul.f32 %v72, %v72
  %v139 = vmul.f32 %v73, %v73
  %v140 = vmul.f32 %v74, %v74
  %v141 = vmul.f32 %v75, %v75
  %v142 = vmul.f32 %v76, %v76
  %v143 = vmul.f32 %v77, %v77
  %v144 = vmul.f32 %v78, %v78
  %v145 = vmul.f32 %v79, %v79
  %v146 = vmul.f32 %v80, %v80
  %v147 = vmul.f32 %v81, %v81
  %v148 = vmul.f32 %v82, %v82
  %v149 = vmul.f32 %v83, %v83
  %v150 = vmul.f32 %v84, %v84
  %v151 = vmul.f32 %v85, %v85
  %v152 = vmul.f32 %v86, %v86
  %v153 = vmul.f32 %v87, %v87
  %v154 = vmul.f32 %v88, %v88
  %v155 = vmul.f32 %v89, %v89
  %v156 = vmul.f32 %v90, %v90
  %v157 = vmul.f32 %v91, %v91
  %v158 = vmul.f32 %v92, %v92
  %223 = vrot.lane.b32.xlu0 %v95, 4
  %v224 = vpop.permute.xlu0 %223
  %225 = vrot.lane.b32.xlu0 %v96, 4
  %v226 = vpop.permute.xlu0 %225
  %227 = vrot.lane.b32.xlu0 %v97, 4
  %v228 = vpop.permute.xlu0 %227
  %229 = vrot.lane.b32.xlu0 %v98, 4
  %v230 = vpop.permute.xlu0 %229
  %231 = vrot.lane.b32.xlu0 %v99, 4
  %v232 = vpop.permute.xlu0 %231
  %233 = vrot.lane.b32.xlu0 %v100, 4
  %v234 = vpop.permute.xlu0 %233
  %235 = vrot.lane.b32.xlu0 %v101, 4
  %v236 = vpop.permute.xlu0 %235
  %237 = vrot.lane.b32.xlu0 %v102, 4
  %v238 = vpop.permute.xlu0 %237
  %239 = vrot.lane.b32.xlu0 %v103, 4
  %v240 = vpop.permute.xlu0 %239
  %241 = vrot.lane.b32.xlu0 %v104, 4
  %v242 = vpop.permute.xlu0 %241
  %243 = vrot.lane.b32.xlu0 %v105, 4
  %v244 = vpop.permute.xlu0 %243
  %245 = vrot.lane.b32.xlu0 %v106, 4
  %v246 = vpop.permute.xlu0 %245
  %247 = vrot.lane.b32.xlu0 %v107, 4
  %v248 = vpop.permute.xlu0 %247
  %249 = vrot.lane.b32.xlu0 %v108, 4
  %v250 = vpop.permute.xlu0 %249
  %251 = vrot.lane.b32.xlu0 %v109, 4
  %v252 = vpop.permute.xlu0 %251
  %253 = vrot.lane.b32.xlu0 %v110, 4
  %v254 = vpop.permute.xlu0 %253
  %255 = vrot.lane.b32.xlu0 %v111, 4
  %v256 = vpop.permute.xlu0 %255
  %257 = vrot.lane.b32.xlu0 %v112, 4
  %v258 = vpop.permute.xlu0 %257
  %259 = vrot.lane.b32.xlu0 %v113, 4
  %v260 = vpop.permute.xlu0 %259
  %261 = vrot.lane.b32.xlu0 %v114, 4
  %v262 = vpop.permute.xlu0 %261
  %263 = vrot.lane.b32.xlu0 %v115, 4
  %v264 = vpop.permute.xlu0 %263
  %265 = vrot.lane.b32.xlu0 %v116, 4
  %v266 = vpop.permute.xlu0 %265
  %267 = vrot.lane.b32.xlu0 %v117, 4
  %v268 = vpop.permute.xlu0 %267
  %269 = vrot.lane.b32.xlu0 %v118, 4
  %v270 = vpop.permute.xlu0 %269
  %271 = vrot.lane.b32.xlu0 %v119, 4
  %v272 = vpop.permute.xlu0 %271
  %273 = vrot.lane.b32.xlu0 %v120, 4
  %v274 = vpop.permute.xlu0 %273
  %275 = vrot.lane.b32.xlu0 %v121, 4
  %v276 = vpop.permute.xlu0 %275
  %277 = vrot.lane.b32.xlu0 %v122, 4
  %v278 = vpop.permute.xlu0 %277
  %279 = vrot.lane.b32.xlu0 %v123, 4
  %v280 = vpop.permute.xlu0 %279
  %281 = vrot.lane.b32.xlu0 %v124, 4
  %v282 = vpop.permute.xlu0 %281
  %283 = vrot.lane.b32.xlu0 %v125, 4
  %v284 = vpop.permute.xlu0 %283
  %285 = vrot.lane.b32.xlu0 %v126, 4
  %v286 = vpop.permute.xlu0 %285
  %287 = vrot.lane.b32.xlu0 %v127, 4
  %v288 = vpop.permute.xlu0 %287
  %289 = vrot.lane.b32.xlu0 %v128, 4
  %v290 = vpop.permute.xlu0 %289
  %291 = vrot.lane.b32.xlu0 %v129, 4
  %v292 = vpop.permute.xlu0 %291
  %293 = vrot.lane.b32.xlu0 %v130, 4
  %v294 = vpop.permute.xlu0 %293
  %295 = vrot.lane.b32.xlu0 %v131, 4
  %v296 = vpop.permute.xlu0 %295
  %297 = vrot.lane.b32.xlu0 %v132, 4
  %v298 = vpop.permute.xlu0 %297
  %299 = vrot.lane.b32.xlu0 %v133, 4
  %v300 = vpop.permute.xlu0 %299
  %301 = vrot.lane.b32.xlu0 %v134, 4
  %v302 = vpop.permute.xlu0 %301
  %303 = vrot.lane.b32.xlu0 %v135, 4
  %v304 = vpop.permute.xlu0 %303
  %305 = vrot.lane.b32.xlu0 %v136, 4
  %v306 = vpop.permute.xlu0 %305
  %307 = vrot.lane.b32.xlu0 %v137, 4
  %v308 = vpop.permute.xlu0 %307
  %309 = vrot.lane.b32.xlu0 %v138, 4
  %v310 = vpop.permute.xlu0 %309
  %311 = vrot.lane.b32.xlu0 %v139, 4
  %v312 = vpop.permute.xlu0 %311
  %313 = vrot.lane.b32.xlu0 %v140, 4
  %v314 = vpop.permute.xlu0 %313
  %315 = vrot.lane.b32.xlu0 %v141, 4
  %v316 = vpop.permute.xlu0 %315
  %317 = vrot.lane.b32.xlu0 %v142, 4
  %v318 = vpop.permute.xlu0 %317
  %319 = vrot.lane.b32.xlu0 %v143, 4
  %v320 = vpop.permute.xlu0 %319
  %321 = vrot.lane.b32.xlu0 %v144, 4
  %v322 = vpop.permute.xlu0 %321
  %323 = vrot.lane.b32.xlu0 %v145, 4
  %v324 = vpop.permute.xlu0 %323
  %325 = vrot.lane.b32.xlu0 %v146, 4
  %v326 = vpop.permute.xlu0 %325
  %327 = vrot.lane.b32.xlu0 %v147, 4
  %v328 = vpop.permute.xlu0 %327
  %329 = vrot.lane.b32.xlu0 %v148, 4
  %v330 = vpop.permute.xlu0 %329
  %331 = vrot.lane.b32.xlu0 %v149, 4
  %v332 = vpop.permute.xlu0 %331
  %333 = vrot.lane.b32.xlu0 %v150, 4
  %v334 = vpop.permute.xlu0 %333
  %335 = vrot.lane.b32.xlu0 %v151, 4
  %v336 = vpop.permute.xlu0 %335
  %337 = vrot.lane.b32.xlu0 %v152, 4
  %v338 = vpop.permute.xlu0 %337
  %339 = vrot.lane.b32.xlu0 %v153, 4
  %v340 = vpop.permute.xlu0 %339
  %341 = vrot.lane.b32.xlu0 %v154, 4
  %v342 = vpop.permute.xlu0 %341
  %343 = vrot.lane.b32.xlu0 %v155, 4
  %v344 = vpop.permute.xlu0 %343
  %345 = vrot.lane.b32.xlu0 %v156, 4
  %v346 = vpop.permute.xlu0 %345
  %347 = vrot.lane.b32.xlu0 %v157, 4
  %v348 = vpop.permute.xlu0 %347
  %349 = vrot.lane.b32.xlu0 %v158, 4
  %v350 = vpop.permute.xlu0 %349
  %vm415 = vcmask 31744
  %v416 = vsel %vm415, %v29, %v224
  %v417 = vsel %vm415, %v30, %v226
  %v418 = vsel %vm415, %v31, %v228
  %v419 = vsel %vm415, %v32, %v230
  %v420 = vsel %vm415, %v33, %v232
  %v421 = vsel %vm415, %v34, %v234
  %v422 = vsel %vm415, %v35, %v236
  %v423 = vsel %vm415, %v36, %v238
  %v424 = vsel %vm415, %v37, %v240
  %v425 = vsel %vm415, %v38, %v242
  %v426 = vsel %vm415, %v39, %v244
  %v427 = vsel %vm415, %v40, %v246
  %v428 = vsel %vm415, %v41, %v248
  %v429 = vsel %vm415, %v42, %v250
  %v430 = vsel %vm415, %v43, %v252
  %v431 = vsel %vm415, %v44, %v254
  %v432 = vsel %vm415, %v45, %v256
  %v433 = vsel %vm415, %v46, %v258
  %v434 = vsel %vm415, %v47, %v260
  %v435 = vsel %vm415, %v48, %v262
  %v436 = vsel %vm415, %v49, %v264
  %v437 = vsel %vm415, %v50, %v266
  %v438 = vsel %vm415, %v51, %v268
  %v439 = vsel %vm415, %v52, %v270
  %v440 = vsel %vm415, %v53, %v272
  %v441 = vsel %vm415, %v54, %v274
  %v442 = vsel %vm415, %v55, %v276
  %v443 = vsel %vm415, %v56, %v278
  %v444 = vsel %vm415, %v57, %v280
  %v445 = vsel %vm415, %v58, %v282
  %v446 = vsel %vm415, %v59, %v284
  %v447 = vsel %vm415, %v60, %v286
  %v448 = vsel %vm415, %v61, %v288
  %v449 = vsel %vm415, %v62, %v290
  %v450 = vsel %vm415, %v63, %v292
  %v451 = vsel %vm415, %v64, %v294
  %v452 = vsel %vm415, %v65, %v296
  %v453 = vsel %vm415, %v66, %v298
  %v454 = vsel %vm415, %v67, %v300
  %v455 = vsel %vm415, %v68, %v302
  %v456 = vsel %vm415, %v69, %v304
  %v457 = vsel %vm415, %v70, %v306
  %v458 = vsel %vm415, %v71, %v308
  %v459 = vsel %vm415, %v72, %v310
  %v460 = vsel %vm415, %v73, %v312
  %v461 = vsel %vm415, %v74, %v314
  %v462 = vsel %vm415, %v75, %v316
  %v463 = vsel %vm415, %v76, %v318
  %v464 = vsel %vm415, %v77, %v320
  %v465 = vsel %vm415, %v78, %v322
  %v466 = vsel %vm415, %v79, %v324
  %v467 = vsel %vm415, %v80, %v326
  %v468 = vsel %vm415, %v81, %v328
  %v469 = vsel %vm415, %v82, %v330
  %v470 = vsel %vm415, %v83, %v332
  %v471 = vsel %vm415, %v84, %v334
  %v472 = vsel %vm415, %v85, %v336
  %v473 = vsel %vm415, %v86, %v338
  %v474 = vsel %vm415, %v87, %v340
  %v475 = vsel %vm415, %v88, %v342
  %v476 = vsel %vm415, %v89, %v344
  %v477 = vsel %vm415, %v90, %v346
  %v478 = vsel %vm415, %v91, %v348
  %v479 = vsel %vm415, %v92, %v350
  %480 = vmatprep.subr.mxu0 0.0
  %481 = vmatpush1.msra.mxu0 %v416
  %482 = vmatprep.subr.mxu0 0.0
  %483 = vmatpush1.msra.mxu0 %v417
  %484 = vmatprep.subr.mxu0 0.0
  %485 = vmatpush1.msra.mxu0 %v418
  %486 = vmatprep.subr.mxu0 0.0
  %487 = vmatpush1.msra.mxu0 %v419
  %488 = vmatprep.subr.mxu0 0.0
  %489 = vmatpush1.msra.mxu0 %v420
  %490 = vmatprep.subr.mxu0 0.0
  %491 = vmatpush1.msra.mxu0 %v421
  %492 = vmatprep.subr.mxu0 0.0
  %493 = vmatpush1.msra.mxu0 %v422
  %494 = vmatprep.subr.mxu0 0.0
  %495 = vmatpush1.msra.mxu0 %v423
  %496 = vmatprep.subr.mxu0 0.0
  %497 = vmatpush1.msra.mxu0 %v424
  %498 = vmatprep.subr.mxu0 0.0
  %499 = vmatpush1.msra.mxu0 %v425
  %500 = vmatprep.subr.mxu0 0.0
  %501 = vmatpush1.msra.mxu0 %v426
  %502 = vmatprep.subr.mxu0 0.0
  %503 = vmatpush1.msra.mxu0 %v427
  %504 = vmatprep.subr.mxu0 0.0
  %505 = vmatpush1.msra.mxu0 %v428
  %506 = vmatprep.subr.mxu0 0.0
  %507 = vmatpush1.msra.mxu0 %v429
  %508 = vmatprep.subr.mxu0 0.0
  %509 = vmatpush1.msra.mxu0 %v430
  %510 = vmatprep.subr.mxu0 0.0
  %511 = vmatpush1.msra.mxu0 %v431
  %512 = vmatprep.subr.mxu0 0.0
  %513 = vmatpush1.msra.mxu0 %v432
  %514 = vmatprep.subr.mxu0 0.0
  %515 = vmatpush1.msra.mxu0 %v433
  %516 = vmatprep.subr.mxu0 0.0
  %517 = vmatpush1.msra.mxu0 %v434
  %518 = vmatprep.subr.mxu0 0.0
  %519 = vmatpush1.msra.mxu0 %v435
  %520 = vmatprep.subr.mxu0 0.0
  %521 = vmatpush1.msra.mxu0 %v436
  %522 = vmatprep.subr.mxu0 0.0
  %523 = vmatpush1.msra.mxu0 %v437
  %524 = vmatprep.subr.mxu0 0.0
  %525 = vmatpush1.msra.mxu0 %v438
  %526 = vmatprep.subr.mxu0 0.0
  %527 = vmatpush1.msra.mxu0 %v439
  %528 = vmatprep.subr.mxu0 0.0
  %529 = vmatpush1.msra.mxu0 %v440
  %530 = vmatprep.subr.mxu0 0.0
  %531 = vmatpush1.msra.mxu0 %v441
  %532 = vmatprep.subr.mxu0 0.0
  %533 = vmatpush1.msra.mxu0 %v442
  %534 = vmatprep.subr.mxu0 0.0
  %535 = vmatpush1.msra.mxu0 %v443
  %536 = vmatprep.subr.mxu0 0.0
  %537 = vmatpush1.msra.mxu0 %v444
  %538 = vmatprep.subr.mxu0 0.0
  %539 = vmatpush1.msra.mxu0 %v445
  %540 = vmatprep.subr.mxu0 0.0
  %541 = vmatpush1.msra.mxu0 %v446
  %542 = vmatprep.subr.mxu0 0.0
  %543 = vmatpush1.msra.mxu0 %v447
  %544 = vmatprep.mubr.f32.mxu0 1.0
  %545 = vmatmul.mubr.f32.gmra.mrb[0].mxu0 1.0
  %v546 = vpop.f32.mrb[0].mxu0
  %v547 = vadd.f32 0.0, %v546
  %v548 = vpop.f32.mrb[0].mxu0
  %549 = vdwg.mxu0
  %550 = vmatprep.subr.mxu0 0.0
  %551 = vmatpush1.msra.mxu0 %v448
  %552 = vmatprep.subr.mxu0 0.0
  %553 = vmatpush1.msra.mxu0 %v449
  %554 = vmatprep.subr.mxu0 0.0
  %555 = vmatpush1.msra.mxu0 %v450
  %556 = vmatprep.subr.mxu0 0.0
  %557 = vmatpush1.msra.mxu0 %v451
  %558 = vmatprep.subr.mxu0 0.0
  %559 = vmatpush1.msra.mxu0 %v452
  %560 = vmatprep.subr.mxu0 0.0
  %561 = vmatpush1.msra.mxu0 %v453
  %562 = vmatprep.subr.mxu0 0.0
  %563 = vmatpush1.msra.mxu0 %v454
  %564 = vmatprep.subr.mxu0 0.0
  %565 = vmatpush1.msra.mxu0 %v455
  %566 = vmatprep.subr.mxu0 0.0
  %567 = vmatpush1.msra.mxu0 %v456
  %568 = vmatprep.subr.mxu0 0.0
  %569 = vmatpush1.msra.mxu0 %v457
  %570 = vmatprep.subr.mxu0 0.0
  %571 = vmatpush1.msra.mxu0 %v458
  %572 = vmatprep.subr.mxu0 0.0
  %573 = vmatpush1.msra.mxu0 %v459
  %574 = vmatprep.subr.mxu0 0.0
  %575 = vmatpush1.msra.mxu0 %v460
  %576 = vmatprep.subr.mxu0 0.0
  %577 = vmatpush1.msra.mxu0 %v461
  %578 = vmatprep.subr.mxu0 0.0
  %579 = vmatpush1.msra.mxu0 %v462
  %580 = vmatprep.subr.mxu0 0.0
  %581 = vmatpush1.msra.mxu0 %v463
  %582 = vmatprep.subr.mxu0 0.0
  %583 = vmatpush1.msra.mxu0 %v464
  %584 = vmatprep.subr.mxu0 0.0
  %585 = vmatpush1.msra.mxu0 %v465
  %586 = vmatprep.subr.mxu0 0.0
  %587 = vmatpush1.msra.mxu0 %v466
  %588 = vmatprep.subr.mxu0 0.0
  %589 = vmatpush1.msra.mxu0 %v467
  %590 = vmatprep.subr.mxu0 0.0
  %591 = vmatpush1.msra.mxu0 %v468
  %592 = vmatprep.subr.mxu0 0.0
  %593 = vmatpush1.msra.mxu0 %v469
  %594 = vmatprep.subr.mxu0 0.0
  %595 = vmatpush1.msra.mxu0 %v470
  %596 = vmatprep.subr.mxu0 0.0
  %597 = vmatpush1.msra.mxu0 %v471
  %598 = vmatprep.subr.mxu0 0.0
  %599 = vmatpush1.msra.mxu0 %v472
  %600 = vmatprep.subr.mxu0 0.0
  %601 = vmatpush1.msra.mxu0 %v473
  %602 = vmatprep.subr.mxu0 0.0
  %603 = vmatpush1.msra.mxu0 %v474
  %604 = vmatprep.subr.mxu0 0.0
  %605 = vmatpush1.msra.mxu0 %v475
  %606 = vmatprep.subr.mxu0 0.0
  %607 = vmatpush1.msra.mxu0 %v476
  %608 = vmatprep.subr.mxu0 0.0
  %609 = vmatpush1.msra.mxu0 %v477
  %610 = vmatprep.subr.mxu0 0.0
  %611 = vmatpush1.msra.mxu0 %v478
  %612 = vmatprep.subr.mxu0 0.0
  %613 = vmatpush1.msra.mxu0 %v479
  %614 = vmatprep.mubr.f32.mxu0 1.0
  %615 = vmatmul.mubr.f32.gmra.mrb[0].mxu0 1.0
  %v616 = vpop.f32.mrb[0].mxu0
  %v617 = vadd.f32 %v547, %v616
  %v618 = vpop.f32.mrb[0].mxu0
  %619 = vdwg.mxu0
  %v620 = vmul.f32 %v617, 0.001953125
  %v621 = vmul.f32 %v620, %v620
  %623 = vrot.lane.b32.xlu0 %v621, 4
  %v624 = vpop.permute.xlu0 %623
  %v626 = vsub.f32 %v620, %v624
  %v627 = vmax.f32 %v626, 0.0
  %v628 = vlaneseq
  %v629 = vshrl.u32 %v628, 7
  %v630 = vsub.s32 0, %v629
  %v631 = vrot.slane %v620, %v630
  %v632 = vsub.f32 %v29, %v631
  %v633 = vsub.f32 %v30, %v631
  %v634 = vsub.f32 %v31, %v631
  %v635 = vsub.f32 %v32, %v631
  %v636 = vsub.f32 %v33, %v631
  %v637 = vsub.f32 %v34, %v631
  %v638 = vsub.f32 %v35, %v631
  %v639 = vsub.f32 %v36, %v631
  %v640 = vsub.f32 %v37, %v631
  %v641 = vsub.f32 %v38, %v631
  %v642 = vsub.f32 %v39, %v631
  %v643 = vsub.f32 %v40, %v631
  %v644 = vsub.f32 %v41, %v631
  %v645 = vsub.f32 %v42, %v631
  %v646 = vsub.f32 %v43, %v631
  %v647 = vsub.f32 %v44, %v631
  %v648 = vsub.f32 %v45, %v631
  %v649 = vsub.f32 %v46, %v631
  %v650 = vsub.f32 %v47, %v631
  %v651 = vsub.f32 %v48, %v631
  %v652 = vsub.f32 %v49, %v631
  %v653 = vsub.f32 %v50, %v631
  %v654 = vsub.f32 %v51, %v631
  %v655 = vsub.f32 %v52, %v631
  %v656 = vsub.f32 %v53, %v631
  %v657 = vsub.f32 %v54, %v631
  %v658 = vsub.f32 %v55, %v631
  %v659 = vsub.f32 %v56, %v631
  %v660 = vsub.f32 %v57, %v631
  %v661 = vsub.f32 %v58, %v631
  %v662 = vsub.f32 %v59, %v631
  %v663 = vsub.f32 %v60, %v631
  %v664 = vsub.f32 %v61, %v631
  %v665 = vsub.f32 %v62, %v631
  %v666 = vsub.f32 %v63, %v631
  %v667 = vsub.f32 %v64, %v631
  %v668 = vsub.f32 %v65, %v631
  %v669 = vsub.f32 %v66, %v631
  %v670 = vsub.f32 %v67, %v631
  %v671 = vsub.f32 %v68, %v631
  %v672 = vsub.f32 %v69, %v631
  %v673 = vsub.f32 %v70, %v631
  %v674 = vsub.f32 %v71, %v631
  %v675 = vsub.f32 %v72, %v631
  %v676 = vsub.f32 %v73, %v631
  %v677 = vsub.f32 %v74, %v631
  %v678 = vsub.f32 %v75, %v631
  %v679 = vsub.f32 %v76, %v631
  %v680 = vsub.f32 %v77, %v631
  %v681 = vsub.f32 %v78, %v631
  %v682 = vsub.f32 %v79, %v631
  %v683 = vsub.f32 %v80, %v631
  %v684 = vsub.f32 %v81, %v631
  %v685 = vsub.f32 %v82, %v631
  %v686 = vsub.f32 %v83, %v631
  %v687 = vsub.f32 %v84, %v631
  %v688 = vsub.f32 %v85, %v631
  %v689 = vsub.f32 %v86, %v631
  %v690 = vsub.f32 %v87, %v631
  %v691 = vsub.f32 %v88, %v631
  %v692 = vsub.f32 %v89, %v631
  %v693 = vsub.f32 %v90, %v631
  %v694 = vsub.f32 %v91, %v631
  %v695 = vsub.f32 %v92, %v631
  %v696 = vadd.f32 %v627, 1e-05
  %v697 = vrsqrt.pop %v696
  %v698 = vlaneseq
  %v699 = vshrl.u32 %v698, 7
  %v700 = vsub.s32 0, %v699
  %v701 = vrot.slane %v697, %v700
  %703 = vrot.lane.b32.xlu0 %v701, 124
  %v704 = vpop.permute.xlu0 %703
  %v706 = vmul.f32 %v632, %v704
  %v707 = vmul.f32 %v633, %v704
  %v708 = vmul.f32 %v634, %v704
  %v709 = vmul.f32 %v635, %v704
  %v710 = vmul.f32 %v636, %v704
  %v711 = vmul.f32 %v637, %v704
  %v712 = vmul.f32 %v638, %v704
  %v713 = vmul.f32 %v639, %v704
  %v714 = vmul.f32 %v640, %v704
  %v715 = vmul.f32 %v641, %v704
  %v716 = vmul.f32 %v642, %v704
  %v717 = vmul.f32 %v643, %v704
  %v718 = vmul.f32 %v644, %v704
  %v719 = vmul.f32 %v645, %v704
  %v720 = vmul.f32 %v646, %v704
  %v721 = vmul.f32 %v647, %v704
  %v722 = vmul.f32 %v648, %v704
  %v723 = vmul.f32 %v649, %v704
  %v724 = vmul.f32 %v650, %v704
  %v725 = vmul.f32 %v651, %v704
  %v726 = vmul.f32 %v652, %v704
  %v727 = vmul.f32 %v653, %v704
  %v728 = vmul.f32 %v654, %v704
  %v729 = vmul.f32 %v655, %v704
  %v730 = vmul.f32 %v656, %v704
  %v731 = vmul.f32 %v657, %v704
  %v732 = vmul.f32 %v658, %v704
  %v733 = vmul.f32 %v659, %v704
  %v734 = vmul.f32 %v660, %v704
  %v735 = vmul.f32 %v661, %v704
  %v736 = vmul.f32 %v662, %v704
  %v737 = vmul.f32 %v663, %v704
  %v738 = vmul.f32 %v664, %v704
  %v739 = vmul.f32 %v665, %v704
  %v740 = vmul.f32 %v666, %v704
  %v741 = vmul.f32 %v667, %v704
  %v742 = vmul.f32 %v668, %v704
  %v743 = vmul.f32 %v669, %v704
  %v744 = vmul.f32 %v670, %v704
  %v745 = vmul.f32 %v671, %v704
  %v746 = vmul.f32 %v672, %v704
  %v747 = vmul.f32 %v673, %v704
  %v748 = vmul.f32 %v674, %v704
  %v749 = vmul.f32 %v675, %v704
  %v750 = vmul.f32 %v676, %v704
  %v751 = vmul.f32 %v677, %v704
  %v752 = vmul.f32 %v678, %v704
  %v753 = vmul.f32 %v679, %v704
  %v754 = vmul.f32 %v680, %v704
  %v755 = vmul.f32 %v681, %v704
  %v756 = vmul.f32 %v682, %v704
  %v757 = vmul.f32 %v683, %v704
  %v758 = vmul.f32 %v684, %v704
  %v759 = vmul.f32 %v685, %v704
  %v760 = vmul.f32 %v686, %v704
  %v761 = vmul.f32 %v687, %v704
  %v762 = vmul.f32 %v688, %v704
  %v763 = vmul.f32 %v689, %v704
  %v764 = vmul.f32 %v690, %v704
  %v765 = vmul.f32 %v691, %v704
  %v766 = vmul.f32 %v692, %v704
  %v767 = vmul.f32 %v693, %v704
  %v768 = vmul.f32 %v694, %v704
  %v769 = vmul.f32 %v695, %v704
  %v771 = vlaneseq
  %v772 = vshrl.u32 %v771, 7
  %v773 = vsub.s32 0, %v772
  %v774 = vrot.slane %v93, %v773
  %v776 = vmul.f32 %v706, %v774
  %v777 = vmul.f32 %v707, %v774
  %v778 = vmul.f32 %v708, %v774
  %v779 = vmul.f32 %v709, %v774
  %v780 = vmul.f32 %v710, %v774
  %v781 = vmul.f32 %v711, %v774
  %v782 = vmul.f32 %v712, %v774
  %v783 = vmul.f32 %v713, %v774
  %v784 = vmul.f32 %v714, %v774
  %v785 = vmul.f32 %v715, %v774
  %v786 = vmul.f32 %v716, %v774
  %v787 = vmul.f32 %v717, %v774
  %v788 = vmul.f32 %v718, %v774
  %v789 = vmul.f32 %v719, %v774
  %v790 = vmul.f32 %v720, %v774
  %v791 = vmul.f32 %v721, %v774
  %v792 = vmul.f32 %v722, %v774
  %v793 = vmul.f32 %v723, %v774
  %v794 = vmul.f32 %v724, %v774
  %v795 = vmul.f32 %v725, %v774
  %v796 = vmul.f32 %v726, %v774
  %v797 = vmul.f32 %v727, %v774
  %v798 = vmul.f32 %v728, %v774
  %v799 = vmul.f32 %v729, %v774
  %v800 = vmul.f32 %v730, %v774
  %v801 = vmul.f32 %v731, %v774
  %v802 = vmul.f32 %v732, %v774
  %v803 = vmul.f32 %v733, %v774
  %v804 = vmul.f32 %v734, %v774
  %v805 = vmul.f32 %v735, %v774
  %v806 = vmul.f32 %v736, %v774
  %v807 = vmul.f32 %v737, %v774
  %v808 = vmul.f32 %v738, %v774
  %v809 = vmul.f32 %v739, %v774
  %v810 = vmul.f32 %v740, %v774
  %v811 = vmul.f32 %v741, %v774
  %v812 = vmul.f32 %v742, %v774
  %v813 = vmul.f32 %v743, %v774
  %v814 = vmul.f32 %v744, %v774
  %v815 = vmul.f32 %v745, %v774
  %v816 = vmul.f32 %v746, %v774
  %v817 = vmul.f32 %v747, %v774
  %v818 = vmul.f32 %v748, %v774
  %v819 = vmul.f32 %v749, %v774
  %v820 = vmul.f32 %v750, %v774
  %v821 = vmul.f32 %v751, %v774
  %v822 = vmul.f32 %v752, %v774
  %v823 = vmul.f32 %v753, %v774
  %v824 = vmul.f32 %v754, %v774
  %v825 = vmul.f32 %v755, %v774
  %v826 = vmul.f32 %v756, %v774
  %v827 = vmul.f32 %v757, %v774
  %v828 = vmul.f32 %v758, %v774
  %v829 = vmul.f32 %v759, %v774
  %v830 = vmul.f32 %v760, %v774
  %v831 = vmul.f32 %v761, %v774
  %v832 = vmul.f32 %v762, %v774
  %v833 = vmul.f32 %v763, %v774
  %v834 = vmul.f32 %v764, %v774
  %v835 = vmul.f32 %v765, %v774
  %v836 = vmul.f32 %v766, %v774
  %v837 = vmul.f32 %v767, %v774
  %v838 = vmul.f32 %v768, %v774
  %v839 = vmul.f32 %v769, %v774
  %v841 = vlaneseq
  %v842 = vshrl.u32 %v841, 7
  %v843 = vsub.s32 0, %v842
  %v844 = vrot.slane %v94, %v843
  %v846 = vadd.f32 %v776, %v844
  %v847 = vadd.f32 %v777, %v844
  %v848 = vadd.f32 %v778, %v844
  %v849 = vadd.f32 %v779, %v844
  %v850 = vadd.f32 %v780, %v844
  %v851 = vadd.f32 %v781, %v844
  %v852 = vadd.f32 %v782, %v844
  %v853 = vadd.f32 %v783, %v844
  %v854 = vadd.f32 %v784, %v844
  %v855 = vadd.f32 %v785, %v844
  %v856 = vadd.f32 %v786, %v844
  %v857 = vadd.f32 %v787, %v844
  %v858 = vadd.f32 %v788, %v844
  %v859 = vadd.f32 %v789, %v844
  %v860 = vadd.f32 %v790, %v844
  %v861 = vadd.f32 %v791, %v844
  %v862 = vadd.f32 %v792, %v844
  %v863 = vadd.f32 %v793, %v844
  %v864 = vadd.f32 %v794, %v844
  %v865 = vadd.f32 %v795, %v844
  %v866 = vadd.f32 %v796, %v844
  %v867 = vadd.f32 %v797, %v844
  %v868 = vadd.f32 %v798, %v844
  %v869 = vadd.f32 %v799, %v844
  %v870 = vadd.f32 %v800, %v844
  %v871 = vadd.f32 %v801, %v844
  %v872 = vadd.f32 %v802, %v844
  %v873 = vadd.f32 %v803, %v844
  %v874 = vadd.f32 %v804, %v844
  %v875 = vadd.f32 %v805, %v844
  %v876 = vadd.f32 %v806, %v844
  %v877 = vadd.f32 %v807, %v844
  %v878 = vadd.f32 %v808, %v844
  %v879 = vadd.f32 %v809, %v844
  %v880 = vadd.f32 %v810, %v844
  %v881 = vadd.f32 %v811, %v844
  %v882 = vadd.f32 %v812, %v844
  %v883 = vadd.f32 %v813, %v844
  %v884 = vadd.f32 %v814, %v844
  %v885 = vadd.f32 %v815, %v844
  %v886 = vadd.f32 %v816, %v844
  %v887 = vadd.f32 %v817, %v844
  %v888 = vadd.f32 %v818, %v844
  %v889 = vadd.f32 %v819, %v844
  %v890 = vadd.f32 %v820, %v844
  %v891 = vadd.f32 %v821, %v844
  %v892 = vadd.f32 %v822, %v844
  %v893 = vadd.f32 %v823, %v844
  %v894 = vadd.f32 %v824, %v844
  %v895 = vadd.f32 %v825, %v844
  %v896 = vadd.f32 %v826, %v844
  %v897 = vadd.f32 %v827, %v844
  %v898 = vadd.f32 %v828, %v844
  %v899 = vadd.f32 %v829, %v844
  %v900 = vadd.f32 %v830, %v844
  %v901 = vadd.f32 %v831, %v844
  %v902 = vadd.f32 %v832, %v844
  %v903 = vadd.f32 %v833, %v844
  %v904 = vadd.f32 %v834, %v844
  %v905 = vadd.f32 %v835, %v844
  %v906 = vadd.f32 %v836, %v844
  %v907 = vadd.f32 %v837, %v844
  %v908 = vadd.f32 %v838, %v844
  %v909 = vadd.f32 %v839, %v844
  %v910 = vmax.f32 %v846, 0.0
  %v911 = vmax.f32 %v847, 0.0
  %v912 = vmax.f32 %v848, 0.0
  %v913 = vmax.f32 %v849, 0.0
  %v914 = vmax.f32 %v850, 0.0
  %v915 = vmax.f32 %v851, 0.0
  %v916 = vmax.f32 %v852, 0.0
  %v917 = vmax.f32 %v853, 0.0
  %v918 = vmax.f32 %v854, 0.0
  %v919 = vmax.f32 %v855, 0.0
  %v920 = vmax.f32 %v856, 0.0
  %v921 = vmax.f32 %v857, 0.0
  %v922 = vmax.f32 %v858, 0.0
  %v923 = vmax.f32 %v859, 0.0
  %v924 = vmax.f32 %v860, 0.0
  %v925 = vmax.f32 %v861, 0.0
  %v926 = vmax.f32 %v862, 0.0
  %v927 = vmax.f32 %v863, 0.0
  %v928 = vmax.f32 %v864, 0.0
  %v929 = vmax.f32 %v865, 0.0
  %v930 = vmax.f32 %v866, 0.0
  %v931 = vmax.f32 %v867, 0.0
  %v932 = vmax.f32 %v868, 0.0
  %v933 = vmax.f32 %v869, 0.0
  %v934 = vmax.f32 %v870, 0.0
  %v935 = vmax.f32 %v871, 0.0
  %v936 = vmax.f32 %v872, 0.0
  %v937 = vmax.f32 %v873, 0.0
  %v938 = vmax.f32 %v874, 0.0
  %v939 = vmax.f32 %v875, 0.0
  %v940 = vmax.f32 %v876, 0.0
  %v941 = vmax.f32 %v877, 0.0
  %v942 = vmax.f32 %v878, 0.0
  %v943 = vmax.f32 %v879, 0.0
  %v944 = vmax.f32 %v880, 0.0
  %v945 = vmax.f32 %v881, 0.0
  %v946 = vmax.f32 %v882, 0.0
  %v947 = vmax.f32 %v883, 0.0
  %v948 = vmax.f32 %v884, 0.0
  %v949 = vmax.f32 %v885, 0.0
  %v950 = vmax.f32 %v886, 0.0
  %v951 = vmax.f32 %v887, 0.0
  %v952 = vmax.f32 %v888, 0.0
  %v953 = vmax.f32 %v889, 0.0
  %v954 = vmax.f32 %v890, 0.0
  %v955 = vmax.f32 %v891, 0.0
  %v956 = vmax.f32 %v892, 0.0
  %v957 = vmax.f32 %v893, 0.0
  %v958 = vmax.f32 %v894, 0.0
  %v959 = vmax.f32 %v895, 0.0
  %v960 = vmax.f32 %v896, 0.0
  %v961 = vmax.f32 %v897, 0.0
  %v962 = vmax.f32 %v898, 0.0
  %v963 = vmax.f32 %v899, 0.0
  %v964 = vmax.f32 %v900, 0.0
  %v965 = vmax.f32 %v901, 0.0
  %v966 = vmax.f32 %v902, 0.0
  %v967 = vmax.f32 %v903, 0.0
  %v968 = vmax.f32 %v904, 0.0
  %v969 = vmax.f32 %v905, 0.0
  %v970 = vmax.f32 %v906, 0.0
  %v971 = vmax.f32 %v907, 0.0
  %v972 = vmax.f32 %v908, 0.0
  %v973 = vmax.f32 %v909, 0.0
  %s974 = scalar_lea.vmem [#allocation2], 992
  %975 = vst.msk [vmem:[%s974] sm:$0xff] %vm415, 0.0
  %vm976 = vcmask 24576
  %977 = vst.msk [vmem:[%s974 + $0x8] sm:$0x1] %vm976, 0.0
  %978 = vst.msk [vmem:[%s974 + $0x90] sm:$0xff] %vm415, 0.0
  %979 = vst.msk [vmem:[%s974 + $0x98] sm:$0x1] %vm976, 0.0
  %s980 = scalar_lea.vmem [#allocation2], 864
  %981 = vst.msk [vmem:[%s980 + $0x8] sm:$0x1] %vm976, 0.0
  %982 = vst.msk [vmem:[%s980 + $0x18] sm:$0x1] %vm976, 0.0
  %983 = vst.msk [vmem:[%s980 + $0x28] sm:$0x1] %vm976, 0.0
  %984 = vst.msk [vmem:[%s980 + $0x38] sm:$0x1] %vm976, 0.0
  %985 = vst.msk [vmem:[%s980 + $0x48] sm:$0x1] %vm976, 0.0
  %986 = vst.msk [vmem:[%s980 + $0x58] sm:$0x1] %vm976, 0.0
  %987 = vst.msk [vmem:[%s980 + $0x68] sm:$0x1] %vm976, 0.0
  %988 = vst.msk [vmem:[%s980 + $0x78] sm:$0x1] %vm976, 0.0
  %989 = vst.msk [vmem:[%s980 + $0x98] sm:$0x1] %vm976, 0.0
  %990 = vst.msk [vmem:[%s980 + $0xa8] sm:$0x1] %vm976, 0.0
  %991 = vst.msk [vmem:[%s980 + $0xb8] sm:$0x1] %vm976, 0.0
  %992 = vst.msk [vmem:[%s980 + $0xc8] sm:$0x1] %vm976, 0.0
  %993 = vst.msk [vmem:[%s980 + $0xd8] sm:$0x1] %vm976, 0.0
  %994 = vst.msk [vmem:[%s980 + $0xe8] sm:$0x1] %vm976, 0.0
  %995 = vst.msk [vmem:[%s980 + $0xf8] sm:$0x1] %vm976, 0.0
  %996 = vst.msk [vmem:[%s980 + $0x108] sm:$0x1] %vm976, 0.0
  %997 = vst.msk [vmem:[%s980] sm:$0xff] %vm415, %v910
  %998 = vst.msk [vmem:[%s980 + $0x10] sm:$0xff] %vm415, %v911
  %999 = vst.msk [vmem:[%s980 + $0x20] sm:$0xff] %vm415, %v912
  %1000 = vst.msk [vmem:[%s980 + $0x30] sm:$0xff] %vm415, %v913
  %1001 = vst.msk [vmem:[%s980 + $0x40] sm:$0xff] %vm415, %v914
  %1002 = vst.msk [vmem:[%s980 + $0x50] sm:$0xff] %vm415, %v915
  %1003 = vst.msk [vmem:[%s980 + $0x60] sm:$0xff] %vm415, %v916
  %1004 = vst.msk [vmem:[%s980 + $0x70] sm:$0xff] %vm415, %v917
  %1005 = vst.msk [vmem:[%s980 + $0x90] sm:$0xff] %vm415, %v918
  %1006 = vst.msk [vmem:[%s980 + $0xa0] sm:$0xff] %vm415, %v919
  %1007 = vst.msk [vmem:[%s980 + $0xb0] sm:$0xff] %vm415, %v920
  %1008 = vst.msk [vmem:[%s980 + $0xc0] sm:$0xff] %vm415, %v921
  %1009 = vst.msk [vmem:[%s980 + $0xd0] sm:$0xff] %vm415, %v922
  %1010 = vst.msk [vmem:[%s980 + $0xe0] sm:$0xff] %vm415, %v923
  %1011 = vst.msk [vmem:[%s980 + $0xf0] sm:$0xff] %vm415, %v924
  %1012 = vst.msk [vmem:[%s980 + $0x100] sm:$0xff] %vm415, %v925
  %s1013 = scalar_lea.vmem [#allocation2], 704
  %1014 = vst.msk [vmem:[%s1013] sm:$0xff] %vm415, 0.0
  %1015 = vst.msk [vmem:[%s1013 + $0x8] sm:$0x1] %vm976, 0.0
  %1016 = vst.msk [vmem:[%s1013 + $0x90] sm:$0xff] %vm415, 0.0
  %1017 = vst.msk [vmem:[%s1013 + $0x98] sm:$0x1] %vm976, 0.0
  %s1018 = scalar_lea.vmem [#allocation2], 576
  %1019 = vst.msk [vmem:[%s1018] sm:$0x1] %vm976, 0.0
  %1020 = vst.msk [vmem:[%s1018 + $0x10] sm:$0x1] %vm976, 0.0
  %1021 = vst.msk [vmem:[%s1018 + $0x20] sm:$0x1] %vm976, 0.0
  %1022 = vst.msk [vmem:[%s1018 + $0x30] sm:$0x1] %vm976, 0.0
  %1023 = vst.msk [vmem:[%s1018 + $0x40] sm:$0x1] %vm976, 0.0
  %1024 = vst.msk [vmem:[%s1018 + $0x50] sm:$0x1] %vm976, 0.0
  %1025 = vst.msk [vmem:[%s1018 + $0x60] sm:$0x1] %vm976, 0.0
  %1026 = vst.msk [vmem:[%s1018 + $0x70] sm:$0x1] %vm976, 0.0
  %1027 = vst.msk [vmem:[%s1018 + $0x90] sm:$0x1] %vm976, 0.0
  %1028 = vst.msk [vmem:[%s1018 + $0xa0] sm:$0x1] %vm976, 0.0
  %1029 = vst.msk [vmem:[%s1018 + $0xb0] sm:$0x1] %vm976, 0.0
  %1030 = vst.msk [vmem:[%s1018 + $0xc0] sm:$0x1] %vm976, 0.0
  %1031 = vst.msk [vmem:[%s1018 + $0xd0] sm:$0x1] %vm976, 0.0
  %1032 = vst.msk [vmem:[%s1018 + $0xe0] sm:$0x1] %vm976, 0.0
  %1033 = vst.msk [vmem:[%s1018 + $0xf0] sm:$0x1] %vm976, 0.0
  %1034 = vst.msk [vmem:[%s1018 + $0x100] sm:$0x1] %vm976, 0.0
  %1035 = vst.msk [vmem:[%s1018 + $0x1] sm:$0xff] %vm415, %v926
  %1036 = vst.msk [vmem:[%s1018 + $0x11] sm:$0xff] %vm415, %v927
  %1037 = vst.msk [vmem:[%s1018 + $0x21] sm:$0xff] %vm415, %v928
  %1038 = vst.msk [vmem:[%s1018 + $0x31] sm:$0xff] %vm415, %v929
  %1039 = vst.msk [vmem:[%s1018 + $0x41] sm:$0xff] %vm415, %v930
  %1040 = vst.msk [vmem:[%s1018 + $0x51] sm:$0xff] %vm415, %v931
  %1041 = vst.msk [vmem:[%s1018 + $0x61] sm:$0xff] %vm415, %v932
  %1042 = vst.msk [vmem:[%s1018 + $0x71] sm:$0xff] %vm415, %v933
  %1043 = vst.msk [vmem:[%s1018 + $0x91] sm:$0xff] %vm415, %v934
  %1044 = vst.msk [vmem:[%s1018 + $0xa1] sm:$0xff] %vm415, %v935
  %1045 = vst.msk [vmem:[%s1018 + $0xb1] sm:$0xff] %vm415, %v936
  %1046 = vst.msk [vmem:[%s1018 + $0xc1] sm:$0xff] %vm415, %v937
  %1047 = vst.msk [vmem:[%s1018 + $0xd1] sm:$0xff] %vm415, %v938
  %1048 = vst.msk [vmem:[%s1018 + $0xe1] sm:$0xff] %vm415, %v939
  %1049 = vst.msk [vmem:[%s1018 + $0xf1] sm:$0xff] %vm415, %v940
  %1050 = vst.msk [vmem:[%s1018 + $0x101] sm:$0xff] %vm415, %v941
  %s1051 = scalar_lea.vmem [#allocation2], 288
  %1052 = vst.msk [vmem:[%s1051] sm:$0xff] %vm415, 0.0
  %1053 = vst.msk [vmem:[%s1051 + $0x8] sm:$0x1] %vm976, 0.0
  %1054 = vst.msk [vmem:[%s1051 + $0x90] sm:$0xff] %vm415, 0.0
  %1055 = vst.msk [vmem:[%s1051 + $0x98] sm:$0x1] %vm976, 0.0
  %s1056 = scalar_lea.vmem [#allocation2], 304
  %1057 = vst.msk [vmem:[%s1056 + $0x8] sm:$0x1] %vm976, 0.0
  %1058 = vst.msk [vmem:[%s1056 + $0x18] sm:$0x1] %vm976, 0.0
  %1059 = vst.msk [vmem:[%s1056 + $0x28] sm:$0x1] %vm976, 0.0
  %1060 = vst.msk [vmem:[%s1056 + $0x38] sm:$0x1] %vm976, 0.0
  %1061 = vst.msk [vmem:[%s1056 + $0x48] sm:$0x1] %vm976, 0.0
  %1062 = vst.msk [vmem:[%s1056 + $0x58] sm:$0x1] %vm976, 0.0
  %1063 = vst.msk [vmem:[%s1056 + $0x68] sm:$0x1] %vm976, 0.0
  %1064 = vst.msk [vmem:[%s1056 + $0x78] sm:$0x1] %vm976, 0.0
  %1065 = vst.msk [vmem:[%s1056 + $0x98] sm:$0x1] %vm976, 0.0
  %1066 = vst.msk [vmem:[%s1056 + $0xa8] sm:$0x1] %vm976, 0.0
  %1067 = vst.msk [vmem:[%s1056 + $0xb8] sm:$0x1] %vm976, 0.0
  %1068 = vst.msk [vmem:[%s1056 + $0xc8] sm:$0x1] %vm976, 0.0
  %1069 = vst.msk [vmem:[%s1056 + $0xd8] sm:$0x1] %vm976, 0.0
  %1070 = vst.msk [vmem:[%s1056 + $0xe8] sm:$0x1] %vm976, 0.0
  %1071 = vst.msk [vmem:[%s1056 + $0xf8] sm:$0x1] %vm976, 0.0
  %1072 = vst.msk [vmem:[%s1056 + $0x108] sm:$0x1] %vm976, 0.0
  %1073 = vst.msk [vmem:[%s1056] sm:$0xff] %vm415, %v942
  %1074 = vst.msk [vmem:[%s1056 + $0x10] sm:$0xff] %vm415, %v943
  %1075 = vst.msk [vmem:[%s1056 + $0x20] sm:$0xff] %vm415, %v944
  %1076 = vst.msk [vmem:[%s1056 + $0x30] sm:$0xff] %vm415, %v945
  %1077 = vst.msk [vmem:[%s1056 + $0x40] sm:$0xff] %vm415, %v946
  %1078 = vst.msk [vmem:[%s1056 + $0x50] sm:$0xff] %vm415, %v947
  %1079 = vst.msk [vmem:[%s1056 + $0x60] sm:$0xff] %vm415, %v948
  %1080 = vst.msk [vmem:[%s1056 + $0x70] sm:$0xff] %vm415, %v949
  %1081 = vst.msk [vmem:[%s1056 + $0x90] sm:$0xff] %vm415, %v950
  %1082 = vst.msk [vmem:[%s1056 + $0xa0] sm:$0xff] %vm415, %v951
  %1083 = vst.msk [vmem:[%s1056 + $0xb0] sm:$0xff] %vm415, %v952
  %1084 = vst.msk [vmem:[%s1056 + $0xc0] sm:$0xff] %vm415, %v953
  %1085 = vst.msk [vmem:[%s1056 + $0xd0] sm:$0xff] %vm415, %v954
  %1086 = vst.msk [vmem:[%s1056 + $0xe0] sm:$0xff] %vm415, %v955
  %1087 = vst.msk [vmem:[%s1056 + $0xf0] sm:$0xff] %vm415, %v956
  %1088 = vst.msk [vmem:[%s1056 + $0x100] sm:$0xff] %vm415, %v957
  %1089 = vst.msk [vmem:[#allocation2] sm:$0xff] %vm415, 0.0
  %1090 = vst.msk [vmem:[#allocation2 + $0x8] sm:$0x1] %vm976, 0.0
  %1091 = vst.msk [vmem:[#allocation2 + $0x90] sm:$0xff] %vm415, 0.0
  %1092 = vst.msk [vmem:[#allocation2 + $0x98] sm:$0x1] %vm976, 0.0
  %s1093 = scalar_lea.vmem [#allocation2], 16
  %1094 = vst.msk [vmem:[%s1093] sm:$0x1] %vm976, 0.0
  %1095 = vst.msk [vmem:[%s1093 + $0x10] sm:$0x1] %vm976, 0.0
  %1096 = vst.msk [vmem:[%s1093 + $0x20] sm:$0x1] %vm976, 0.0
  %1097 = vst.msk [vmem:[%s1093 + $0x30] sm:$0x1] %vm976, 0.0
  %1098 = vst.msk [vmem:[%s1093 + $0x40] sm:$0x1] %vm976, 0.0
  %1099 = vst.msk [vmem:[%s1093 + $0x50] sm:$0x1] %vm976, 0.0
  %1100 = vst.msk [vmem:[%s1093 + $0x60] sm:$0x1] %vm976, 0.0
  %1101 = vst.msk [vmem:[%s1093 + $0x70] sm:$0x1] %vm976, 0.0
  %1102 = vst.msk [vmem:[%s1093 + $0x90] sm:$0x1] %vm976, 0.0
  %1103 = vst.msk [vmem:[%s1093 + $0xa0] sm:$0x1] %vm976, 0.0
  %1104 = vst.msk [vmem:[%s1093 + $0xb0] sm:$0x1] %vm976, 0.0
  %1105 = vst.msk [vmem:[%s1093 + $0xc0] sm:$0x1] %vm976, 0.0
  %1106 = vst.msk [vmem:[%s1093 + $0xd0] sm:$0x1] %vm976, 0.0
  %1107 = vst.msk [vmem:[%s1093 + $0xe0] sm:$0x1] %vm976, 0.0
  %1108 = vst.msk [vmem:[%s1093 + $0xf0] sm:$0x1] %vm976, 0.0
  %1109 = vst.msk [vmem:[%s1093 + $0x100] sm:$0x1] %vm976, 0.0
  %1110 = vst.msk [vmem:[%s1093 + $0x1] sm:$0xff] %vm415, %v958
  %1111 = vst.msk [vmem:[%s1093 + $0x11] sm:$0xff] %vm415, %v959
  %1112 = vst.msk [vmem:[%s1093 + $0x21] sm:$0xff] %vm415, %v960
  %1113 = vst.msk [vmem:[%s1093 + $0x31] sm:$0xff] %vm415, %v961
  %1114 = vst.msk [vmem:[%s1093 + $0x41] sm:$0xff] %vm415, %v962
  %1115 = vst.msk [vmem:[%s1093 + $0x51] sm:$0xff] %vm415, %v963
  %1116 = vst.msk [vmem:[%s1093 + $0x61] sm:$0xff] %vm415, %v964
  %1117 = vst.msk [vmem:[%s1093 + $0x71] sm:$0xff] %vm415, %v965
  %1118 = vst.msk [vmem:[%s1093 + $0x91] sm:$0xff] %vm415, %v966
  %1119 = vst.msk [vmem:[%s1093 + $0xa1] sm:$0xff] %vm415, %v967
  %1120 = vst.msk [vmem:[%s1093 + $0xb1] sm:$0xff] %vm415, %v968
  %1121 = vst.msk [vmem:[%s1093 + $0xc1] sm:$0xff] %vm415, %v969
  %1122 = vst.msk [vmem:[%s1093 + $0xd1] sm:$0xff] %vm415, %v970
  %1123 = vst.msk [vmem:[%s1093 + $0xe1] sm:$0xff] %vm415, %v971
  %1124 = vst.msk [vmem:[%s1093 + $0xf1] sm:$0xff] %vm415, %v972
  %1125 = vst.msk [vmem:[%s1093 + $0x101] sm:$0xff] %vm415, %v973
  %v1126 = vld [vmem:[#allocation2] sm:$0xff]
  %v1127 = vld [vmem:[#allocation2 + $0x10] sm:$0xff]
  %v1128 = vld [vmem:[#allocation2 + $0x20] sm:$0xff]
  %v1129 = vld [vmem:[#allocation2 + $0x30] sm:$0xff]
  %v1130 = vld [vmem:[#allocation2 + $0x40] sm:$0xff]
  %v1131 = vld [vmem:[#allocation2 + $0x50] sm:$0xff]
  %v1132 = vld [vmem:[#allocation2 + $0x60] sm:$0xff]
  %v1133 = vld [vmem:[#allocation2 + $0x70] sm:$0xff]
  %v1134 = vld [vmem:[#allocation2 + $0x90] sm:$0xff]
  %v1135 = vld [vmem:[#allocation2 + $0xa0] sm:$0xff]
  %v1136 = vld [vmem:[#allocation2 + $0xb0] sm:$0xff]
  %v1137 = vld [vmem:[#allocation2 + $0xc0] sm:$0xff]
  %v1138 = vld [vmem:[#allocation2 + $0xd0] sm:$0xff]
  %v1139 = vld [vmem:[#allocation2 + $0xe0] sm:$0xff]
  %v1140 = vld [vmem:[#allocation2 + $0xf0] sm:$0xff]
  %v1141 = vld [vmem:[#allocation2 + $0x100] sm:$0xff]
  %v1142 = vld [vmem:[%s1051] sm:$0xff]
  %v1143 = vld [vmem:[%s1051 + $0x10] sm:$0xff]
  %v1144 = vld [vmem:[%s1051 + $0x20] sm:$0xff]
  %v1145 = vld [vmem:[%s1051 + $0x30] sm:$0xff]
  %v1146 = vld [vmem:[%s1051 + $0x40] sm:$0xff]
  %v1147 = vld [vmem:[%s1051 + $0x50] sm:$0xff]
  %v1148 = vld [vmem:[%s1051 + $0x60] sm:$0xff]
  %v1149 = vld [vmem:[%s1051 + $0x70] sm:$0xff]
  %v1150 = vld [vmem:[%s1051 + $0x90] sm:$0xff]
  %v1151 = vld [vmem:[%s1051 + $0xa0] sm:$0xff]
  %v1152 = vld [vmem:[%s1051 + $0xb0] sm:$0xff]
  %v1153 = vld [vmem:[%s1051 + $0xc0] sm:$0xff]
  %v1154 = vld [vmem:[%s1051 + $0xd0] sm:$0xff]
  %v1155 = vld [vmem:[%s1051 + $0xe0] sm:$0xff]
  %v1156 = vld [vmem:[%s1051 + $0xf0] sm:$0xff]
  %v1157 = vld [vmem:[%s1051 + $0x100] sm:$0xff]
  %v1158 = vld [vmem:[#allocation2 + $0x1] sm:$0xff]
  %v1159 = vld [vmem:[#allocation2 + $0x11] sm:$0xff]
  %v1160 = vld [vmem:[#allocation2 + $0x21] sm:$0xff]
  %v1161 = vld [vmem:[#allocation2 + $0x31] sm:$0xff]
  %v1162 = vld [vmem:[#allocation2 + $0x41] sm:$0xff]
  %v1163 = vld [vmem:[#allocation2 + $0x51] sm:$0xff]
  %v1164 = vld [vmem:[#allocation2 + $0x61] sm:$0xff]
  %v1165 = vld [vmem:[#allocation2 + $0x71] sm:$0xff]
  %v1166 = vld [vmem:[#allocation2 + $0x91] sm:$0xff]
  %v1167 = vld [vmem:[#allocation2 + $0xa1] sm:$0xff]
  %v1168 = vld [vmem:[#allocation2 + $0xb1] sm:$0xff]
  %v1169 = vld [vmem:[#allocation2 + $0xc1] sm:$0xff]
  %v1170 = vld [vmem:[#allocation2 + $0xd1] sm:$0xff]
  %v1171 = vld [vmem:[#allocation2 + $0xe1] sm:$0xff]
  %v1172 = vld [vmem:[#allocation2 + $0xf1] sm:$0xff]
  %v1173 = vld [vmem:[#allocation2 + $0x101] sm:$0xff]
  %v1174 = vld [vmem:[%s1018] sm:$0xff]
  %v1175 = vld [vmem:[%s1018 + $0x10] sm:$0xff]
  %v1176 = vld [vmem:[%s1018 + $0x20] sm:$0xff]
  %v1177 = vld [vmem:[%s1018 + $0x30] sm:$0xff]
  %v1178 = vld [vmem:[%s1018 + $0x40] sm:$0xff]
  %v1179 = vld [vmem:[%s1018 + $0x50] sm:$0xff]
  %v1180 = vld [vmem:[%s1018 + $0x60] sm:$0xff]
  %v1181 = vld [vmem:[%s1018 + $0x70] sm:$0xff]
  %v1182 = vld [vmem:[%s1018 + $0x90] sm:$0xff]
  %v1183 = vld [vmem:[%s1018 + $0xa0] sm:$0xff]
  %v1184 = vld [vmem:[%s1018 + $0xb0] sm:$0xff]
  %v1185 = vld [vmem:[%s1018 + $0xc0] sm:$0xff]
  %v1186 = vld [vmem:[%s1018 + $0xd0] sm:$0xff]
  %v1187 = vld [vmem:[%s1018 + $0xe0] sm:$0xff]
  %v1188 = vld [vmem:[%s1018 + $0xf0] sm:$0xff]
  %v1189 = vld [vmem:[%s1018 + $0x100] sm:$0xff]
  %v1190 = vld [vmem:[%s980] sm:$0xff]
  %v1191 = vld [vmem:[%s980 + $0x10] sm:$0xff]
  %v1192 = vld [vmem:[%s980 + $0x20] sm:$0xff]
  %v1193 = vld [vmem:[%s980 + $0x30] sm:$0xff]
  %v1194 = vld [vmem:[%s980 + $0x40] sm:$0xff]
  %v1195 = vld [vmem:[%s980 + $0x50] sm:$0xff]
  %v1196 = vld [vmem:[%s980 + $0x60] sm:$0xff]
  %v1197 = vld [vmem:[%s980 + $0x70] sm:$0xff]
  %v1198 = vld [vmem:[%s980 + $0x90] sm:$0xff]
  %v1199 = vld [vmem:[%s980 + $0xa0] sm:$0xff]
  %v1200 = vld [vmem:[%s980 + $0xb0] sm:$0xff]
  %v1201 = vld [vmem:[%s980 + $0xc0] sm:$0xff]
  %v1202 = vld [vmem:[%s980 + $0xd0] sm:$0xff]
  %v1203 = vld [vmem:[%s980 + $0xe0] sm:$0xff]
  %v1204 = vld [vmem:[%s980 + $0xf0] sm:$0xff]
  %v1205 = vld [vmem:[%s980 + $0x100] sm:$0xff]
  %v1206 = vld [vmem:[%s1018 + $0x1] sm:$0xff]
  %v1207 = vld [vmem:[%s1018 + $0x11] sm:$0xff]
  %v1208 = vld [vmem:[%s1018 + $0x21] sm:$0xff]
  %v1209 = vld [vmem:[%s1018 + $0x31] sm:$0xff]
  %v1210 = vld [vmem:[%s1018 + $0x41] sm:$0xff]
  %v1211 = vld [vmem:[%s1018 + $0x51] sm:$0xff]
  %v1212 = vld [vmem:[%s1018 + $0x61] sm:$0xff]
  %v1213 = vld [vmem:[%s1018 + $0x71] sm:$0xff]
  %v1214 = vld [vmem:[%s1018 + $0x91] sm:$0xff]
  %v1215 = vld [vmem:[%s1018 + $0xa1] sm:$0xff]
  %v1216 = vld [vmem:[%s1018 + $0xb1] sm:$0xff]
  %v1217 = vld [vmem:[%s1018 + $0xc1] sm:$0xff]
  %v1218 = vld [vmem:[%s1018 + $0xd1] sm:$0xff]
  %v1219 = vld [vmem:[%s1018 + $0xe1] sm:$0xff]
  %v1220 = vld [vmem:[%s1018 + $0xf1] sm:$0xff]
  %v1221 = vld [vmem:[%s1018 + $0x101] sm:$0xff]
  %v1222 = vld [vmem:[%s1093] sm:$0xff]
  %v1223 = vld [vmem:[%s1093 + $0x10] sm:$0xff]
  %v1224 = vld [vmem:[%s1093 + $0x20] sm:$0xff]
  %v1225 = vld [vmem:[%s1093 + $0x30] sm:$0xff]
  %v1226 = vld [vmem:[%s1093 + $0x40] sm:$0xff]
  %v1227 = vld [vmem:[%s1093 + $0x50] sm:$0xff]
  %v1228 = vld [vmem:[%s1093 + $0x60] sm:$0xff]
  %v1229 = vld [vmem:[%s1093 + $0x70] sm:$0xff]
  %v1230 = vld [vmem:[%s1093 + $0x90] sm:$0xff]
  %v1231 = vld [vmem:[%s1093 + $0xa0] sm:$0xff]
  %v1232 = vld [vmem:[%s1093 + $0xb0] sm:$0xff]
  %v1233 = vld [vmem:[%s1093 + $0xc0] sm:$0xff]
  %v1234 = vld [vmem:[%s1093 + $0xd0] sm:$0xff]
  %v1235 = vld [vmem:[%s1093 + $0xe0] sm:$0xff]
  %v1236 = vld [vmem:[%s1093 + $0xf0] sm:$0xff]
  %v1237 = vld [vmem:[%s1093 + $0x100] sm:$0xff]
  %v1238 = vld [vmem:[%s1056] sm:$0xff]
  %v1239 = vld [vmem:[%s1056 + $0x10] sm:$0xff]
  %v1240 = vld [vmem:[%s1056 + $0x20] sm:$0xff]
  %v1241 = vld [vmem:[%s1056 + $0x30] sm:$0xff]
  %v1242 = vld [vmem:[%s1056 + $0x40] sm:$0xff]
  %v1243 = vld [vmem:[%s1056 + $0x50] sm:$0xff]
  %v1244 = vld [vmem:[%s1056 + $0x60] sm:$0xff]
  %v1245 = vld [vmem:[%s1056 + $0x70] sm:$0xff]
  %v1246 = vld [vmem:[%s1056 + $0x90] sm:$0xff]
  %v1247 = vld [vmem:[%s1056 + $0xa0] sm:$0xff]
  %v1248 = vld [vmem:[%s1056 + $0xb0] sm:$0xff]
  %v1249 = vld [vmem:[%s1056 + $0xc0] sm:$0xff]
  %v1250 = vld [vmem:[%s1056 + $0xd0] sm:$0xff]
  %v1251 = vld [vmem:[%s1056 + $0xe0] sm:$0xff]
  %v1252 = vld [vmem:[%s1056 + $0xf0] sm:$0xff]
  %v1253 = vld [vmem:[%s1056 + $0x100] sm:$0xff]
  %v1254 = vld [vmem:[%s1093 + $0x1] sm:$0xff]
  %v1255 = vld [vmem:[%s1093 + $0x11] sm:$0xff]
  %v1256 = vld [vmem:[%s1093 + $0x21] sm:$0xff]
  %v1257 = vld [vmem:[%s1093 + $0x31] sm:$0xff]
  %v1258 = vld [vmem:[%s1093 + $0x41] sm:$0xff]
  %v1259 = vld [vmem:[%s1093 + $0x51] sm:$0xff]
  %v1260 = vld [vmem:[%s1093 + $0x61] sm:$0xff]
  %v1261 = vld [vmem:[%s1093 + $0x71] sm:$0xff]
  %v1262 = vld [vmem:[%s1093 + $0x91] sm:$0xff]
  %v1263 = vld [vmem:[%s1093 + $0xa1] sm:$0xff]
  %v1264 = vld [vmem:[%s1093 + $0xb1] sm:$0xff]
  %v1265 = vld [vmem:[%s1093 + $0xc1] sm:$0xff]
  %v1266 = vld [vmem:[%s1093 + $0xd1] sm:$0xff]
  %v1267 = vld [vmem:[%s1093 + $0xe1] sm:$0xff]
  %v1268 = vld [vmem:[%s1093 + $0xf1] sm:$0xff]
  %v1269 = vld [vmem:[%s1093 + $0x101] sm:$0xff]
  %1286 = vrot.lane.b32.xlu0 %v1142, 4
  %v1287 = vpop.permute.xlu0 %1286
  %1288 = vrot.lane.b32.xlu0 %v1143, 4
  %v1289 = vpop.permute.xlu0 %1288
  %1290 = vrot.lane.b32.xlu0 %v1144, 4
  %v1291 = vpop.permute.xlu0 %1290
  %1292 = vrot.lane.b32.xlu0 %v1145, 4
  %v1293 = vpop.permute.xlu0 %1292
  %1294 = vrot.lane.b32.xlu0 %v1146, 4
  %v1295 = vpop.permute.xlu0 %1294
  %1296 = vrot.lane.b32.xlu0 %v1147, 4
  %v1297 = vpop.permute.xlu0 %1296
  %1298 = vrot.lane.b32.xlu0 %v1148, 4
  %v1299 = vpop.permute.xlu0 %1298
  %1300 = vrot.lane.b32.xlu0 %v1149, 4
  %v1301 = vpop.permute.xlu0 %1300
  %1302 = vrot.lane.b32.xlu0 %v1150, 4
  %v1303 = vpop.permute.xlu0 %1302
  %1304 = vrot.lane.b32.xlu0 %v1151, 4
  %v1305 = vpop.permute.xlu0 %1304
  %1306 = vrot.lane.b32.xlu0 %v1152, 4
  %v1307 = vpop.permute.xlu0 %1306
  %1308 = vrot.lane.b32.xlu0 %v1153, 4
  %v1309 = vpop.permute.xlu0 %1308
  %1310 = vrot.lane.b32.xlu0 %v1154, 4
  %v1311 = vpop.permute.xlu0 %1310
  %1312 = vrot.lane.b32.xlu0 %v1155, 4
  %v1313 = vpop.permute.xlu0 %1312
  %1314 = vrot.lane.b32.xlu0 %v1156, 4
  %v1315 = vpop.permute.xlu0 %1314
  %1316 = vrot.lane.b32.xlu0 %v1157, 4
  %v1317 = vpop.permute.xlu0 %1316
  %1350 = vrot.lane.b32.xlu0 %v1158, 8
  %v1351 = vpop.permute.xlu0 %1350
  %1352 = vrot.lane.b32.xlu0 %v1159, 8
  %v1353 = vpop.permute.xlu0 %1352
  %1354 = vrot.lane.b32.xlu0 %v1160, 8
  %v1355 = vpop.permute.xlu0 %1354
  %1356 = vrot.lane.b32.xlu0 %v1161, 8
  %v1357 = vpop.permute.xlu0 %1356
  %1358 = vrot.lane.b32.xlu0 %v1162, 8
  %v1359 = vpop.permute.xlu0 %1358
  %1360 = vrot.lane.b32.xlu0 %v1163, 8
  %v1361 = vpop.permute.xlu0 %1360
  %1362 = vrot.lane.b32.xlu0 %v1164, 8
  %v1363 = vpop.permute.xlu0 %1362
  %1364 = vrot.lane.b32.xlu0 %v1165, 8
  %v1365 = vpop.permute.xlu0 %1364
  %1366 = vrot.lane.b32.xlu0 %v1166, 8
  %v1367 = vpop.permute.xlu0 %1366
  %1368 = vrot.lane.b32.xlu0 %v1167, 8
  %v1369 = vpop.permute.xlu0 %1368
  %1370 = vrot.lane.b32.xlu0 %v1168, 8
  %v1371 = vpop.permute.xlu0 %1370
  %1372 = vrot.lane.b32.xlu0 %v1169, 8
  %v1373 = vpop.permute.xlu0 %1372
  %1374 = vrot.lane.b32.xlu0 %v1170, 8
  %v1375 = vpop.permute.xlu0 %1374
  %1376 = vrot.lane.b32.xlu0 %v1171, 8
  %v1377 = vpop.permute.xlu0 %1376
  %1378 = vrot.lane.b32.xlu0 %v1172, 8
  %v1379 = vpop.permute.xlu0 %1378
  %1380 = vrot.lane.b32.xlu0 %v1173, 8
  %v1381 = vpop.permute.xlu0 %1380
  %1414 = vrot.lane.b32.xlu0 %v1174, 12
  %v1415 = vpop.permute.xlu0 %1414
  %1416 = vrot.lane.b32.xlu0 %v1175, 12
  %v1417 = vpop.permute.xlu0 %1416
  %1418 = vrot.lane.b32.xlu0 %v1176, 12
  %v1419 = vpop.permute.xlu0 %1418
  %1420 = vrot.lane.b32.xlu0 %v1177, 12
  %v1421 = vpop.permute.xlu0 %1420
  %1422 = vrot.lane.b32.xlu0 %v1178, 12
  %v1423 = vpop.permute.xlu0 %1422
  %1424 = vrot.lane.b32.xlu0 %v1179, 12
  %v1425 = vpop.permute.xlu0 %1424
  %1426 = vrot.lane.b32.xlu0 %v1180, 12
  %v1427 = vpop.permute.xlu0 %1426
  %1428 = vrot.lane.b32.xlu0 %v1181, 12
  %v1429 = vpop.permute.xlu0 %1428
  %1430 = vrot.lane.b32.xlu0 %v1182, 12
  %v1431 = vpop.permute.xlu0 %1430
  %1432 = vrot.lane.b32.xlu0 %v1183, 12
  %v1433 = vpop.permute.xlu0 %1432
  %1434 = vrot.lane.b32.xlu0 %v1184, 12
  %v1435 = vpop.permute.xlu0 %1434
  %1436 = vrot.lane.b32.xlu0 %v1185, 12
  %v1437 = vpop.permute.xlu0 %1436
  %1438 = vrot.lane.b32.xlu0 %v1186, 12
  %v1439 = vpop.permute.xlu0 %1438
  %1440 = vrot.lane.b32.xlu0 %v1187, 12
  %v1441 = vpop.permute.xlu0 %1440
  %1442 = vrot.lane.b32.xlu0 %v1188, 12
  %v1443 = vpop.permute.xlu0 %1442
  %1444 = vrot.lane.b32.xlu0 %v1189, 12
  %v1445 = vpop.permute.xlu0 %1444
  %1478 = vrot.lane.b32.xlu0 %v1190, 16
  %v1479 = vpop.permute.xlu0 %1478
  %1480 = vrot.lane.b32.xlu0 %v1191, 16
  %v1481 = vpop.permute.xlu0 %1480
  %1482 = vrot.lane.b32.xlu0 %v1192, 16
  %v1483 = vpop.permute.xlu0 %1482
  %1484 = vrot.lane.b32.xlu0 %v1193, 16
  %v1485 = vpop.permute.xlu0 %1484
  %1486 = vrot.lane.b32.xlu0 %v1194, 16
  %v1487 = vpop.permute.xlu0 %1486
  %1488 = vrot.lane.b32.xlu0 %v1195, 16
  %v1489 = vpop.permute.xlu0 %1488
  %1490 = vrot.lane.b32.xlu0 %v1196, 16
  %v1491 = vpop.permute.xlu0 %1490
  %1492 = vrot.lane.b32.xlu0 %v1197, 16
  %v1493 = vpop.permute.xlu0 %1492
  %1494 = vrot.lane.b32.xlu0 %v1198, 16
  %v1495 = vpop.permute.xlu0 %1494
  %1496 = vrot.lane.b32.xlu0 %v1199, 16
  %v1497 = vpop.permute.xlu0 %1496
  %1498 = vrot.lane.b32.xlu0 %v1200, 16
  %v1499 = vpop.permute.xlu0 %1498
  %1500 = vrot.lane.b32.xlu0 %v1201, 16
  %v1501 = vpop.permute.xlu0 %1500
  %1502 = vrot.lane.b32.xlu0 %v1202, 16
  %v1503 = vpop.permute.xlu0 %1502
  %1504 = vrot.lane.b32.xlu0 %v1203, 16
  %v1505 = vpop.permute.xlu0 %1504
  %1506 = vrot.lane.b32.xlu0 %v1204, 16
  %v1507 = vpop.permute.xlu0 %1506
  %1508 = vrot.lane.b32.xlu0 %v1205, 16
  %v1509 = vpop.permute.xlu0 %1508
  %1542 = vrot.lane.b32.xlu0 %v1206, 20
  %v1543 = vpop.permute.xlu0 %1542
  %1544 = vrot.lane.b32.xlu0 %v1207, 20
  %v1545 = vpop.permute.xlu0 %1544
  %1546 = vrot.lane.b32.xlu0 %v1208, 20
  %v1547 = vpop.permute.xlu0 %1546
  %1548 = vrot.lane.b32.xlu0 %v1209, 20
  %v1549 = vpop.permute.xlu0 %1548
  %1550 = vrot.lane.b32.xlu0 %v1210, 20
  %v1551 = vpop.permute.xlu0 %1550
  %1552 = vrot.lane.b32.xlu0 %v1211, 20
  %v1553 = vpop.permute.xlu0 %1552
  %1554 = vrot.lane.b32.xlu0 %v1212, 20
  %v1555 = vpop.permute.xlu0 %1554
  %1556 = vrot.lane.b32.xlu0 %v1213, 20
  %v1557 = vpop.permute.xlu0 %1556
  %1558 = vrot.lane.b32.xlu0 %v1214, 20
  %v1559 = vpop.permute.xlu0 %1558
  %1560 = vrot.lane.b32.xlu0 %v1215, 20
  %v1561 = vpop.permute.xlu0 %1560
  %1562 = vrot.lane.b32.xlu0 %v1216, 20
  %v1563 = vpop.permute.xlu0 %1562
  %1564 = vrot.lane.b32.xlu0 %v1217, 20
  %v1565 = vpop.permute.xlu0 %1564
  %1566 = vrot.lane.b32.xlu0 %v1218, 20
  %v1567 = vpop.permute.xlu0 %1566
  %1568 = vrot.lane.b32.xlu0 %v1219, 20
  %v1569 = vpop.permute.xlu0 %1568
  %1570 = vrot.lane.b32.xlu0 %v1220, 20
  %v1571 = vpop.permute.xlu0 %1570
  %1572 = vrot.lane.b32.xlu0 %v1221, 20
  %v1573 = vpop.permute.xlu0 %1572
  %1606 = vrot.lane.b32.xlu0 %v1222, 24
  %v1607 = vpop.permute.xlu0 %1606
  %1608 = vrot.lane.b32.xlu0 %v1223, 24
  %v1609 = vpop.permute.xlu0 %1608
  %1610 = vrot.lane.b32.xlu0 %v1224, 24
  %v1611 = vpop.permute.xlu0 %1610
  %1612 = vrot.lane.b32.xlu0 %v1225, 24
  %v1613 = vpop.permute.xlu0 %1612
  %1614 = vrot.lane.b32.xlu0 %v1226, 24
  %v1615 = vpop.permute.xlu0 %1614
  %1616 = vrot.lane.b32.xlu0 %v1227, 24
  %v1617 = vpop.permute.xlu0 %1616
  %1618 = vrot.lane.b32.xlu0 %v1228, 24
  %v1619 = vpop.permute.xlu0 %1618
  %1620 = vrot.lane.b32.xlu0 %v1229, 24
  %v1621 = vpop.permute.xlu0 %1620
  %1622 = vrot.lane.b32.xlu0 %v1230, 24
  %v1623 = vpop.permute.xlu0 %1622
  %1624 = vrot.lane.b32.xlu0 %v1231, 24
  %v1625 = vpop.permute.xlu0 %1624
  %1626 = vrot.lane.b32.xlu0 %v1232, 24
  %v1627 = vpop.permute.xlu0 %1626
  %1628 = vrot.lane.b32.xlu0 %v1233, 24
  %v1629 = vpop.permute.xlu0 %1628
  %1630 = vrot.lane.b32.xlu0 %v1234, 24
  %v1631 = vpop.permute.xlu0 %1630
  %1632 = vrot.lane.b32.xlu0 %v1235, 24
  %v1633 = vpop.permute.xlu0 %1632
  %1634 = vrot.lane.b32.xlu0 %v1236, 24
  %v1635 = vpop.permute.xlu0 %1634
  %1636 = vrot.lane.b32.xlu0 %v1237, 24
  %v1637 = vpop.permute.xlu0 %1636
  %1670 = vrot.lane.b32.xlu0 %v1238, 28
  %v1671 = vpop.permute.xlu0 %1670
  %1672 = vrot.lane.b32.xlu0 %v1239, 28
  %v1673 = vpop.permute.xlu0 %1672
  %1674 = vrot.lane.b32.xlu0 %v1240, 28
  %v1675 = vpop.permute.xlu0 %1674
  %1676 = vrot.lane.b32.xlu0 %v1241, 28
  %v1677 = vpop.permute.xlu0 %1676
  %1678 = vrot.lane.b32.xlu0 %v1242, 28
  %v1679 = vpop.permute.xlu0 %1678
  %1680 = vrot.lane.b32.xlu0 %v1243, 28
  %v1681 = vpop.permute.xlu0 %1680
  %1682 = vrot.lane.b32.xlu0 %v1244, 28
  %v1683 = vpop.permute.xlu0 %1682
  %1684 = vrot.lane.b32.xlu0 %v1245, 28
  %v1685 = vpop.permute.xlu0 %1684
  %1686 = vrot.lane.b32.xlu0 %v1246, 28
  %v1687 = vpop.permute.xlu0 %1686
  %1688 = vrot.lane.b32.xlu0 %v1247, 28
  %v1689 = vpop.permute.xlu0 %1688
  %1690 = vrot.lane.b32.xlu0 %v1248, 28
  %v1691 = vpop.permute.xlu0 %1690
  %1692 = vrot.lane.b32.xlu0 %v1249, 28
  %v1693 = vpop.permute.xlu0 %1692
  %1694 = vrot.lane.b32.xlu0 %v1250, 28
  %v1695 = vpop.permute.xlu0 %1694
  %1696 = vrot.lane.b32.xlu0 %v1251, 28
  %v1697 = vpop.permute.xlu0 %1696
  %1698 = vrot.lane.b32.xlu0 %v1252, 28
  %v1699 = vpop.permute.xlu0 %1698
  %1700 = vrot.lane.b32.xlu0 %v1253, 28
  %v1701 = vpop.permute.xlu0 %1700
  %1734 = vrot.lane.b32.xlu0 %v1254, 32
  %v1735 = vpop.permute.xlu0 %1734
  %1736 = vrot.lane.b32.xlu0 %v1255, 32
  %v1737 = vpop.permute.xlu0 %1736
  %1738 = vrot.lane.b32.xlu0 %v1256, 32
  %v1739 = vpop.permute.xlu0 %1738
  %1740 = vrot.lane.b32.xlu0 %v1257, 32
  %v1741 = vpop.permute.xlu0 %1740
  %1742 = vrot.lane.b32.xlu0 %v1258, 32
  %v1743 = vpop.permute.xlu0 %1742
  %1744 = vrot.lane.b32.xlu0 %v1259, 32
  %v1745 = vpop.permute.xlu0 %1744
  %1746 = vrot.lane.b32.xlu0 %v1260, 32
  %v1747 = vpop.permute.xlu0 %1746
  %1748 = vrot.lane.b32.xlu0 %v1261, 32
  %v1749 = vpop.permute.xlu0 %1748
  %1750 = vrot.lane.b32.xlu0 %v1262, 32
  %v1751 = vpop.permute.xlu0 %1750
  %1752 = vrot.lane.b32.xlu0 %v1263, 32
  %v1753 = vpop.permute.xlu0 %1752
  %1754 = vrot.lane.b32.xlu0 %v1264, 32
  %v1755 = vpop.permute.xlu0 %1754
  %1756 = vrot.lane.b32.xlu0 %v1265, 32
  %v1757 = vpop.permute.xlu0 %1756
  %1758 = vrot.lane.b32.xlu0 %v1266, 32
  %v1759 = vpop.permute.xlu0 %1758
  %1760 = vrot.lane.b32.xlu0 %v1267, 32
  %v1761 = vpop.permute.xlu0 %1760
  %1762 = vrot.lane.b32.xlu0 %v1268, 32
  %v1763 = vpop.permute.xlu0 %1762
  %1764 = vrot.lane.b32.xlu0 %v1269, 32
  %v1765 = vpop.permute.xlu0 %1764
  %v1782 = vsel %vm415, %v1126, %v1287
  %v1783 = vsel %vm415, %v1127, %v1289
  %v1784 = vsel %vm415, %v1128, %v1291
  %v1785 = vsel %vm415, %v1129, %v1293
  %v1786 = vsel %vm415, %v1130, %v1295
  %v1787 = vsel %vm415, %v1131, %v1297
  %v1788 = vsel %vm415, %v1132, %v1299
  %v1789 = vsel %vm415, %v1133, %v1301
  %v1790 = vsel %vm415, %v1134, %v1303
  %v1791 = vsel %vm415, %v1135, %v1305
  %v1792 = vsel %vm415, %v1136, %v1307
  %v1793 = vsel %vm415, %v1137, %v1309
  %v1794 = vsel %vm415, %v1138, %v1311
  %v1795 = vsel %vm415, %v1139, %v1313
  %v1796 = vsel %vm415, %v1140, %v1315
  %v1797 = vsel %vm415, %v1141, %v1317
  %vm1798 = vcmask 64512
  %v1799 = vsel %vm1798, %v1782, %v1351
  %v1800 = vsel %vm1798, %v1783, %v1353
  %v1801 = vsel %vm1798, %v1784, %v1355
  %v1802 = vsel %vm1798, %v1785, %v1357
  %v1803 = vsel %vm1798, %v1786, %v1359
  %v1804 = vsel %vm1798, %v1787, %v1361
  %v1805 = vsel %vm1798, %v1788, %v1363
  %v1806 = vsel %vm1798, %v1789, %v1365
  %v1807 = vsel %vm1798, %v1790, %v1367
  %v1808 = vsel %vm1798, %v1791, %v1369
  %v1809 = vsel %vm1798, %v1792, %v1371
  %v1810 = vsel %vm1798, %v1793, %v1373
  %v1811 = vsel %vm1798, %v1794, %v1375
  %v1812 = vsel %vm1798, %v1795, %v1377
  %v1813 = vsel %vm1798, %v1796, %v1379
  %v1814 = vsel %vm1798, %v1797, %v1381
  %vm1815 = vcmask 97280
  %v1816 = vsel %vm1815, %v1799, %v1415
  %v1817 = vsel %vm1815, %v1800, %v1417
  %v1818 = vsel %vm1815, %v1801, %v1419
  %v1819 = vsel %vm1815, %v1802, %v1421
  %v1820 = vsel %vm1815, %v1803, %v1423
  %v1821 = vsel %vm1815, %v1804, %v1425
  %v1822 = vsel %vm1815, %v1805, %v1427
  %v1823 = vsel %vm1815, %v1806, %v1429
  %v1824 = vsel %vm1815, %v1807, %v1431
  %v1825 = vsel %vm1815, %v1808, %v1433
  %v1826 = vsel %vm1815, %v1809, %v1435
  %v1827 = vsel %vm1815, %v1810, %v1437
  %v1828 = vsel %vm1815, %v1811, %v1439
  %v1829 = vsel %vm1815, %v1812, %v1441
  %v1830 = vsel %vm1815, %v1813, %v1443
  %v1831 = vsel %vm1815, %v1814, %v1445
  %vm1832 = vcmask 130048
  %v1833 = vsel %vm1832, %v1816, %v1479
  %v1834 = vsel %vm1832, %v1817, %v1481
  %v1835 = vsel %vm1832, %v1818, %v1483
  %v1836 = vsel %vm1832, %v1819, %v1485
  %v1837 = vsel %vm1832, %v1820, %v1487
  %v1838 = vsel %vm1832, %v1821, %v1489
  %v1839 = vsel %vm1832, %v1822, %v1491
  %v1840 = vsel %vm1832, %v1823, %v1493
  %v1841 = vsel %vm1832, %v1824, %v1495
  %v1842 = vsel %vm1832, %v1825, %v1497
  %v1843 = vsel %vm1832, %v1826, %v1499
  %v1844 = vsel %vm1832, %v1827, %v1501
  %v1845 = vsel %vm1832, %v1828, %v1503
  %v1846 = vsel %vm1832, %v1829, %v1505
  %v1847 = vsel %vm1832, %v1830, %v1507
  %v1848 = vsel %vm1832, %v1831, %v1509
  %vm1849 = vcmask 162816
  %v1850 = vsel %vm1849, %v1833, %v1543
  %v1851 = vsel %vm1849, %v1834, %v1545
  %v1852 = vsel %vm1849, %v1835, %v1547
  %v1853 = vsel %vm1849, %v1836, %v1549
  %v1854 = vsel %vm1849, %v1837, %v1551
  %v1855 = vsel %vm1849, %v1838, %v1553
  %v1856 = vsel %vm1849, %v1839, %v1555
  %v1857 = vsel %vm1849, %v1840, %v1557
  %v1858 = vsel %vm1849, %v1841, %v1559
  %v1859 = vsel %vm1849, %v1842, %v1561
  %v1860 = vsel %vm1849, %v1843, %v1563
  %v1861 = vsel %vm1849, %v1844, %v1565
  %v1862 = vsel %vm1849, %v1845, %v1567
  %v1863 = vsel %vm1849, %v1846, %v1569
  %v1864 = vsel %vm1849, %v1847, %v1571
  %v1865 = vsel %vm1849, %v1848, %v1573
  %vm1866 = vcmask 195584
  %v1867 = vsel %vm1866, %v1850, %v1607
  %v1868 = vsel %vm1866, %v1851, %v1609
  %v1869 = vsel %vm1866, %v1852, %v1611
  %v1870 = vsel %vm1866, %v1853, %v1613
  %v1871 = vsel %vm1866, %v1854, %v1615
  %v1872 = vsel %vm1866, %v1855, %v1617
  %v1873 = vsel %vm1866, %v1856, %v1619
  %v1874 = vsel %vm1866, %v1857, %v1621
  %v1875 = vsel %vm1866, %v1858, %v1623
  %v1876 = vsel %vm1866, %v1859, %v1625
  %v1877 = vsel %vm1866, %v1860, %v1627
  %v1878 = vsel %vm1866, %v1861, %v1629
  %v1879 = vsel %vm1866, %v1862, %v1631
  %v1880 = vsel %vm1866, %v1863, %v1633
  %v1881 = vsel %vm1866, %v1864, %v1635
  %v1882 = vsel %vm1866, %v1865, %v1637
  %vm1883 = vcmask 228352
  %v1884 = vsel %vm1883, %v1867, %v1671
  %v1885 = vsel %vm1883, %v1868, %v1673
  %v1886 = vsel %vm1883, %v1869, %v1675
  %v1887 = vsel %vm1883, %v1870, %v1677
  %v1888 = vsel %vm1883, %v1871, %v1679
  %v1889 = vsel %vm1883, %v1872, %v1681
  %v1890 = vsel %vm1883, %v1873, %v1683
  %v1891 = vsel %vm1883, %v1874, %v1685
  %v1892 = vsel %vm1883, %v1875, %v1687
  %v1893 = vsel %vm1883, %v1876, %v1689
  %v1894 = vsel %vm1883, %v1877, %v1691
  %v1895 = vsel %vm1883, %v1878, %v1693
  %v1896 = vsel %vm1883, %v1879, %v1695
  %v1897 = vsel %vm1883, %v1880, %v1697
  %v1898 = vsel %vm1883, %v1881, %v1699
  %v1899 = vsel %vm1883, %v1882, %v1701
  %vm1900 = vcmask 261120
  %v1901 = vsel %vm1900, %v1884, %v1735
  %v1902 = vsel %vm1900, %v1885, %v1737
  %v1903 = vsel %vm1900, %v1886, %v1739
  %v1904 = vsel %vm1900, %v1887, %v1741
  %v1905 = vsel %vm1900, %v1888, %v1743
  %v1906 = vsel %vm1900, %v1889, %v1745
  %v1907 = vsel %vm1900, %v1890, %v1747
  %v1908 = vsel %vm1900, %v1891, %v1749
  %v1909 = vsel %vm1900, %v1892, %v1751
  %v1910 = vsel %vm1900, %v1893, %v1753
  %v1911 = vsel %vm1900, %v1894, %v1755
  %v1912 = vsel %vm1900, %v1895, %v1757
  %v1913 = vsel %vm1900, %v1896, %v1759
  %v1914 = vsel %vm1900, %v1897, %v1761
  %v1915 = vsel %vm1900, %v1898, %v1763
  %v1916 = vsel %vm1900, %v1899, %v1765
  %v1917 = vld [vmem:[%s5] sm:$0xff]
  %v1918 = vld [vmem:[%s5 + $0x8] sm:$0xff]
  %v1919 = vld [vmem:[%s5 + $0x10] sm:$0xff]
  %v1920 = vld [vmem:[%s5 + $0x18] sm:$0xff]
  %v1921 = vld [vmem:[%s5 + $0x20] sm:$0xf]
  %vm1922 = vcmask 293888
  %v1924 = vsel %vm1922, %v1901, 0
  %v1927 = vsel %vm1922, %v1902, 0
  %v1930 = vsel %vm1922, %v1903, 0
  %v1933 = vsel %vm1922, %v1904, 0
  %v1936 = vsel %vm1922, %v1905, 0
  %v1939 = vsel %vm1922, %v1906, 0
  %v1942 = vsel %vm1922, %v1907, 0
  %v1945 = vsel %vm1922, %v1908, 0
  %v1948 = vsel %vm1922, %v1909, 0
  %v1951 = vsel %vm1922, %v1910, 0
  %v1954 = vsel %vm1922, %v1911, 0
  %v1957 = vsel %vm1922, %v1912, 0
  %v1960 = vsel %vm1922, %v1913, 0
  %v1963 = vsel %vm1922, %v1914, 0
  %v1966 = vsel %vm1922, %v1915, 0
  %v1969 = vsel %vm1922, %v1916, 0
  %vm1971 = vcmask 1043456
  %v1973 = vsel %vm1971, %v1921, 0
  %1975 = vmatprep.subr.mxu0 0.0
  %1976 = vmatpush1.msra.mxu0 %v1917
  %1977 = vmatprep.subr.mxu0 0.0
  %1978 = vmatpush1.msra.mxu0 %v1918
  %1979 = vmatprep.subr.mxu0 0.0
  %1980 = vmatpush1.msra.mxu0 %v1919
  %1981 = vmatprep.subr.mxu0 0.0
  %1982 = vmatpush1.msra.mxu0 %v1920
  %1983 = vmatprep.subr.mxu0 0.0
  %1984 = vmatpush1.msra.mxu0 %v1973
  %1985 = vmatprep.subr.mxu0 0.0
  %1986 = vmatpush1.msra.mxu0 0.0
  %1987 = vmatprep.subr.mxu0 0.0
  %1988 = vmatpush1.msra.mxu0 0.0
  %1989 = vmatprep.subr.mxu0 0.0
  %1990 = vmatpush1.msra.mxu0 0.0
  %1991 = vmatprep.subr.mxu0 0.0
  %1992 = vmatpush1.msra.mxu0 0.0
  %1993 = vmatprep.subr.mxu0 0.0
  %1994 = vmatpush1.msra.mxu0 0.0
  %1995 = vmatprep.subr.mxu0 0.0
  %1996 = vmatpush1.msra.mxu0 0.0
  %1997 = vmatprep.subr.mxu0 0.0
  %1998 = vmatpush1.msra.mxu0 0.0
  %1999 = vmatprep.subr.mxu0 0.0
  %2000 = vmatpush1.msra.mxu0 0.0
  %2001 = vmatprep.subr.mxu0 0.0
  %2002 = vmatpush1.msra.mxu0 0.0
  %2003 = vmatprep.subr.mxu0 0.0
  %2004 = vmatpush1.msra.mxu0 0.0
  %2005 = vmatprep.subr.mxu0 0.0
  %2006 = vmatpush1.msra.mxu0 0.0
  %2007 = vmatprep.subr.mxu0 0.0
  %2008 = vmatpush1.msra.mxu0 0.0
  %2009 = vmatprep.subr.mxu0 0.0
  %2010 = vmatpush1.msra.mxu0 0.0
  %2011 = vmatprep.subr.mxu0 0.0
  %2012 = vmatpush1.msra.mxu0 0.0
  %2013 = vmatprep.subr.mxu0 0.0
  %2014 = vmatpush1.msra.mxu0 0.0
  %2015 = vmatprep.subr.mxu0 0.0
  %2016 = vmatpush1.msra.mxu0 0.0
  %2017 = vmatprep.subr.mxu0 0.0
  %2018 = vmatpush1.msra.mxu0 0.0
  %2019 = vmatprep.subr.mxu0 0.0
  %2020 = vmatpush1.msra.mxu0 0.0
  %2021 = vmatprep.subr.mxu0 0.0
  %2022 = vmatpush1.msra.mxu0 0.0
  %2023 = vmatprep.subr.mxu0 0.0
  %2024 = vmatpush1.msra.mxu0 0.0
  %2025 = vmatprep.subr.mxu0 0.0
  %2026 = vmatpush1.msra.mxu0 0.0
  %2027 = vmatprep.subr.mxu0 0.0
  %2028 = vmatpush1.msra.mxu0 0.0
  %2029 = vmatprep.subr.mxu0 0.0
  %2030 = vmatpush1.msra.mxu0 0.0
  %2031 = vmatprep.subr.mxu0 0.0
  %2032 = vmatpush1.msra.mxu0 0.0
  %2033 = vmatprep.subr.mxu0 0.0
  %2034 = vmatpush1.msra.mxu0 0.0
  %2035 = vmatprep.subr.mxu0 0.0
  %2036 = vmatpush1.msra.mxu0 0.0
  %2037 = vmatprep.subr.mxu0 0.0
  %2038 = vmatpush1.msra.mxu0 0.0
  %2039 = vmatprep.mubr.f32.mxu0 0.0
  %2040 = vmatmul.mubr.f32.gmra.mrb[0].mxu0 %v1924
  %v2041 = vpop.f32.mrb[0].mxu0
  %v2042 = vadd.f32 0.0, %v2041
  %v2043 = vpop.f32.mrb[0].mxu0
  %2044 = vmatprep.mubr.f32.mxu0 0.0
  %2045 = vmatmul.mubr.f32.gmra.mrb[0].mxu0 %v1927
  %v2046 = vpop.f32.mrb[0].mxu0
  %v2047 = vadd.f32 0.0, %v2046
  %v2048 = vpop.f32.mrb[0].mxu0
  %2049 = vmatprep.mubr.f32.mxu0 0.0
  %2050 = vmatmul.mubr.f32.gmra.mrb[0].mxu0 %v1930
  %v2051 = vpop.f32.mrb[0].mxu0
  %v2052 = vadd.f32 0.0, %v2051
  %v2053 = vpop.f32.mrb[0].mxu0
  %2054 = vmatprep.mubr.f32.mxu0 0.0
  %2055 = vmatmul.mubr.f32.gmra.mrb[0].mxu0 %v1933
  %v2056 = vpop.f32.mrb[0].mxu0
  %v2057 = vadd.f32 0.0, %v2056
  %v2058 = vpop.f32.mrb[0].mxu0
  %2059 = vmatprep.mubr.f32.mxu0 0.0
  %2060 = vmatmul.mubr.f32.gmra.mrb[0].mxu0 %v1936
  %v2061 = vpop.f32.mrb[0].mxu0
  %v2062 = vadd.f32 0.0, %v2061
  %v2063 = vpop.f32.mrb[0].mxu0
  %2064 = vmatprep.mubr.f32.mxu0 0.0
  %2065 = vmatmul.mubr.f32.gmra.mrb[0].mxu0 %v1939
  %v2066 = vpop.f32.mrb[0].mxu0
  %v2067 = vadd.f32 0.0, %v2066
  %v2068 = vpop.f32.mrb[0].mxu0
  %2069 = vmatprep.mubr.f32.mxu0 0.0
  %2070 = vmatmul.mubr.f32.gmra.mrb[0].mxu0 %v1942
  %v2071 = vpop.f32.mrb[0].mxu0
  %v2072 = vadd.f32 0.0, %v2071
  %v2073 = vpop.f32.mrb[0].mxu0
  %2074 = vmatprep.mubr.f32.mxu0 0.0
  %2075 = vmatmul.mubr.f32.gmra.mrb[0].mxu0 %v1945
  %v2076 = vpop.f32.mrb[0].mxu0
  %v2077 = vadd.f32 0.0, %v2076
  %v2078 = vpop.f32.mrb[0].mxu0
  %2079 = vmatprep.mubr.f32.mxu0 0.0
  %2080 = vmatmul.mubr.f32.gmra.mrb[0].mxu0 %v1948
  %v2081 = vpop.f32.mrb[0].mxu0
  %v2082 = vadd.f32 0.0, %v2081
  %v2083 = vpop.f32.mrb[0].mxu0
  %2084 = vmatprep.mubr.f32.mxu0 0.0
  %2085 = vmatmul.mubr.f32.gmra.mrb[0].mxu0 %v1951
  %v2086 = vpop.f32.mrb[0].mxu0
  %v2087 = vadd.f32 0.0, %v2086
  %v2088 = vpop.f32.mrb[0].mxu0
  %2089 = vmatprep.mubr.f32.mxu0 0.0
  %2090 = vmatmul.mubr.f32.gmra.mrb[0].mxu0 %v1954
  %v2091 = vpop.f32.mrb[0].mxu0
  %v2092 = vadd.f32 0.0, %v2091
  %v2093 = vpop.f32.mrb[0].mxu0
  %2094 = vmatprep.mubr.f32.mxu0 0.0
  %2095 = vmatmul.mubr.f32.gmra.mrb[0].mxu0 %v1957
  %v2096 = vpop.f32.mrb[0].mxu0
  %v2097 = vadd.f32 0.0, %v2096
  %v2098 = vpop.f32.mrb[0].mxu0
  %2099 = vmatprep.mubr.f32.mxu0 0.0
  %2100 = vmatmul.mubr.f32.gmra.mrb[0].mxu0 %v1960
  %v2101 = vpop.f32.mrb[0].mxu0
  %v2102 = vadd.f32 0.0, %v2101
  %v2103 = vpop.f32.mrb[0].mxu0
  %2104 = vmatprep.mubr.f32.mxu0 0.0
  %2105 = vmatmul.mubr.f32.gmra.mrb[0].mxu0 %v1963
  %v2106 = vpop.f32.mrb[0].mxu0
  %v2107 = vadd.f32 0.0, %v2106
  %v2108 = vpop.f32.mrb[0].mxu0
  %2109 = vmatprep.mubr.f32.mxu0 0.0
  %2110 = vmatmul.mubr.f32.gmra.mrb[0].mxu0 %v1966
  %v2111 = vpop.f32.mrb[0].mxu0
  %v2112 = vadd.f32 0.0, %v2111
  %v2113 = vpop.f32.mrb[0].mxu0
  %2114 = vmatprep.mubr.f32.mxu0 0.0
  %2115 = vmatmul.mubr.f32.gmra.mrb[0].mxu0 %v1969
  %v2116 = vpop.f32.mrb[0].mxu0
  %v2117 = vadd.f32 0.0, %v2116
  %v2118 = vpop.f32.mrb[0].mxu0
  %2119 = vdwg.mxu0
  %v2120 = vld [vmem:[%s7] sm:$0xff]
  %v2121 = vld [vmem:[%s3] sm:$0x1]
  %v2122 = vld [vmem:[%s4] sm:$0x1]
  %v2123 = vmul.f32 %v2042, %v2042
  %v2124 = vmul.f32 %v2047, %v2047
  %v2125 = vmul.f32 %v2052, %v2052
  %v2126 = vmul.f32 %v2057, %v2057
  %v2127 = vmul.f32 %v2062, %v2062
  %v2128 = vmul.f32 %v2067, %v2067
  %v2129 = vmul.f32 %v2072, %v2072
  %v2130 = vmul.f32 %v2077, %v2077
  %v2131 = vmul.f32 %v2082, %v2082
  %v2132 = vmul.f32 %v2087, %v2087
  %v2133 = vmul.f32 %v2092, %v2092
  %v2134 = vmul.f32 %v2097, %v2097
  %v2135 = vmul.f32 %v2102, %v2102
  %v2136 = vmul.f32 %v2107, %v2107
  %v2137 = vmul.f32 %v2112, %v2112
  %v2138 = vmul.f32 %v2117, %v2117
  %2155 = vrot.lane.b32.xlu0 %v2123, 8
  %v2156 = vpop.permute.xlu0 %2155
  %2157 = vrot.lane.b32.xlu0 %v2124, 8
  %v2158 = vpop.permute.xlu0 %2157
  %2159 = vrot.lane.b32.xlu0 %v2125, 8
  %v2160 = vpop.permute.xlu0 %2159
  %2161 = vrot.lane.b32.xlu0 %v2126, 8
  %v2162 = vpop.permute.xlu0 %2161
  %2163 = vrot.lane.b32.xlu0 %v2127, 8
  %v2164 = vpop.permute.xlu0 %2163
  %2165 = vrot.lane.b32.xlu0 %v2128, 8
  %v2166 = vpop.permute.xlu0 %2165
  %2167 = vrot.lane.b32.xlu0 %v2129, 8
  %v2168 = vpop.permute.xlu0 %2167
  %2169 = vrot.lane.b32.xlu0 %v2130, 8
  %v2170 = vpop.permute.xlu0 %2169
  %2171 = vrot.lane.b32.xlu0 %v2131, 8
  %v2172 = vpop.permute.xlu0 %2171
  %2173 = vrot.lane.b32.xlu0 %v2132, 8
  %v2174 = vpop.permute.xlu0 %2173
  %2175 = vrot.lane.b32.xlu0 %v2133, 8
  %v2176 = vpop.permute.xlu0 %2175
  %2177 = vrot.lane.b32.xlu0 %v2134, 8
  %v2178 = vpop.permute.xlu0 %2177
  %2179 = vrot.lane.b32.xlu0 %v2135, 8
  %v2180 = vpop.permute.xlu0 %2179
  %2181 = vrot.lane.b32.xlu0 %v2136, 8
  %v2182 = vpop.permute.xlu0 %2181
  %2183 = vrot.lane.b32.xlu0 %v2137, 8
  %v2184 = vpop.permute.xlu0 %2183
  %2185 = vrot.lane.b32.xlu0 %v2138, 8
  %v2186 = vpop.permute.xlu0 %2185
  %v2203 = vsel %vm1798, %v2042, %v2156
  %v2204 = vsel %vm1798, %v2047, %v2158
  %v2205 = vsel %vm1798, %v2052, %v2160
  %v2206 = vsel %vm1798, %v2057, %v2162
  %v2207 = vsel %vm1798, %v2062, %v2164
  %v2208 = vsel %vm1798, %v2067, %v2166
  %v2209 = vsel %vm1798, %v2072, %v2168
  %v2210 = vsel %vm1798, %v2077, %v2170
  %v2211 = vsel %vm1798, %v2082, %v2172
  %v2212 = vsel %vm1798, %v2087, %v2174
  %v2213 = vsel %vm1798, %v2092, %v2176
  %v2214 = vsel %vm1798, %v2097, %v2178
  %v2215 = vsel %vm1798, %v2102, %v2180
  %v2216 = vsel %vm1798, %v2107, %v2182
  %v2217 = vsel %vm1798, %v2112, %v2184
  %v2218 = vsel %vm1798, %v2117, %v2186
  %2219 = vmatprep.subr.mxu0 0.0
  %2220 = vmatpush1.msra.mxu0 %v2203
  %2221 = vmatprep.subr.mxu0 0.0
  %2222 = vmatpush1.msra.mxu0 %v2204
  %2223 = vmatprep.subr.mxu0 0.0
  %2224 = vmatpush1.msra.mxu0 %v2205
  %2225 = vmatprep.subr.mxu0 0.0
  %2226 = vmatpush1.msra.mxu0 %v2206
  %2227 = vmatprep.subr.mxu0 0.0
  %2228 = vmatpush1.msra.mxu0 %v2207
  %2229 = vmatprep.subr.mxu0 0.0
  %2230 = vmatpush1.msra.mxu0 %v2208
  %2231 = vmatprep.subr.mxu0 0.0
  %2232 = vmatpush1.msra.mxu0 %v2209
  %2233 = vmatprep.subr.mxu0 0.0
  %2234 = vmatpush1.msra.mxu0 %v2210
  %2235 = vmatprep.subr.mxu0 0.0
  %2236 = vmatpush1.msra.mxu0 %v2211
  %2237 = vmatprep.subr.mxu0 0.0
  %2238 = vmatpush1.msra.mxu0 %v2212
  %2239 = vmatprep.subr.mxu0 0.0
  %2240 = vmatpush1.msra.mxu0 %v2213
  %2241 = vmatprep.subr.mxu0 0.0
  %2242 = vmatpush1.msra.mxu0 %v2214
  %2243 = vmatprep.subr.mxu0 0.0
  %2244 = vmatpush1.msra.mxu0 %v2215
  %2245 = vmatprep.subr.mxu0 0.0
  %2246 = vmatpush1.msra.mxu0 %v2216
  %2247 = vmatprep.subr.mxu0 0.0
  %2248 = vmatpush1.msra.mxu0 %v2217
  %2249 = vmatprep.subr.mxu0 0.0
  %2250 = vmatpush1.msra.mxu0 %v2218
  %2251 = vmatprep.subr.mxu0 0.0
  %2252 = vmatpush1.msra.mxu0 0.0
  %2253 = vmatprep.subr.mxu0 0.0
  %2254 = vmatpush1.msra.mxu0 0.0
  %2255 = vmatprep.subr.mxu0 0.0
  %2256 = vmatpush1.msra.mxu0 0.0
  %2257 = vmatprep.subr.mxu0 0.0
  %2258 = vmatpush1.msra.mxu0 0.0
  %2259 = vmatprep.subr.mxu0 0.0
  %2260 = vmatpush1.msra.mxu0 0.0
  %2261 = vmatprep.subr.mxu0 0.0
  %2262 = vmatpush1.msra.mxu0 0.0
  %2263 = vmatprep.subr.mxu0 0.0
  %2264 = vmatpush1.msra.mxu0 0.0
  %2265 = vmatprep.subr.mxu0 0.0
  %2266 = vmatpush1.msra.mxu0 0.0
  %2267 = vmatprep.subr.mxu0 0.0
  %2268 = vmatpush1.msra.mxu0 0.0
  %2269 = vmatprep.subr.mxu0 0.0
  %2270 = vmatpush1.msra.mxu0 0.0
  %2271 = vmatprep.subr.mxu0 0.0
  %2272 = vmatpush1.msra.mxu0 0.0
  %2273 = vmatprep.subr.mxu0 0.0
  %2274 = vmatpush1.msra.mxu0 0.0
  %2275 = vmatprep.subr.mxu0 0.0
  %2276 = vmatpush1.msra.mxu0 0.0
  %2277 = vmatprep.subr.mxu0 0.0
  %2278 = vmatpush1.msra.mxu0 0.0
  %2279 = vmatprep.subr.mxu0 0.0
  %2280 = vmatpush1.msra.mxu0 0.0
  %2281 = vmatprep.subr.mxu0 0.0
  %2282 = vmatpush1.msra.mxu0 0.0
  %2283 = vmatprep.mubr.f32.mxu0 0.0
  %2284 = vmatmul.mubr.f32.gmra.mrb[0].mxu0 1.0
  %v2285 = vpop.f32.mrb[0].mxu0
  %v2286 = vadd.f32 0.0, %v2285
  %v2287 = vpop.f32.mrb[0].mxu0
  %2288 = vdwg.mxu0
  %v2289 = vmul.f32 %v2286, 0.0078125
  %v2290 = vmul.f32 %v2289, %v2289
  %2292 = vrot.lane.b32.xlu0 %v2290, 8
  %v2293 = vpop.permute.xlu0 %2292
  %v2295 = vsub.f32 %v2289, %v2293
  %v2296 = vmax.f32 %v2295, 0.0
  %v2297 = vlaneseq
  %v2298 = vshrl.u32 %v2297, 7
  %v2299 = vsub.s32 0, %v2298
  %v2300 = vrot.slane %v2289, %v2299
  %v2301 = vsub.f32 %v2042, %v2300
  %v2302 = vsub.f32 %v2047, %v2300
  %v2303 = vsub.f32 %v2052, %v2300
  %v2304 = vsub.f32 %v2057, %v2300
  %v2305 = vsub.f32 %v2062, %v2300
  %v2306 = vsub.f32 %v2067, %v2300
  %v2307 = vsub.f32 %v2072, %v2300
  %v2308 = vsub.f32 %v2077, %v2300
  %v2309 = vsub.f32 %v2082, %v2300
  %v2310 = vsub.f32 %v2087, %v2300
  %v2311 = vsub.f32 %v2092, %v2300
  %v2312 = vsub.f32 %v2097, %v2300
  %v2313 = vsub.f32 %v2102, %v2300
  %v2314 = vsub.f32 %v2107, %v2300
  %v2315 = vsub.f32 %v2112, %v2300
  %v2316 = vsub.f32 %v2117, %v2300
  %v2317 = vadd.f32 %v2296, 1e-05
  %v2318 = vrsqrt.pop %v2317
  %v2319 = vlaneseq
  %v2320 = vshrl.u32 %v2319, 7
  %v2321 = vsub.s32 0, %v2320
  %v2322 = vrot.slane %v2318, %v2321
  %2324 = vrot.lane.b32.xlu0 %v2322, 120
  %v2325 = vpop.permute.xlu0 %2324
  %v2327 = vmul.f32 %v2301, %v2325
  %v2328 = vmul.f32 %v2302, %v2325
  %v2329 = vmul.f32 %v2303, %v2325
  %v2330 = vmul.f32 %v2304, %v2325
  %v2331 = vmul.f32 %v2305, %v2325
  %v2332 = vmul.f32 %v2306, %v2325
  %v2333 = vmul.f32 %v2307, %v2325
  %v2334 = vmul.f32 %v2308, %v2325
  %v2335 = vmul.f32 %v2309, %v2325
  %v2336 = vmul.f32 %v2310, %v2325
  %v2337 = vmul.f32 %v2311, %v2325
  %v2338 = vmul.f32 %v2312, %v2325
  %v2339 = vmul.f32 %v2313, %v2325
  %v2340 = vmul.f32 %v2314, %v2325
  %v2341 = vmul.f32 %v2315, %v2325
  %v2342 = vmul.f32 %v2316, %v2325
  %v2344 = vlaneseq
  %v2345 = vshrl.u32 %v2344, 7
  %v2346 = vsub.s32 0, %v2345
  %v2347 = vrot.slane %v2121, %v2346
  %v2349 = vmul.f32 %v2327, %v2347
  %v2350 = vmul.f32 %v2328, %v2347
  %v2351 = vmul.f32 %v2329, %v2347
  %v2352 = vmul.f32 %v2330, %v2347
  %v2353 = vmul.f32 %v2331, %v2347
  %v2354 = vmul.f32 %v2332, %v2347
  %v2355 = vmul.f32 %v2333, %v2347
  %v2356 = vmul.f32 %v2334, %v2347
  %v2357 = vmul.f32 %v2335, %v2347
  %v2358 = vmul.f32 %v2336, %v2347
  %v2359 = vmul.f32 %v2337, %v2347
  %v2360 = vmul.f32 %v2338, %v2347
  %v2361 = vmul.f32 %v2339, %v2347
  %v2362 = vmul.f32 %v2340, %v2347
  %v2363 = vmul.f32 %v2341, %v2347
  %v2364 = vmul.f32 %v2342, %v2347
  %v2366 = vlaneseq
  %v2367 = vshrl.u32 %v2366, 7
  %v2368 = vsub.s32 0, %v2367
  %v2369 = vrot.slane %v2122, %v2368
  %v2371 = vadd.f32 %v2349, %v2369
  %v2372 = vadd.f32 %v2350, %v2369
  %v2373 = vadd.f32 %v2351, %v2369
  %v2374 = vadd.f32 %v2352, %v2369
  %v2375 = vadd.f32 %v2353, %v2369
  %v2376 = vadd.f32 %v2354, %v2369
  %v2377 = vadd.f32 %v2355, %v2369
  %v2378 = vadd.f32 %v2356, %v2369
  %v2379 = vadd.f32 %v2357, %v2369
  %v2380 = vadd.f32 %v2358, %v2369
  %v2381 = vadd.f32 %v2359, %v2369
  %v2382 = vadd.f32 %v2360, %v2369
  %v2383 = vadd.f32 %v2361, %v2369
  %v2384 = vadd.f32 %v2362, %v2369
  %v2385 = vadd.f32 %v2363, %v2369
  %v2386 = vadd.f32 %v2364, %v2369
  %v2387 = vmax.f32 %v2371, 0.0
  %v2388 = vmax.f32 %v2372, 0.0
  %v2389 = vmax.f32 %v2373, 0.0
  %v2390 = vmax.f32 %v2374, 0.0
  %v2391 = vmax.f32 %v2375, 0.0
  %v2392 = vmax.f32 %v2376, 0.0
  %v2393 = vmax.f32 %v2377, 0.0
  %v2394 = vmax.f32 %v2378, 0.0
  %v2395 = vmax.f32 %v2379, 0.0
  %v2396 = vmax.f32 %v2380, 0.0
  %v2397 = vmax.f32 %v2381, 0.0
  %v2398 = vmax.f32 %v2382, 0.0
  %v2399 = vmax.f32 %v2383, 0.0
  %v2400 = vmax.f32 %v2384, 0.0
  %v2401 = vmax.f32 %v2385, 0.0
  %v2402 = vmax.f32 %v2386, 0.0
  %2403 = vst.msk [vmem:[#allocation3] sm:$0xff] %vm1798, 0.0
  %vm2404 = vcmask 58368
  %2405 = vst.msk [vmem:[#allocation3 + $0x8] sm:$0x3] %vm2404, 0.0
  %2406 = vst.msk [vmem:[#allocation3 + $0xa0] sm:$0xff] %vm1798, 0.0
  %2407 = vst.msk [vmem:[#allocation3 + $0xa8] sm:$0x3] %vm2404, 0.0
  %s2408 = scalar_lea.vmem [#allocation3], 144
  %2409 = vst.msk [vmem:[%s2408] sm:$0xff] %vm1798, 0.0
  %2410 = vst.msk [vmem:[%s2408 + $0x8] sm:$0x3] %vm2404, 0.0
  %2411 = vst.msk [vmem:[%s2408 + $0xa0] sm:$0xff] %vm1798, 0.0
  %2412 = vst.msk [vmem:[%s2408 + $0xa8] sm:$0x3] %vm2404, 0.0
  %s2413 = scalar_lea.vmem [#allocation3], 16
  %vm2414 = vcmask 57344
  %2415 = vst.msk [vmem:[%s2413] sm:$0x1] %vm2414, 0.0
  %2416 = vst.msk [vmem:[%s2413 + $0x10] sm:$0x1] %vm2414, 0.0
  %2417 = vst.msk [vmem:[%s2413 + $0x20] sm:$0x1] %vm2414, 0.0
  %2418 = vst.msk [vmem:[%s2413 + $0x30] sm:$0x1] %vm2414, 0.0
  %2419 = vst.msk [vmem:[%s2413 + $0x40] sm:$0x1] %vm2414, 0.0
  %2420 = vst.msk [vmem:[%s2413 + $0x50] sm:$0x1] %vm2414, 0.0
  %2421 = vst.msk [vmem:[%s2413 + $0x60] sm:$0x1] %vm2414, 0.0
  %2422 = vst.msk [vmem:[%s2413 + $0x70] sm:$0x1] %vm2414, 0.0
  %2423 = vst.msk [vmem:[%s2413 + $0xa0] sm:$0x1] %vm2414, 0.0
  %2424 = vst.msk [vmem:[%s2413 + $0xb0] sm:$0x1] %vm2414, 0.0
  %2425 = vst.msk [vmem:[%s2413 + $0xc0] sm:$0x1] %vm2414, 0.0
  %2426 = vst.msk [vmem:[%s2413 + $0xd0] sm:$0x1] %vm2414, 0.0
  %2427 = vst.msk [vmem:[%s2413 + $0xe0] sm:$0x1] %vm2414, 0.0
  %2428 = vst.msk [vmem:[%s2413 + $0xf0] sm:$0x1] %vm2414, 0.0
  %2429 = vst.msk [vmem:[%s2413 + $0x100] sm:$0x1] %vm2414, 0.0
  %2430 = vst.msk [vmem:[%s2413 + $0x110] sm:$0x1] %vm2414, 0.0
  %2431 = vst.msk [vmem:[%s2413 + $0x9] sm:$0x1] %vm2414, 0.0
  %2432 = vst.msk [vmem:[%s2413 + $0x19] sm:$0x1] %vm2414, 0.0
  %2433 = vst.msk [vmem:[%s2413 + $0x29] sm:$0x1] %vm2414, 0.0
  %2434 = vst.msk [vmem:[%s2413 + $0x39] sm:$0x1] %vm2414, 0.0
  %2435 = vst.msk [vmem:[%s2413 + $0x49] sm:$0x1] %vm2414, 0.0
  %2436 = vst.msk [vmem:[%s2413 + $0x59] sm:$0x1] %vm2414, 0.0
  %2437 = vst.msk [vmem:[%s2413 + $0x69] sm:$0x1] %vm2414, 0.0
  %2438 = vst.msk [vmem:[%s2413 + $0x79] sm:$0x1] %vm2414, 0.0
  %2439 = vst.msk [vmem:[%s2413 + $0xa9] sm:$0x1] %vm2414, 0.0
  %2440 = vst.msk [vmem:[%s2413 + $0xb9] sm:$0x1] %vm2414, 0.0
  %2441 = vst.msk [vmem:[%s2413 + $0xc9] sm:$0x1] %vm2414, 0.0
  %2442 = vst.msk [vmem:[%s2413 + $0xd9] sm:$0x1] %vm2414, 0.0
  %2443 = vst.msk [vmem:[%s2413 + $0xe9] sm:$0x1] %vm2414, 0.0
  %2444 = vst.msk [vmem:[%s2413 + $0xf9] sm:$0x1] %vm2414, 0.0
  %2445 = vst.msk [vmem:[%s2413 + $0x109] sm:$0x1] %vm2414, 0.0
  %2446 = vst.msk [vmem:[%s2413 + $0x119] sm:$0x1] %vm2414, 0.0
  %2447 = vst.msk [vmem:[%s2413 + $0x1] sm:$0xff] %vm1798, %v2387
  %2448 = vst.msk [vmem:[%s2413 + $0x11] sm:$0xff] %vm1798, %v2388
  %2449 = vst.msk [vmem:[%s2413 + $0x21] sm:$0xff] %vm1798, %v2389
  %2450 = vst.msk [vmem:[%s2413 + $0x31] sm:$0xff] %vm1798, %v2390
  %2451 = vst.msk [vmem:[%s2413 + $0x41] sm:$0xff] %vm1798, %v2391
  %2452 = vst.msk [vmem:[%s2413 + $0x51] sm:$0xff] %vm1798, %v2392
  %2453 = vst.msk [vmem:[%s2413 + $0x61] sm:$0xff] %vm1798, %v2393
  %2454 = vst.msk [vmem:[%s2413 + $0x71] sm:$0xff] %vm1798, %v2394
  %2455 = vst.msk [vmem:[%s2413 + $0xa1] sm:$0xff] %vm1798, %v2395
  %2456 = vst.msk [vmem:[%s2413 + $0xb1] sm:$0xff] %vm1798, %v2396
  %2457 = vst.msk [vmem:[%s2413 + $0xc1] sm:$0xff] %vm1798, %v2397
  %2458 = vst.msk [vmem:[%s2413 + $0xd1] sm:$0xff] %vm1798, %v2398
  %2459 = vst.msk [vmem:[%s2413 + $0xe1] sm:$0xff] %vm1798, %v2399
  %2460 = vst.msk [vmem:[%s2413 + $0xf1] sm:$0xff] %vm1798, %v2400
  %2461 = vst.msk [vmem:[%s2413 + $0x101] sm:$0xff] %vm1798, %v2401
  %2462 = vst.msk [vmem:[%s2413 + $0x111] sm:$0xff] %vm1798, %v2402
  %v2463 = vld [vmem:[#allocation3] sm:$0xff]
  %v2464 = vld [vmem:[#allocation3 + $0x10] sm:$0xff]
  %v2465 = vld [vmem:[#allocation3 + $0x20] sm:$0xff]
  %v2466 = vld [vmem:[#allocation3 + $0x30] sm:$0xff]
  %v2467 = vld [vmem:[#allocation3 + $0x40] sm:$0xff]
  %v2468 = vld [vmem:[#allocation3 + $0x50] sm:$0xff]
  %v2469 = vld [vmem:[#allocation3 + $0x60] sm:$0xff]
  %v2470 = vld [vmem:[#allocation3 + $0x70] sm:$0xff]
  %v2471 = vld [vmem:[#allocation3 + $0xa0] sm:$0xff]
  %v2472 = vld [vmem:[#allocation3 + $0xb0] sm:$0xff]
  %v2473 = vld [vmem:[#allocation3 + $0xc0] sm:$0xff]
  %v2474 = vld [vmem:[#allocation3 + $0xd0] sm:$0xff]
  %v2475 = vld [vmem:[#allocation3 + $0xe0] sm:$0xff]
  %v2476 = vld [vmem:[#allocation3 + $0xf0] sm:$0xff]
  %v2477 = vld [vmem:[#allocation3 + $0x100] sm:$0xff]
  %v2478 = vld [vmem:[#allocation3 + $0x110] sm:$0xff]
  %v2479 = vld [vmem:[#allocation3 + $0x1] sm:$0xff]
  %v2480 = vld [vmem:[#allocation3 + $0x11] sm:$0xff]
  %v2481 = vld [vmem:[#allocation3 + $0x21] sm:$0xff]
  %v2482 = vld [vmem:[#allocation3 + $0x31] sm:$0xff]
  %v2483 = vld [vmem:[#allocation3 + $0x41] sm:$0xff]
  %v2484 = vld [vmem:[#allocation3 + $0x51] sm:$0xff]
  %v2485 = vld [vmem:[#allocation3 + $0x61] sm:$0xff]
  %v2486 = vld [vmem:[#allocation3 + $0x71] sm:$0xff]
  %v2487 = vld [vmem:[#allocation3 + $0xa1] sm:$0xff]
  %v2488 = vld [vmem:[#allocation3 + $0xb1] sm:$0xff]
  %v2489 = vld [vmem:[#allocation3 + $0xc1] sm:$0xff]
  %v2490 = vld [vmem:[#allocation3 + $0xd1] sm:$0xff]
  %v2491 = vld [vmem:[#allocation3 + $0xe1] sm:$0xff]
  %v2492 = vld [vmem:[#allocation3 + $0xf1] sm:$0xff]
  %v2493 = vld [vmem:[#allocation3 + $0x101] sm:$0xff]
  %v2494 = vld [vmem:[#allocation3 + $0x111] sm:$0xff]
  %v2495 = vld [vmem:[#allocation3 + $0x2] sm:$0xff]
  %v2496 = vld [vmem:[#allocation3 + $0x12] sm:$0xff]
  %v2497 = vld [vmem:[#allocation3 + $0x22] sm:$0xff]
  %v2498 = vld [vmem:[#allocation3 + $0x32] sm:$0xff]
  %v2499 = vld [vmem:[#allocation3 + $0x42] sm:$0xff]
  %v2500 = vld [vmem:[#allocation3 + $0x52] sm:$0xff]
  %v2501 = vld [vmem:[#allocation3 + $0x62] sm:$0xff]
  %v2502 = vld [vmem:[#allocation3 + $0x72] sm:$0xff]
  %v2503 = vld [vmem:[#allocation3 + $0xa2] sm:$0xff]
  %v2504 = vld [vmem:[#allocation3 + $0xb2] sm:$0xff]
  %v2505 = vld [vmem:[#allocation3 + $0xc2] sm:$0xff]
  %v2506 = vld [vmem:[#allocation3 + $0xd2] sm:$0xff]
  %v2507 = vld [vmem:[#allocation3 + $0xe2] sm:$0xff]
  %v2508 = vld [vmem:[#allocation3 + $0xf2] sm:$0xff]
  %v2509 = vld [vmem:[#allocation3 + $0x102] sm:$0xff]
  %v2510 = vld [vmem:[#allocation3 + $0x112] sm:$0xff]
  %v2511 = vld [vmem:[%s2413] sm:$0xff]
  %v2512 = vld [vmem:[%s2413 + $0x10] sm:$0xff]
  %v2513 = vld [vmem:[%s2413 + $0x20] sm:$0xff]
  %v2514 = vld [vmem:[%s2413 + $0x30] sm:$0xff]
  %v2515 = vld [vmem:[%s2413 + $0x40] sm:$0xff]
  %v2516 = vld [vmem:[%s2413 + $0x50] sm:$0xff]
  %v2517 = vld [vmem:[%s2413 + $0x60] sm:$0xff]
  %v2518 = vld [vmem:[%s2413 + $0x70] sm:$0xff]
  %v2519 = vld [vmem:[%s2413 + $0xa0] sm:$0xff]
  %v2520 = vld [vmem:[%s2413 + $0xb0] sm:$0xff]
  %v2521 = vld [vmem:[%s2413 + $0xc0] sm:$0xff]
  %v2522 = vld [vmem:[%s2413 + $0xd0] sm:$0xff]
  %v2523 = vld [vmem:[%s2413 + $0xe0] sm:$0xff]
  %v2524 = vld [vmem:[%s2413 + $0xf0] sm:$0xff]
  %v2525 = vld [vmem:[%s2413 + $0x100] sm:$0xff]
  %v2526 = vld [vmem:[%s2413 + $0x110] sm:$0xff]
  %v2527 = vld [vmem:[%s2413 + $0x1] sm:$0xff]
  %v2528 = vld [vmem:[%s2413 + $0x11] sm:$0xff]
  %v2529 = vld [vmem:[%s2413 + $0x21] sm:$0xff]
  %v2530 = vld [vmem:[%s2413 + $0x31] sm:$0xff]
  %v2531 = vld [vmem:[%s2413 + $0x41] sm:$0xff]
  %v2532 = vld [vmem:[%s2413 + $0x51] sm:$0xff]
  %v2533 = vld [vmem:[%s2413 + $0x61] sm:$0xff]
  %v2534 = vld [vmem:[%s2413 + $0x71] sm:$0xff]
  %v2535 = vld [vmem:[%s2413 + $0xa1] sm:$0xff]
  %v2536 = vld [vmem:[%s2413 + $0xb1] sm:$0xff]
  %v2537 = vld [vmem:[%s2413 + $0xc1] sm:$0xff]
  %v2538 = vld [vmem:[%s2413 + $0xd1] sm:$0xff]
  %v2539 = vld [vmem:[%s2413 + $0xe1] sm:$0xff]
  %v2540 = vld [vmem:[%s2413 + $0xf1] sm:$0xff]
  %v2541 = vld [vmem:[%s2413 + $0x101] sm:$0xff]
  %v2542 = vld [vmem:[%s2413 + $0x111] sm:$0xff]
  %v2543 = vld [vmem:[%s2413 + $0x2] sm:$0xff]
  %v2544 = vld [vmem:[%s2413 + $0x12] sm:$0xff]
  %v2545 = vld [vmem:[%s2413 + $0x22] sm:$0xff]
  %v2546 = vld [vmem:[%s2413 + $0x32] sm:$0xff]
  %v2547 = vld [vmem:[%s2413 + $0x42] sm:$0xff]
  %v2548 = vld [vmem:[%s2413 + $0x52] sm:$0xff]
  %v2549 = vld [vmem:[%s2413 + $0x62] sm:$0xff]
  %v2550 = vld [vmem:[%s2413 + $0x72] sm:$0xff]
  %v2551 = vld [vmem:[%s2413 + $0xa2] sm:$0xff]
  %v2552 = vld [vmem:[%s2413 + $0xb2] sm:$0xff]
  %v2553 = vld [vmem:[%s2413 + $0xc2] sm:$0xff]
  %v2554 = vld [vmem:[%s2413 + $0xd2] sm:$0xff]
  %v2555 = vld [vmem:[%s2413 + $0xe2] sm:$0xff]
  %v2556 = vld [vmem:[%s2413 + $0xf2] sm:$0xff]
  %v2557 = vld [vmem:[%s2413 + $0x102] sm:$0xff]
  %v2558 = vld [vmem:[%s2413 + $0x112] sm:$0xff]
  %s2559 = scalar_lea.vmem [#allocation3], 32
  %v2560 = vld [vmem:[%s2559] sm:$0xff]
  %v2561 = vld [vmem:[%s2559 + $0x10] sm:$0xff]
  %v2562 = vld [vmem:[%s2559 + $0x20] sm:$0xff]
  %v2563 = vld [vmem:[%s2559 + $0x30] sm:$0xff]
  %v2564 = vld [vmem:[%s2559 + $0x40] sm:$0xff]
  %v2565 = vld [vmem:[%s2559 + $0x50] sm:$0xff]
  %v2566 = vld [vmem:[%s2559 + $0x60] sm:$0xff]
  %v2567 = vld [vmem:[%s2559 + $0x70] sm:$0xff]
  %v2568 = vld [vmem:[%s2559 + $0xa0] sm:$0xff]
  %v2569 = vld [vmem:[%s2559 + $0xb0] sm:$0xff]
  %v2570 = vld [vmem:[%s2559 + $0xc0] sm:$0xff]
  %v2571 = vld [vmem:[%s2559 + $0xd0] sm:$0xff]
  %v2572 = vld [vmem:[%s2559 + $0xe0] sm:$0xff]
  %v2573 = vld [vmem:[%s2559 + $0xf0] sm:$0xff]
  %v2574 = vld [vmem:[%s2559 + $0x100] sm:$0xff]
  %v2575 = vld [vmem:[%s2559 + $0x110] sm:$0xff]
  %v2576 = vld [vmem:[%s2559 + $0x1] sm:$0xff]
  %v2577 = vld [vmem:[%s2559 + $0x11] sm:$0xff]
  %v2578 = vld [vmem:[%s2559 + $0x21] sm:$0xff]
  %v2579 = vld [vmem:[%s2559 + $0x31] sm:$0xff]
  %v2580 = vld [vmem:[%s2559 + $0x41] sm:$0xff]
  %v2581 = vld [vmem:[%s2559 + $0x51] sm:$0xff]
  %v2582 = vld [vmem:[%s2559 + $0x61] sm:$0xff]
  %v2583 = vld [vmem:[%s2559 + $0x71] sm:$0xff]
  %v2584 = vld [vmem:[%s2559 + $0xa1] sm:$0xff]
  %v2585 = vld [vmem:[%s2559 + $0xb1] sm:$0xff]
  %v2586 = vld [vmem:[%s2559 + $0xc1] sm:$0xff]
  %v2587 = vld [vmem:[%s2559 + $0xd1] sm:$0xff]
  %v2588 = vld [vmem:[%s2559 + $0xe1] sm:$0xff]
  %v2589 = vld [vmem:[%s2559 + $0xf1] sm:$0xff]
  %v2590 = vld [vmem:[%s2559 + $0x101] sm:$0xff]
  %v2591 = vld [vmem:[%s2559 + $0x111] sm:$0xff]
  %v2592 = vld [vmem:[%s2559 + $0x2] sm:$0xff]
  %v2593 = vld [vmem:[%s2559 + $0x12] sm:$0xff]
  %v2594 = vld [vmem:[%s2559 + $0x22] sm:$0xff]
  %v2595 = vld [vmem:[%s2559 + $0x32] sm:$0xff]
  %v2596 = vld [vmem:[%s2559 + $0x42] sm:$0xff]
  %v2597 = vld [vmem:[%s2559 + $0x52] sm:$0xff]
  %v2598 = vld [vmem:[%s2559 + $0x62] sm:$0xff]
  %v2599 = vld [vmem:[%s2559 + $0x72] sm:$0xff]
  %v2600 = vld [vmem:[%s2559 + $0xa2] sm:$0xff]
  %v2601 = vld [vmem:[%s2559 + $0xb2] sm:$0xff]
  %v2602 = vld [vmem:[%s2559 + $0xc2] sm:$0xff]
  %v2603 = vld [vmem:[%s2559 + $0xd2] sm:$0xff]
  %v2604 = vld [vmem:[%s2559 + $0xe2] sm:$0xff]
  %v2605 = vld [vmem:[%s2559 + $0xf2] sm:$0xff]
  %v2606 = vld [vmem:[%s2559 + $0x102] sm:$0xff]
  %v2607 = vld [vmem:[%s2559 + $0x112] sm:$0xff]
  %2624 = vrot.lane.b32.xlu0 %v2479, 8
  %v2625 = vpop.permute.xlu0 %2624
  %2626 = vrot.lane.b32.xlu0 %v2480, 8
  %v2627 = vpop.permute.xlu0 %2626
  %2628 = vrot.lane.b32.xlu0 %v2481, 8
  %v2629 = vpop.permute.xlu0 %2628
  %2630 = vrot.lane.b32.xlu0 %v2482, 8
  %v2631 = vpop.permute.xlu0 %2630
  %2632 = vrot.lane.b32.xlu0 %v2483, 8
  %v2633 = vpop.permute.xlu0 %2632
  %2634 = vrot.lane.b32.xlu0 %v2484, 8
  %v2635 = vpop.permute.xlu0 %2634
  %2636 = vrot.lane.b32.xlu0 %v2485, 8
  %v2637 = vpop.permute.xlu0 %2636
  %2638 = vrot.lane.b32.xlu0 %v2486, 8
  %v2639 = vpop.permute.xlu0 %2638
  %2640 = vrot.lane.b32.xlu0 %v2487, 8
  %v2641 = vpop.permute.xlu0 %2640
  %2642 = vrot.lane.b32.xlu0 %v2488, 8
  %v2643 = vpop.permute.xlu0 %2642
  %2644 = vrot.lane.b32.xlu0 %v2489, 8
  %v2645 = vpop.permute.xlu0 %2644
  %2646 = vrot.lane.b32.xlu0 %v2490, 8
  %v2647 = vpop.permute.xlu0 %2646
  %2648 = vrot.lane.b32.xlu0 %v2491, 8
  %v2649 = vpop.permute.xlu0 %2648
  %2650 = vrot.lane.b32.xlu0 %v2492, 8
  %v2651 = vpop.permute.xlu0 %2650
  %2652 = vrot.lane.b32.xlu0 %v2493, 8
  %v2653 = vpop.permute.xlu0 %2652
  %2654 = vrot.lane.b32.xlu0 %v2494, 8
  %v2655 = vpop.permute.xlu0 %2654
  %2688 = vrot.lane.b32.xlu0 %v2495, 16
  %v2689 = vpop.permute.xlu0 %2688
  %2690 = vrot.lane.b32.xlu0 %v2496, 16
  %v2691 = vpop.permute.xlu0 %2690
  %2692 = vrot.lane.b32.xlu0 %v2497, 16
  %v2693 = vpop.permute.xlu0 %2692
  %2694 = vrot.lane.b32.xlu0 %v2498, 16
  %v2695 = vpop.permute.xlu0 %2694
  %2696 = vrot.lane.b32.xlu0 %v2499, 16
  %v2697 = vpop.permute.xlu0 %2696
  %2698 = vrot.lane.b32.xlu0 %v2500, 16
  %v2699 = vpop.permute.xlu0 %2698
  %2700 = vrot.lane.b32.xlu0 %v2501, 16
  %v2701 = vpop.permute.xlu0 %2700
  %2702 = vrot.lane.b32.xlu0 %v2502, 16
  %v2703 = vpop.permute.xlu0 %2702
  %2704 = vrot.lane.b32.xlu0 %v2503, 16
  %v2705 = vpop.permute.xlu0 %2704
  %2706 = vrot.lane.b32.xlu0 %v2504, 16
  %v2707 = vpop.permute.xlu0 %2706
  %2708 = vrot.lane.b32.xlu0 %v2505, 16
  %v2709 = vpop.permute.xlu0 %2708
  %2710 = vrot.lane.b32.xlu0 %v2506, 16
  %v2711 = vpop.permute.xlu0 %2710
  %2712 = vrot.lane.b32.xlu0 %v2507, 16
  %v2713 = vpop.permute.xlu0 %2712
  %2714 = vrot.lane.b32.xlu0 %v2508, 16
  %v2715 = vpop.permute.xlu0 %2714
  %2716 = vrot.lane.b32.xlu0 %v2509, 16
  %v2717 = vpop.permute.xlu0 %2716
  %2718 = vrot.lane.b32.xlu0 %v2510, 16
  %v2719 = vpop.permute.xlu0 %2718
  %2752 = vrot.lane.b32.xlu0 %v2511, 24
  %v2753 = vpop.permute.xlu0 %2752
  %2754 = vrot.lane.b32.xlu0 %v2512, 24
  %v2755 = vpop.permute.xlu0 %2754
  %2756 = vrot.lane.b32.xlu0 %v2513, 24
  %v2757 = vpop.permute.xlu0 %2756
  %2758 = vrot.lane.b32.xlu0 %v2514, 24
  %v2759 = vpop.permute.xlu0 %2758
  %2760 = vrot.lane.b32.xlu0 %v2515, 24
  %v2761 = vpop.permute.xlu0 %2760
  %2762 = vrot.lane.b32.xlu0 %v2516, 24
  %v2763 = vpop.permute.xlu0 %2762
  %2764 = vrot.lane.b32.xlu0 %v2517, 24
  %v2765 = vpop.permute.xlu0 %2764
  %2766 = vrot.lane.b32.xlu0 %v2518, 24
  %v2767 = vpop.permute.xlu0 %2766
  %2768 = vrot.lane.b32.xlu0 %v2519, 24
  %v2769 = vpop.permute.xlu0 %2768
  %2770 = vrot.lane.b32.xlu0 %v2520, 24
  %v2771 = vpop.permute.xlu0 %2770
  %2772 = vrot.lane.b32.xlu0 %v2521, 24
  %v2773 = vpop.permute.xlu0 %2772
  %2774 = vrot.lane.b32.xlu0 %v2522, 24
  %v2775 = vpop.permute.xlu0 %2774
  %2776 = vrot.lane.b32.xlu0 %v2523, 24
  %v2777 = vpop.permute.xlu0 %2776
  %2778 = vrot.lane.b32.xlu0 %v2524, 24
  %v2779 = vpop.permute.xlu0 %2778
  %2780 = vrot.lane.b32.xlu0 %v2525, 24
  %v2781 = vpop.permute.xlu0 %2780
  %2782 = vrot.lane.b32.xlu0 %v2526, 24
  %v2783 = vpop.permute.xlu0 %2782
  %2816 = vrot.lane.b32.xlu0 %v2527, 32
  %v2817 = vpop.permute.xlu0 %2816
  %2818 = vrot.lane.b32.xlu0 %v2528, 32
  %v2819 = vpop.permute.xlu0 %2818
  %2820 = vrot.lane.b32.xlu0 %v2529, 32
  %v2821 = vpop.permute.xlu0 %2820
  %2822 = vrot.lane.b32.xlu0 %v2530, 32
  %v2823 = vpop.permute.xlu0 %2822
  %2824 = vrot.lane.b32.xlu0 %v2531, 32
  %v2825 = vpop.permute.xlu0 %2824
  %2826 = vrot.lane.b32.xlu0 %v2532, 32
  %v2827 = vpop.permute.xlu0 %2826
  %2828 = vrot.lane.b32.xlu0 %v2533, 32
  %v2829 = vpop.permute.xlu0 %2828
  %2830 = vrot.lane.b32.xlu0 %v2534, 32
  %v2831 = vpop.permute.xlu0 %2830
  %2832 = vrot.lane.b32.xlu0 %v2535, 32
  %v2833 = vpop.permute.xlu0 %2832
  %2834 = vrot.lane.b32.xlu0 %v2536, 32
  %v2835 = vpop.permute.xlu0 %2834
  %2836 = vrot.lane.b32.xlu0 %v2537, 32
  %v2837 = vpop.permute.xlu0 %2836
  %2838 = vrot.lane.b32.xlu0 %v2538, 32
  %v2839 = vpop.permute.xlu0 %2838
  %2840 = vrot.lane.b32.xlu0 %v2539, 32
  %v2841 = vpop.permute.xlu0 %2840
  %2842 = vrot.lane.b32.xlu0 %v2540, 32
  %v2843 = vpop.permute.xlu0 %2842
  %2844 = vrot.lane.b32.xlu0 %v2541, 32
  %v2845 = vpop.permute.xlu0 %2844
  %2846 = vrot.lane.b32.xlu0 %v2542, 32
  %v2847 = vpop.permute.xlu0 %2846
  %2880 = vrot.lane.b32.xlu0 %v2543, 40
  %v2881 = vpop.permute.xlu0 %2880
  %2882 = vrot.lane.b32.xlu0 %v2544, 40
  %v2883 = vpop.permute.xlu0 %2882
  %2884 = vrot.lane.b32.xlu0 %v2545, 40
  %v2885 = vpop.permute.xlu0 %2884
  %2886 = vrot.lane.b32.xlu0 %v2546, 40
  %v2887 = vpop.permute.xlu0 %2886
  %2888 = vrot.lane.b32.xlu0 %v2547, 40
  %v2889 = vpop.permute.xlu0 %2888
  %2890 = vrot.lane.b32.xlu0 %v2548, 40
  %v2891 = vpop.permute.xlu0 %2890
  %2892 = vrot.lane.b32.xlu0 %v2549, 40
  %v2893 = vpop.permute.xlu0 %2892
  %2894 = vrot.lane.b32.xlu0 %v2550, 40
  %v2895 = vpop.permute.xlu0 %2894
  %2896 = vrot.lane.b32.xlu0 %v2551, 40
  %v2897 = vpop.permute.xlu0 %2896
  %2898 = vrot.lane.b32.xlu0 %v2552, 40
  %v2899 = vpop.permute.xlu0 %2898
  %2900 = vrot.lane.b32.xlu0 %v2553, 40
  %v2901 = vpop.permute.xlu0 %2900
  %2902 = vrot.lane.b32.xlu0 %v2554, 40
  %v2903 = vpop.permute.xlu0 %2902
  %2904 = vrot.lane.b32.xlu0 %v2555, 40
  %v2905 = vpop.permute.xlu0 %2904
  %2906 = vrot.lane.b32.xlu0 %v2556, 40
  %v2907 = vpop.permute.xlu0 %2906
  %2908 = vrot.lane.b32.xlu0 %v2557, 40
  %v2909 = vpop.permute.xlu0 %2908
  %2910 = vrot.lane.b32.xlu0 %v2558, 40
  %v2911 = vpop.permute.xlu0 %2910
  %2944 = vrot.lane.b32.xlu0 %v2560, 48
  %v2945 = vpop.permute.xlu0 %2944
  %2946 = vrot.lane.b32.xlu0 %v2561, 48
  %v2947 = vpop.permute.xlu0 %2946
  %2948 = vrot.lane.b32.xlu0 %v2562, 48
  %v2949 = vpop.permute.xlu0 %2948
  %2950 = vrot.lane.b32.xlu0 %v2563, 48
  %v2951 = vpop.permute.xlu0 %2950
  %2952 = vrot.lane.b32.xlu0 %v2564, 48
  %v2953 = vpop.permute.xlu0 %2952
  %2954 = vrot.lane.b32.xlu0 %v2565, 48
  %v2955 = vpop.permute.xlu0 %2954
  %2956 = vrot.lane.b32.xlu0 %v2566, 48
  %v2957 = vpop.permute.xlu0 %2956
  %2958 = vrot.lane.b32.xlu0 %v2567, 48
  %v2959 = vpop.permute.xlu0 %2958
  %2960 = vrot.lane.b32.xlu0 %v2568, 48
  %v2961 = vpop.permute.xlu0 %2960
  %2962 = vrot.lane.b32.xlu0 %v2569, 48
  %v2963 = vpop.permute.xlu0 %2962
  %2964 = vrot.lane.b32.xlu0 %v2570, 48
  %v2965 = vpop.permute.xlu0 %2964
  %2966 = vrot.lane.b32.xlu0 %v2571, 48
  %v2967 = vpop.permute.xlu0 %2966
  %2968 = vrot.lane.b32.xlu0 %v2572, 48
  %v2969 = vpop.permute.xlu0 %2968
  %2970 = vrot.lane.b32.xlu0 %v2573, 48
  %v2971 = vpop.permute.xlu0 %2970
  %2972 = vrot.lane.b32.xlu0 %v2574, 48
  %v2973 = vpop.permute.xlu0 %2972
  %2974 = vrot.lane.b32.xlu0 %v2575, 48
  %v2975 = vpop.permute.xlu0 %2974
  %3008 = vrot.lane.b32.xlu0 %v2576, 56
  %v3009 = vpop.permute.xlu0 %3008
  %3010 = vrot.lane.b32.xlu0 %v2577, 56
  %v3011 = vpop.permute.xlu0 %3010
  %3012 = vrot.lane.b32.xlu0 %v2578, 56
  %v3013 = vpop.permute.xlu0 %3012
  %3014 = vrot.lane.b32.xlu0 %v2579, 56
  %v3015 = vpop.permute.xlu0 %3014
  %3016 = vrot.lane.b32.xlu0 %v2580, 56
  %v3017 = vpop.permute.xlu0 %3016
  %3018 = vrot.lane.b32.xlu0 %v2581, 56
  %v3019 = vpop.permute.xlu0 %3018
  %3020 = vrot.lane.b32.xlu0 %v2582, 56
  %v3021 = vpop.permute.xlu0 %3020
  %3022 = vrot.lane.b32.xlu0 %v2583, 56
  %v3023 = vpop.permute.xlu0 %3022
  %3024 = vrot.lane.b32.xlu0 %v2584, 56
  %v3025 = vpop.permute.xlu0 %3024
  %3026 = vrot.lane.b32.xlu0 %v2585, 56
  %v3027 = vpop.permute.xlu0 %3026
  %3028 = vrot.lane.b32.xlu0 %v2586, 56
  %v3029 = vpop.permute.xlu0 %3028
  %3030 = vrot.lane.b32.xlu0 %v2587, 56
  %v3031 = vpop.permute.xlu0 %3030
  %3032 = vrot.lane.b32.xlu0 %v2588, 56
  %v3033 = vpop.permute.xlu0 %3032
  %3034 = vrot.lane.b32.xlu0 %v2589, 56
  %v3035 = vpop.permute.xlu0 %3034
  %3036 = vrot.lane.b32.xlu0 %v2590, 56
  %v3037 = vpop.permute.xlu0 %3036
  %3038 = vrot.lane.b32.xlu0 %v2591, 56
  %v3039 = vpop.permute.xlu0 %3038
  %3072 = vrot.lane.b32.xlu0 %v2592, 64
  %v3073 = vpop.permute.xlu0 %3072
  %3074 = vrot.lane.b32.xlu0 %v2593, 64
  %v3075 = vpop.permute.xlu0 %3074
  %3076 = vrot.lane.b32.xlu0 %v2594, 64
  %v3077 = vpop.permute.xlu0 %3076
  %3078 = vrot.lane.b32.xlu0 %v2595, 64
  %v3079 = vpop.permute.xlu0 %3078
  %3080 = vrot.lane.b32.xlu0 %v2596, 64
  %v3081 = vpop.permute.xlu0 %3080
  %3082 = vrot.lane.b32.xlu0 %v2597, 64
  %v3083 = vpop.permute.xlu0 %3082
  %3084 = vrot.lane.b32.xlu0 %v2598, 64
  %v3085 = vpop.permute.xlu0 %3084
  %3086 = vrot.lane.b32.xlu0 %v2599, 64
  %v3087 = vpop.permute.xlu0 %3086
  %3088 = vrot.lane.b32.xlu0 %v2600, 64
  %v3089 = vpop.permute.xlu0 %3088
  %3090 = vrot.lane.b32.xlu0 %v2601, 64
  %v3091 = vpop.permute.xlu0 %3090
  %3092 = vrot.lane.b32.xlu0 %v2602, 64
  %v3093 = vpop.permute.xlu0 %3092
  %3094 = vrot.lane.b32.xlu0 %v2603, 64
  %v3095 = vpop.permute.xlu0 %3094
  %3096 = vrot.lane.b32.xlu0 %v2604, 64
  %v3097 = vpop.permute.xlu0 %3096
  %3098 = vrot.lane.b32.xlu0 %v2605, 64
  %v3099 = vpop.permute.xlu0 %3098
  %3100 = vrot.lane.b32.xlu0 %v2606, 64
  %v3101 = vpop.permute.xlu0 %3100
  %3102 = vrot.lane.b32.xlu0 %v2607, 64
  %v3103 = vpop.permute.xlu0 %3102
  %v3120 = vsel %vm1798, %v2463, %v2625
  %v3121 = vsel %vm1798, %v2464, %v2627
  %v3122 = vsel %vm1798, %v2465, %v2629
  %v3123 = vsel %vm1798, %v2466, %v2631
  %v3124 = vsel %vm1798, %v2467, %v2633
  %v3125 = vsel %vm1798, %v2468, %v2635
  %v3126 = vsel %vm1798, %v2469, %v2637
  %v3127 = vsel %vm1798, %v2470, %v2639
  %v3128 = vsel %vm1798, %v2471, %v2641
  %v3129 = vsel %vm1798, %v2472, %v2643
  %v3130 = vsel %vm1798, %v2473, %v2645
  %v3131 = vsel %vm1798, %v2474, %v2647
  %v3132 = vsel %vm1798, %v2475, %v2649
  %v3133 = vsel %vm1798, %v2476, %v2651
  %v3134 = vsel %vm1798, %v2477, %v2653
  %v3135 = vsel %vm1798, %v2478, %v2655
  %v3136 = vsel %vm1832, %v3120, %v2689
  %v3137 = vsel %vm1832, %v3121, %v2691
  %v3138 = vsel %vm1832, %v3122, %v2693
  %v3139 = vsel %vm1832, %v3123, %v2695
  %v3140 = vsel %vm1832, %v3124, %v2697
  %v3141 = vsel %vm1832, %v3125, %v2699
  %v3142 = vsel %vm1832, %v3126, %v2701
  %v3143 = vsel %vm1832, %v3127, %v2703
  %v3144 = vsel %vm1832, %v3128, %v2705
  %v3145 = vsel %vm1832, %v3129, %v2707
  %v3146 = vsel %vm1832, %v3130, %v2709
  %v3147 = vsel %vm1832, %v3131, %v2711
  %v3148 = vsel %vm1832, %v3132, %v2713
  %v3149 = vsel %vm1832, %v3133, %v2715
  %v3150 = vsel %vm1832, %v3134, %v2717
  %v3151 = vsel %vm1832, %v3135, %v2719
  %v3152 = vsel %vm1866, %v3136, %v2753
  %v3153 = vsel %vm1866, %v3137, %v2755
  %v3154 = vsel %vm1866, %v3138, %v2757
  %v3155 = vsel %vm1866, %v3139, %v2759
  %v3156 = vsel %vm1866, %v3140, %v2761
  %v3157 = vsel %vm1866, %v3141, %v2763
  %v3158 = vsel %vm1866, %v3142, %v2765
  %v3159 = vsel %vm1866, %v3143, %v2767
  %v3160 = vsel %vm1866, %v3144, %v2769
  %v3161 = vsel %vm1866, %v3145, %v2771
  %v3162 = vsel %vm1866, %v3146, %v2773
  %v3163 = vsel %vm1866, %v3147, %v2775
  %v3164 = vsel %vm1866, %v3148, %v2777
  %v3165 = vsel %vm1866, %v3149, %v2779
  %v3166 = vsel %vm1866, %v3150, %v2781
  %v3167 = vsel %vm1866, %v3151, %v2783
  %v3168 = vsel %vm1900, %v3152, %v2817
  %v3169 = vsel %vm1900, %v3153, %v2819
  %v3170 = vsel %vm1900, %v3154, %v2821
  %v3171 = vsel %vm1900, %v3155, %v2823
  %v3172 = vsel %vm1900, %v3156, %v2825
  %v3173 = vsel %vm1900, %v3157, %v2827
  %v3174 = vsel %vm1900, %v3158, %v2829
  %v3175 = vsel %vm1900, %v3159, %v2831
  %v3176 = vsel %vm1900, %v3160, %v2833
  %v3177 = vsel %vm1900, %v3161, %v2835
  %v3178 = vsel %vm1900, %v3162, %v2837
  %v3179 = vsel %vm1900, %v3163, %v2839
  %v3180 = vsel %vm1900, %v3164, %v2841
  %v3181 = vsel %vm1900, %v3165, %v2843
  %v3182 = vsel %vm1900, %v3166, %v2845
  %v3183 = vsel %vm1900, %v3167, %v2847
  %vm3184 = vcmask 326656
  %v3185 = vsel %vm3184, %v3168, %v2881
  %v3186 = vsel %vm3184, %v3169, %v2883
  %v3187 = vsel %vm3184, %v3170, %v2885
  %v3188 = vsel %vm3184, %v3171, %v2887
  %v3189 = vsel %vm3184, %v3172, %v2889
  %v3190 = vsel %vm3184, %v3173, %v2891
  %v3191 = vsel %vm3184, %v3174, %v2893
  %v3192 = vsel %vm3184, %v3175, %v2895
  %v3193 = vsel %vm3184, %v3176, %v2897
  %v3194 = vsel %vm3184, %v3177, %v2899
  %v3195 = vsel %vm3184, %v3178, %v2901
  %v3196 = vsel %vm3184, %v3179, %v2903
  %v3197 = vsel %vm3184, %v3180, %v2905
  %v3198 = vsel %vm3184, %v3181, %v2907
  %v3199 = vsel %vm3184, %v3182, %v2909
  %v3200 = vsel %vm3184, %v3183, %v2911
  %vm3201 = vcmask 392192
  %v3202 = vsel %vm3201, %v3185, %v2945
  %v3203 = vsel %vm3201, %v3186, %v2947
  %v3204 = vsel %vm3201, %v3187, %v2949
  %v3205 = vsel %vm3201, %v3188, %v2951
  %v3206 = vsel %vm3201, %v3189, %v2953
  %v3207 = vsel %vm3201, %v3190, %v2955
  %v3208 = vsel %vm3201, %v3191, %v2957
  %v3209 = vsel %vm3201, %v3192, %v2959
  %v3210 = vsel %vm3201, %v3193, %v2961
  %v3211 = vsel %vm3201, %v3194, %v2963
  %v3212 = vsel %vm3201, %v3195, %v2965
  %v3213 = vsel %vm3201, %v3196, %v2967
  %v3214 = vsel %vm3201, %v3197, %v2969
  %v3215 = vsel %vm3201, %v3198, %v2971
  %v3216 = vsel %vm3201, %v3199, %v2973
  %v3217 = vsel %vm3201, %v3200, %v2975
  %vm3218 = vcmask 457728
  %v3219 = vsel %vm3218, %v3202, %v3009
  %v3220 = vsel %vm3218, %v3203, %v3011
  %v3221 = vsel %vm3218, %v3204, %v3013
  %v3222 = vsel %vm3218, %v3205, %v3015
  %v3223 = vsel %vm3218, %v3206, %v3017
  %v3224 = vsel %vm3218, %v3207, %v3019
  %v3225 = vsel %vm3218, %v3208, %v3021
  %v3226 = vsel %vm3218, %v3209, %v3023
  %v3227 = vsel %vm3218, %v3210, %v3025
  %v3228 = vsel %vm3218, %v3211, %v3027
  %v3229 = vsel %vm3218, %v3212, %v3029
  %v3230 = vsel %vm3218, %v3213, %v3031
  %v3231 = vsel %vm3218, %v3214, %v3033
  %v3232 = vsel %vm3218, %v3215, %v3035
  %v3233 = vsel %vm3218, %v3216, %v3037
  %v3234 = vsel %vm3218, %v3217, %v3039
  %vm3235 = vcmask 523264
  %v3236 = vsel %vm3235, %v3219, %v3073
  %v3237 = vsel %vm3235, %v3220, %v3075
  %v3238 = vsel %vm3235, %v3221, %v3077
  %v3239 = vsel %vm3235, %v3222, %v3079
  %v3240 = vsel %vm3235, %v3223, %v3081
  %v3241 = vsel %vm3235, %v3224, %v3083
  %v3242 = vsel %vm3235, %v3225, %v3085
  %v3243 = vsel %vm3235, %v3226, %v3087
  %v3244 = vsel %vm3235, %v3227, %v3089
  %v3245 = vsel %vm3235, %v3228, %v3091
  %v3246 = vsel %vm3235, %v3229, %v3093
  %v3247 = vsel %vm3235, %v3230, %v3095
  %v3248 = vsel %vm3235, %v3231, %v3097
  %v3249 = vsel %vm3235, %v3232, %v3099
  %v3250 = vsel %vm3235, %v3233, %v3101
  %v3251 = vsel %vm3235, %v3234, %v3103
  %v3252 = vld [vmem:[%s6] sm:$0xff]
  %vm3253 = vcmask 588800
  %v3255 = vsel %vm3253, %v3252, 0
  %v3258 = vsel %vm3253, %v3236, 0
  %v3261 = vsel %vm3253, %v3237, 0
  %v3264 = vsel %vm3253, %v3238, 0
  %v3267 = vsel %vm3253, %v3239, 0
  %v3270 = vsel %vm3253, %v3240, 0
  %v3273 = vsel %vm3253, %v3241, 0
  %v3276 = vsel %vm3253, %v3242, 0
  %v3279 = vsel %vm3253, %v3243, 0
  %v3282 = vsel %vm3253, %v3244, 0
  %v3285 = vsel %vm3253, %v3245, 0
  %v3288 = vsel %vm3253, %v3246, 0
  %v3291 = vsel %vm3253, %v3247, 0
  %v3294 = vsel %vm3253, %v3248, 0
  %v3297 = vsel %vm3253, %v3249, 0
  %v3300 = vsel %vm3253, %v3250, 0
  %v3303 = vsel %vm3253, %v3251, 0
  %3305 = vmatprep.subr.mxu0 0.0
  %3306 = vmatpush1.xpose.msra.mxu0 %v3258
  %3307 = vmatprep.subr.mxu0 0.0
  %3308 = vmatpush1.xpose.msra.mxu0 %v3261
  %3309 = vmatprep.subr.mxu0 0.0
  %3310 = vmatpush1.xpose.msra.mxu0 %v3264
  %3311 = vmatprep.subr.mxu0 0.0
  %3312 = vmatpush1.xpose.msra.mxu0 %v3267
  %3313 = vmatprep.subr.mxu0 0.0
  %3314 = vmatpush1.xpose.msra.mxu0 %v3270
  %3315 = vmatprep.subr.mxu0 0.0
  %3316 = vmatpush1.xpose.msra.mxu0 %v3273
  %3317 = vmatprep.subr.mxu0 0.0
  %3318 = vmatpush1.xpose.msra.mxu0 %v3276
  %3319 = vmatprep.subr.mxu0 0.0
  %3320 = vmatpush1.xpose.msra.mxu0 %v3279
  %3321 = vmatprep.subr.mxu0 0.0
  %3322 = vmatpush1.xpose.msra.mxu0 %v3282
  %3323 = vmatprep.subr.mxu0 0.0
  %3324 = vmatpush1.xpose.msra.mxu0 %v3285
  %3325 = vmatprep.subr.mxu0 0.0
  %3326 = vmatpush1.xpose.msra.mxu0 %v3288
  %3327 = vmatprep.subr.mxu0 0.0
  %3328 = vmatpush1.xpose.msra.mxu0 %v3291
  %3329 = vmatprep.subr.mxu0 0.0
  %3330 = vmatpush1.xpose.msra.mxu0 %v3294
  %3331 = vmatprep.subr.mxu0 0.0
  %3332 = vmatpush1.xpose.msra.mxu0 %v3297
  %3333 = vmatprep.subr.mxu0 0.0
  %3334 = vmatpush1.xpose.msra.mxu0 %v3300
  %3335 = vmatprep.subr.mxu0 0.0
  %3336 = vmatpush1.xpose.msra.mxu0 %v3303
  %3337 = vmatprep.subr.mxu0 0.0
  %3338 = vmatpush1.xpose.msra.mxu0 0.0
  %3339 = vmatprep.subr.mxu0 0.0
  %3340 = vmatpush1.xpose.msra.mxu0 0.0
  %3341 = vmatprep.subr.mxu0 0.0
  %3342 = vmatpush1.xpose.msra.mxu0 0.0
  %3343 = vmatprep.subr.mxu0 0.0
  %3344 = vmatpush1.xpose.msra.mxu0 0.0
  %3345 = vmatprep.subr.mxu0 0.0
  %3346 = vmatpush1.xpose.msra.mxu0 0.0
  %3347 = vmatprep.subr.mxu0 0.0
  %3348 = vmatpush1.xpose.msra.mxu0 0.0
  %3349 = vmatprep.subr.mxu0 0.0
  %3350 = vmatpush1.xpose.msra.mxu0 0.0
  %3351 = vmatprep.subr.mxu0 0.0
  %3352 = vmatpush1.xpose.msra.mxu0 0.0
  %3353 = vmatprep.subr.mxu0 0.0
  %3354 = vmatpush1.xpose.msra.mxu0 0.0
  %3355 = vmatprep.subr.mxu0 0.0
  %3356 = vmatpush1.xpose.msra.mxu0 0.0
  %3357 = vmatprep.subr.mxu0 0.0
  %3358 = vmatpush1.xpose.msra.mxu0 0.0
  %3359 = vmatprep.subr.mxu0 0.0
  %3360 = vmatpush1.xpose.msra.mxu0 0.0
  %3361 = vmatprep.subr.mxu0 0.0
  %3362 = vmatpush1.xpose.msra.mxu0 0.0
  %3363 = vmatprep.subr.mxu0 0.0
  %3364 = vmatpush1.xpose.msra.mxu0 0.0
  %3365 = vmatprep.subr.mxu0 0.0
  %3366 = vmatpush1.xpose.msra.mxu0 0.0
  %3367 = vmatprep.subr.mxu0 0.0
  %3368 = vmatpush1.xpose.msra.mxu0 0.0
  %3369 = vmatprep.mubr.f32.mxu0 0.0
  %3370 = vmatmul.mubr.f32.gmra.mrb[0].mxu0 %v3255
  %v3371 = vpop.f32.mrb[0].mxu0
  %v3372 = vadd.f32 0.0, %v3371
  %v3373 = vpop.f32.mrb[0].mxu0
  %3374 = vdwg.mxu0
  %v3376 = vsel %vm415, %v2120, 0
  %v3378 = vsel %vm415, %v1190, 0
  %v3380 = vsel %vm415, %v1191, 0
  %v3382 = vsel %vm415, %v1192, 0
  %v3384 = vsel %vm415, %v1193, 0
  %v3386 = vsel %vm415, %v1194, 0
  %v3388 = vsel %vm415, %v1195, 0
  %v3390 = vsel %vm415, %v1196, 0
  %v3392 = vsel %vm415, %v1197, 0
  %v3394 = vsel %vm415, %v1198, 0
  %v3396 = vsel %vm415, %v1199, 0
  %v3398 = vsel %vm415, %v1200, 0
  %v3400 = vsel %vm415, %v1201, 0
  %v3402 = vsel %vm415, %v1202, 0
  %v3404 = vsel %vm415, %v1203, 0
  %v3406 = vsel %vm415, %v1204, 0
  %v3408 = vsel %vm415, %v1205, 0
  %3410 = vmatprep.subr.mxu0 0.0
  %3411 = vmatpush1.xpose.msra.mxu0 %v3378
  %3412 = vmatprep.subr.mxu0 0.0
  %3413 = vmatpush1.xpose.msra.mxu0 %v3380
  %3414 = vmatprep.subr.mxu0 0.0
  %3415 = vmatpush1.xpose.msra.mxu0 %v3382
  %3416 = vmatprep.subr.mxu0 0.0
  %3417 = vmatpush1.xpose.msra.mxu0 %v3384
  %3418 = vmatprep.subr.mxu0 0.0
  %3419 = vmatpush1.xpose.msra.mxu0 %v3386
  %3420 = vmatprep.subr.mxu0 0.0
  %3421 = vmatpush1.xpose.msra.mxu0 %v3388
  %3422 = vmatprep.subr.mxu0 0.0
  %3423 = vmatpush1.xpose.msra.mxu0 %v3390
  %3424 = vmatprep.subr.mxu0 0.0
  %3425 = vmatpush1.xpose.msra.mxu0 %v3392
  %3426 = vmatprep.subr.mxu0 0.0
  %3427 = vmatpush1.xpose.msra.mxu0 %v3394
  %3428 = vmatprep.subr.mxu0 0.0
  %3429 = vmatpush1.xpose.msra.mxu0 %v3396
  %3430 = vmatprep.subr.mxu0 0.0
  %3431 = vmatpush1.xpose.msra.mxu0 %v3398
  %3432 = vmatprep.subr.mxu0 0.0
  %3433 = vmatpush1.xpose.msra.mxu0 %v3400
  %3434 = vmatprep.subr.mxu0 0.0
  %3435 = vmatpush1.xpose.msra.mxu0 %v3402
  %3436 = vmatprep.subr.mxu0 0.0
  %3437 = vmatpush1.xpose.msra.mxu0 %v3404
  %3438 = vmatprep.subr.mxu0 0.0
  %3439 = vmatpush1.xpose.msra.mxu0 %v3406
  %3440 = vmatprep.subr.mxu0 0.0
  %3441 = vmatpush1.xpose.msra.mxu0 %v3408
  %3442 = vmatprep.subr.mxu0 0.0
  %3443 = vmatpush1.xpose.msra.mxu0 0.0
  %3444 = vmatprep.subr.mxu0 0.0
  %3445 = vmatpush1.xpose.msra.mxu0 0.0
  %3446 = vmatprep.subr.mxu0 0.0
  %3447 = vmatpush1.xpose.msra.mxu0 0.0
  %3448 = vmatprep.subr.mxu0 0.0
  %3449 = vmatpush1.xpose.msra.mxu0 0.0
  %3450 = vmatprep.subr.mxu0 0.0
  %3451 = vmatpush1.xpose.msra.mxu0 0.0
  %3452 = vmatprep.subr.mxu0 0.0
  %3453 = vmatpush1.xpose.msra.mxu0 0.0
  %3454 = vmatprep.subr.mxu0 0.0
  %3455 = vmatpush1.xpose.msra.mxu0 0.0
  %3456 = vmatprep.subr.mxu0 0.0
  %3457 = vmatpush1.xpose.msra.mxu0 0.0
  %3458 = vmatprep.subr.mxu0 0.0
  %3459 = vmatpush1.xpose.msra.mxu0 0.0
  %3460 = vmatprep.subr.mxu0 0.0
  %3461 = vmatpush1.xpose.msra.mxu0 0.0
  %3462 = vmatprep.subr.mxu0 0.0
  %3463 = vmatpush1.xpose.msra.mxu0 0.0
  %3464 = vmatprep.subr.mxu0 0.0
  %3465 = vmatpush1.xpose.msra.mxu0 0.0
  %3466 = vmatprep.subr.mxu0 0.0
  %3467 = vmatpush1.xpose.msra.mxu0 0.0
  %3468 = vmatprep.subr.mxu0 0.0
  %3469 = vmatpush1.xpose.msra.mxu0 0.0
  %3470 = vmatprep.subr.mxu0 0.0
  %3471 = vmatpush1.xpose.msra.mxu0 0.0
  %3472 = vmatprep.subr.mxu0 0.0
  %3473 = vmatpush1.xpose.msra.mxu0 0.0
  %3474 = vmatprep.mubr.f32.mxu0 0.0
  %3475 = vmatmul.mubr.f32.gmra.mrb[0].mxu0 %v3376
  %v3476 = vpop.f32.mrb[0].mxu0
  %v3477 = vadd.f32 %v3372, %v3476
  %v3478 = vpop.f32.mrb[0].mxu0
  %3479 = vdwg.mxu0
  %3480 = vst [vmem:[%s8] sm:$0xff] %v3477
  // Predicated region
  $region34: #{preact_block_forward.1} parent=0 // pred_check
    _
  $region35: #{preact_block_forward.1} parent=0 // pred_check_branch
    %3482 = sbr.rel (0) target = $region37
  $region36: #{preact_block_forward.1} parent=0 // pred_region
    _
  $region37: #{preact_block_forward.1} parent=0 // pred_fallthru
    _
  // Predicated region
  $region38: #{preact_block_forward.1} parent=0 // pred_check
    _
  $region39: #{preact_block_forward.1} parent=0 // pred_check_branch
    %3484 = sbr.rel (0) target = $region41
  $region40: #{preact_block_forward.1} parent=0 // pred_region
    _
  $region41: #{preact_block_forward.1} parent=0 // pred_fallthru
    _

</llo_original>
